<compile_context>
chip_gen: v7x
topology: tpu7x:2x2x1
jax: 0.10.0
libtpu: 0.0.40
codegen_flags: <defaults>
</compile_context>

<pallas_src>
import functools

import jax
import jax.numpy as jnp
from jax.experimental import pallas as pl
from jax.experimental.pallas import tpu as pltpu

TEAM_DIMS = [572, 1024, 512, 256, 128, 64, 32]   # TeamBlock Linear chain (raw)
GAME_DIMS = [64, 32, 16, 8, 3]                   # gameClassifier Linear chain
N_TEAM = len(TEAM_DIMS) - 1                      # 6 Linear layers
N_GAME = len(GAME_DIMS) - 1                      # 4 Linear layers
K_RAW = TEAM_DIMS[0]                             # 572
K_PAD = 640                                      # next multiple of 128


def em_kernel(scale_ref, x_ref, *refs):
    """scale_ref: (2,) f32 in SMEM = [weight_1, weight_2].
    x_ref: (2, TILE_B, 640) f32 (index 0 = team-1 half, index 1 = team-2 half).
    refs:  12 team params (bf16 W / f32 b interleaved),
           9 game params (Wg0_lo, Wg0_hi, bg0, then (W, b) * 3),
           out_ref (TILE_B, 3).
    """
    out_ref = refs[-1]
    params = refs[:-1]
    team_p = params[: 2 * N_TEAM]
    game_p = params[2 * N_TEAM:]

    tile_b = x_ref.shape[1]
    k = x_ref.shape[2]

    # Both halves processed in one pass through the shared TeamBlock.
    h = x_ref[...].reshape(2 * tile_b, k)                      # (2*TB, 640) f32

    for i in range(N_TEAM):
        w = team_p[2 * i][...]                                 # bf16 (in, out)
        b = team_p[2 * i + 1][...]                             # f32  (1, out)
        h = jnp.dot(h.astype(jnp.bfloat16), w,
                    preferred_element_type=jnp.float32) + b
        if i < N_TEAM - 1:                                     # no ReLU after last
            h = jnp.maximum(h, 0.0)

    h1 = h[:tile_b, :] * scale_ref[0]                          # (TB, 32) f32
    h2 = h[tile_b:, :] * scale_ref[1]                          # (TB, 32) f32

    # First game layer with the 32+32 concat folded into two accumulating dots.
    g = (jnp.dot(h1, game_p[0][...], preferred_element_type=jnp.float32)
         + jnp.dot(h2, game_p[1][...], preferred_element_type=jnp.float32)
         + game_p[2][...])
    g = jnp.maximum(g, 0.0)

    rest = game_p[3:]                                          # (W, b) * 3
    for i in range(3):
        w = rest[2 * i][...]
        b = rest[2 * i + 1][...]
        g = jnp.dot(g, w, preferred_element_type=jnp.float32) + b
        if i < 2:
            g = jnp.maximum(g, 0.0)

    # Numerically stable softmax over dim=1.
    z = g - jnp.max(g, axis=1, keepdims=True)
    e = jnp.exp(z)
    out_ref[...] = e / jnp.sum(e, axis=1, keepdims=True)


def init_params(key):
    """Deterministic PyTorch-Linear-style init: U(-1/sqrt(fan_in), 1/sqrt(fan_in)).

    Weights stored as (in_features, out_features), biases as (out_features,).
    """
    def linear(key, fan_in, fan_out):
        kw, kb = jax.random.split(key)
        bound = 1.0 / (fan_in ** 0.5)
        w = jax.random.uniform(kw, (fan_in, fan_out), jnp.float32, -bound, bound)
        b = jax.random.uniform(kb, (fan_out,), jnp.float32, -bound, bound)
        return w, b

    team, game = [], []
    keys = jax.random.split(key, N_TEAM + N_GAME)
    k = 0
    for i in range(N_TEAM):
        team.extend(linear(keys[k], TEAM_DIMS[i], TEAM_DIMS[i + 1])); k += 1
    for i in range(N_GAME):
        game.extend(linear(keys[k], GAME_DIMS[i], GAME_DIMS[i + 1])); k += 1
    return team, game


def prepare_kernel_params(team_params, game_params):
    """One-time prep: pad first-layer K to 640, cast team W to bf16, split the
    first game layer into its two 32-row halves, biases -> (1, out) f32."""
    team_k = []
    for i in range(N_TEAM):
        w = team_params[2 * i]
        b = team_params[2 * i + 1]
        if i == 0:
            w = jnp.pad(w, ((0, K_PAD - K_RAW), (0, 0)))       # zero K-pad rows
        team_k.append(w.astype(jnp.bfloat16))
        team_k.append(b.reshape(1, -1).astype(jnp.float32))

    game_k = []
    wg0 = game_params[0]
    bg0 = game_params[1]
    game_k.append(wg0[:32, :].astype(jnp.float32))             # acts on h1
    game_k.append(wg0[32:, :].astype(jnp.float32))             # acts on h2
    game_k.append(bg0.reshape(1, -1).astype(jnp.float32))
    for i in range(1, N_GAME):
        game_k.append(game_params[2 * i].astype(jnp.float32))
        game_k.append(game_params[2 * i + 1].reshape(1, -1).astype(jnp.float32))
    return tuple(team_k), tuple(game_k)


@jax.jit
def em_model_forward(x, kernel_team, kernel_game, weight_1, weight_2):
    B = x.shape[0]
    x1 = x[:, :, :26].reshape(B, -1).astype(jnp.float32)       # (B, 572)
    x2 = x[:, :, 26:].reshape(B, -1).astype(jnp.float32)       # (B, 572)

    # Batch tile: 256 rows fill the v6e/v7x MXU; small batches get one
    # 8-aligned tile (grid of 1).
    tile_b = 256 if B >= 256 else max(8, ((B + 7) // 8) * 8)
    b_pad = ((B + tile_b - 1) // tile_b) * tile_b
    pad_r = b_pad - B
    pad_k = K_PAD - K_RAW

    x1 = jnp.pad(x1, ((0, pad_r), (0, pad_k)))
    x2 = jnp.pad(x2, ((0, pad_r), (0, pad_k)))
    xs = jnp.stack([x1, x2], axis=0)                           # (2, b_pad, 640)

    scale = jnp.stack([jnp.asarray(weight_1, jnp.float32),
                       jnp.asarray(weight_2, jnp.float32)])    # (2,)

    params = list(kernel_team) + list(kernel_game)

    # Specs: x/out tiled over the batch grid; every weight/bias has a constant
    # index_map so it is fetched once and stays VMEM-resident.
    x_spec = pl.BlockSpec((2, tile_b, K_PAD), lambda i: (0, i, 0))
    out_spec = pl.BlockSpec((tile_b, 3), lambda i: (i, 0))
    scale_spec = pl.BlockSpec(memory_space=pltpu.MemorySpace.SMEM)

    def const_spec(arr):
        nd = arr.ndim
        return pl.BlockSpec(arr.shape, lambda i, _nd=nd: (0,) * _nd)

    param_specs = [const_spec(p) for p in params]

    flops = (2 * (2 * b_pad) * sum(TEAM_DIMS[i] * TEAM_DIMS[i + 1]
                                   for i in range(N_TEAM))
             + 2 * b_pad * sum(GAME_DIMS[i] * GAME_DIMS[i + 1]
                               for i in range(N_GAME)))
    bytes_accessed = (sum(int(p.size) * p.dtype.itemsize for p in params)
                      + int(xs.size) * 4 + b_pad * 3 * 4)
    cost = pl.CostEstimate(flops=flops, transcendentals=3 * b_pad,
                           bytes_accessed=bytes_accessed)

    out = pl.pallas_call(
        em_kernel,
        out_shape=jax.ShapeDtypeStruct((b_pad, 3), jnp.float32),
        grid=(b_pad // tile_b,),
        in_specs=[scale_spec, x_spec] + param_specs,
        out_specs=out_spec,
        compiler_params=pltpu.CompilerParams(
            dimension_semantics=("parallel",),
            vmem_limit_bytes=32 * 1024 * 1024),
        cost_estimate=cost,
    )(scale, xs, *params)
    return out[:B]


def em_model_reference(x, team_params, game_params, weight_1, weight_2):
    """Pure-JAX f32 reference matching the PyTorch forward, for verification."""
    B = x.shape[0]

    def mlp(h, plist):
        n = len(plist) // 2
        for i in range(n):
            h = h @ plist[2 * i] + plist[2 * i + 1]
            if i < n - 1:
                h = jnp.maximum(h, 0.0)
        return h

    x1 = x[:, :, :26].reshape(B, -1)
    x2 = x[:, :, 26:].reshape(B, -1)
    h1 = mlp(x1, team_params) * weight_1
    h2 = mlp(x2, team_params) * weight_2
    teams = jnp.concatenate([h1, h2], axis=1)
    logits = mlp(teams, game_params)
    return jax.nn.softmax(logits, axis=1)


if __name__ == "__main__":
    key = jax.random.PRNGKey(0)
    k_params, k_x = jax.random.split(key)

    team_params, game_params = init_params(k_params)
    kernel_team, kernel_game = prepare_kernel_params(team_params, game_params)

    B = 8
    # x: (B, 22, 52)  ->  22*26 = 572 features per team half.
    x = jax.random.normal(k_x, (B, 22, 52), dtype=jnp.float32)

    w1, w2 = 1.25, 0.75
    out = em_model_forward(x, kernel_team, kernel_game, w1, w2)
    out = jax.block_until_ready(out)

    ref = em_model_reference(x, team_params, game_params, w1, w2)

    assert out.shape == (B, 3)
    assert jnp.allclose(jnp.sum(out, axis=1), 1.0, atol=1e-5)
    # bf16 team weights -> loosened tolerance vs. the f32 reference.
    assert jnp.allclose(out, ref, atol=3e-2, rtol=3e-2), float(jnp.max(jnp.abs(out - ref)))

    print("KERNEL_OK")
</pallas_src>

<mosaic_0001>
module attributes {stable_mosaic.version = 11 : i64} {
  func.func @em_kernel(%arg0: i32, %arg1: memref<2xf32, #tpu.memory_space<smem>>, %arg2: memref<2x8x640xf32, #tpu.memory_space<vmem>>, %arg3: memref<640x1024xbf16, #tpu.memory_space<vmem>>, %arg4: memref<1x1024xf32, #tpu.memory_space<vmem>>, %arg5: memref<1024x512xbf16, #tpu.memory_space<vmem>>, %arg6: memref<1x512xf32, #tpu.memory_space<vmem>>, %arg7: memref<512x256xbf16, #tpu.memory_space<vmem>>, %arg8: memref<1x256xf32, #tpu.memory_space<vmem>>, %arg9: memref<256x128xbf16, #tpu.memory_space<vmem>>, %arg10: memref<1x128xf32, #tpu.memory_space<vmem>>, %arg11: memref<128x64xbf16, #tpu.memory_space<vmem>>, %arg12: memref<1x64xf32, #tpu.memory_space<vmem>>, %arg13: memref<64x32xbf16, #tpu.memory_space<vmem>>, %arg14: memref<1x32xf32, #tpu.memory_space<vmem>>, %arg15: memref<32x32xf32, #tpu.memory_space<vmem>>, %arg16: memref<32x32xf32, #tpu.memory_space<vmem>>, %arg17: memref<1x32xf32, #tpu.memory_space<vmem>>, %arg18: memref<32x16xf32, #tpu.memory_space<vmem>>, %arg19: memref<1x16xf32, #tpu.memory_space<vmem>>, %arg20: memref<16x8xf32, #tpu.memory_space<vmem>>, %arg21: memref<1x8xf32, #tpu.memory_space<vmem>>, %arg22: memref<8x3xf32, #tpu.memory_space<vmem>>, %arg23: memref<1x3xf32, #tpu.memory_space<vmem>>, %arg24: memref<8x3xf32, #tpu.memory_space<vmem>>) attributes {dimension_semantics = [#tpu.dimension_semantics<parallel>], iteration_bounds = array<i64: 1>, scalar_prefetch = 0 : i64, scratch_operands = 0 : i64, tpu.core_type = #tpu.core_type<tc>, window_params = [{transform_indices = @transform_0, window_bounds = array<i64: 2>}, {transform_indices = @transform_1, window_bounds = array<i64: 2, 8, 640>}, {pipeline_mode = #tpu.pipeline_mode<synchronous>, transform_indices = @transform_2, window_bounds = array<i64: 640, 1024>}, {pipeline_mode = #tpu.pipeline_mode<synchronous>, transform_indices = @transform_3, window_bounds = array<i64: 1, 1024>}, {pipeline_mode = #tpu.pipeline_mode<synchronous>, transform_indices = @transform_4, window_bounds = array<i64: 1024, 512>}, {pipeline_mode = #tpu.pipeline_mode<synchronous>, transform_indices = @transform_5, window_bounds = array<i64: 1, 512>}, {pipeline_mode = #tpu.pipeline_mode<synchronous>, transform_indices = @transform_6, window_bounds = array<i64: 512, 256>}, {pipeline_mode = #tpu.pipeline_mode<synchronous>, transform_indices = @transform_7, window_bounds = array<i64: 1, 256>}, {pipeline_mode = #tpu.pipeline_mode<synchronous>, transform_indices = @transform_8, window_bounds = array<i64: 256, 128>}, {pipeline_mode = #tpu.pipeline_mode<synchronous>, transform_indices = @transform_9, window_bounds = array<i64: 1, 128>}, {pipeline_mode = #tpu.pipeline_mode<synchronous>, transform_indices = @transform_10, window_bounds = array<i64: 128, 64>}, {pipeline_mode = #tpu.pipeline_mode<synchronous>, transform_indices = @transform_11, window_bounds = array<i64: 1, 64>}, {pipeline_mode = #tpu.pipeline_mode<synchronous>, transform_indices = @transform_12, window_bounds = array<i64: 64, 32>}, {pipeline_mode = #tpu.pipeline_mode<synchronous>, transform_indices = @transform_13, window_bounds = array<i64: 1, 32>}, {pipeline_mode = #tpu.pipeline_mode<synchronous>, transform_indices = @transform_14, window_bounds = array<i64: 32, 32>}, {pipeline_mode = #tpu.pipeline_mode<synchronous>, transform_indices = @transform_15, window_bounds = array<i64: 32, 32>}, {pipeline_mode = #tpu.pipeline_mode<synchronous>, transform_indices = @transform_16, window_bounds = array<i64: 1, 32>}, {pipeline_mode = #tpu.pipeline_mode<synchronous>, transform_indices = @transform_17, window_bounds = array<i64: 32, 16>}, {pipeline_mode = #tpu.pipeline_mode<synchronous>, transform_indices = @transform_18, window_bounds = array<i64: 1, 16>}, {pipeline_mode = #tpu.pipeline_mode<synchronous>, transform_indices = @transform_19, window_bounds = array<i64: 16, 8>}, {pipeline_mode = #tpu.pipeline_mode<synchronous>, transform_indices = @transform_20, window_bounds = array<i64: 1, 8>}, {pipeline_mode = #tpu.pipeline_mode<synchronous>, transform_indices = @transform_21, window_bounds = array<i64: 8, 3>}, {pipeline_mode = #tpu.pipeline_mode<synchronous>, transform_indices = @transform_22, window_bounds = array<i64: 1, 3>}, {transform_indices = @transform_23, window_bounds = array<i64: 8, 3>}]} {
    %c0 = arith.constant 0 : index
    %c0_0 = arith.constant 0 : index
    %c0_1 = arith.constant 0 : index
    %0 = vector.load %arg2[%c0, %c0_0, %c0_1] : memref<2x8x640xf32, #tpu.memory_space<vmem>>, vector<2x8x640xf32>
    %1 = vector.shape_cast %0 : vector<2x8x640xf32> to vector<16x640xf32>
    %c0_2 = arith.constant 0 : index
    %c0_3 = arith.constant 0 : index
    %2 = vector.load %arg3[%c0_2, %c0_3] : memref<640x1024xbf16, #tpu.memory_space<vmem>>, vector<640x1024xbf16>
    %c0_4 = arith.constant 0 : index
    %c0_5 = arith.constant 0 : index
    %3 = vector.load %arg4[%c0_4, %c0_5] : memref<1x1024xf32, #tpu.memory_space<vmem>>, vector<1x1024xf32>
    %4 = arith.truncf %1 : vector<16x640xf32> to vector<16x640xbf16>
    %cst = arith.constant dense<0.000000e+00> : vector<16x1024xf32>
    %5 = tpu.matmul %4, %2, %cst {dimension_numbers = #tpu.dot_dimension_numbers<[1], [0], [0], [1], [0, 0, 1, 1], [], []>} : vector<16x640xbf16>, vector<640x1024xbf16>, vector<16x1024xf32> -> vector<16x1024xf32>
    %6 = vector.broadcast %3 : vector<1x1024xf32> to vector<16x1024xf32>
    %7 = arith.addf %5, %6 : vector<16x1024xf32>
    %cst_6 = arith.constant 0.000000e+00 : f32
    %8 = vector.broadcast %cst_6 : f32 to vector<16x1024xf32>
    %9 = arith.maximumf %7, %8 : vector<16x1024xf32>
    %c0_7 = arith.constant 0 : index
    %c0_8 = arith.constant 0 : index
    %10 = vector.load %arg5[%c0_7, %c0_8] : memref<1024x512xbf16, #tpu.memory_space<vmem>>, vector<1024x512xbf16>
    %c0_9 = arith.constant 0 : index
    %c0_10 = arith.constant 0 : index
    %11 = vector.load %arg6[%c0_9, %c0_10] : memref<1x512xf32, #tpu.memory_space<vmem>>, vector<1x512xf32>
    %12 = arith.truncf %9 : vector<16x1024xf32> to vector<16x1024xbf16>
    %cst_11 = arith.constant dense<0.000000e+00> : vector<16x512xf32>
    %13 = tpu.matmul %12, %10, %cst_11 {dimension_numbers = #tpu.dot_dimension_numbers<[1], [0], [0], [1], [0, 0, 1, 1], [], []>} : vector<16x1024xbf16>, vector<1024x512xbf16>, vector<16x512xf32> -> vector<16x512xf32>
    %14 = vector.broadcast %11 : vector<1x512xf32> to vector<16x512xf32>
    %15 = arith.addf %13, %14 : vector<16x512xf32>
    %cst_12 = arith.constant 0.000000e+00 : f32
    %16 = vector.broadcast %cst_12 : f32 to vector<16x512xf32>
    %17 = arith.maximumf %15, %16 : vector<16x512xf32>
    %c0_13 = arith.constant 0 : index
    %c0_14 = arith.constant 0 : index
    %18 = vector.load %arg7[%c0_13, %c0_14] : memref<512x256xbf16, #tpu.memory_space<vmem>>, vector<512x256xbf16>
    %c0_15 = arith.constant 0 : index
    %c0_16 = arith.constant 0 : index
    %19 = vector.load %arg8[%c0_15, %c0_16] : memref<1x256xf32, #tpu.memory_space<vmem>>, vector<1x256xf32>
    %20 = arith.truncf %17 : vector<16x512xf32> to vector<16x512xbf16>
    %cst_17 = arith.constant dense<0.000000e+00> : vector<16x256xf32>
    %21 = tpu.matmul %20, %18, %cst_17 {dimension_numbers = #tpu.dot_dimension_numbers<[1], [0], [0], [1], [0, 0, 1, 1], [], []>} : vector<16x512xbf16>, vector<512x256xbf16>, vector<16x256xf32> -> vector<16x256xf32>
    %22 = vector.broadcast %19 : vector<1x256xf32> to vector<16x256xf32>
    %23 = arith.addf %21, %22 : vector<16x256xf32>
    %cst_18 = arith.constant 0.000000e+00 : f32
    %24 = vector.broadcast %cst_18 : f32 to vector<16x256xf32>
    %25 = arith.maximumf %23, %24 : vector<16x256xf32>
    %c0_19 = arith.constant 0 : index
    %c0_20 = arith.constant 0 : index
    %26 = vector.load %arg9[%c0_19, %c0_20] : memref<256x128xbf16, #tpu.memory_space<vmem>>, vector<256x128xbf16>
    %c0_21 = arith.constant 0 : index
    %c0_22 = arith.constant 0 : index
    %27 = vector.load %arg10[%c0_21, %c0_22] : memref<1x128xf32, #tpu.memory_space<vmem>>, vector<1x128xf32>
    %28 = arith.truncf %25 : vector<16x256xf32> to vector<16x256xbf16>
    %cst_23 = arith.constant dense<0.000000e+00> : vector<16x128xf32>
    %29 = tpu.matmul %28, %26, %cst_23 {dimension_numbers = #tpu.dot_dimension_numbers<[1], [0], [0], [1], [0, 0, 1, 1], [], []>} : vector<16x256xbf16>, vector<256x128xbf16>, vector<16x128xf32> -> vector<16x128xf32>
    %30 = vector.broadcast %27 : vector<1x128xf32> to vector<16x128xf32>
    %31 = arith.addf %29, %30 : vector<16x128xf32>
    %cst_24 = arith.constant 0.000000e+00 : f32
    %32 = vector.broadcast %cst_24 : f32 to vector<16x128xf32>
    %33 = arith.maximumf %31, %32 : vector<16x128xf32>
    %c0_25 = arith.constant 0 : index
    %c0_26 = arith.constant 0 : index
    %34 = vector.load %arg11[%c0_25, %c0_26] : memref<128x64xbf16, #tpu.memory_space<vmem>>, vector<128x64xbf16>
    %c0_27 = arith.constant 0 : index
    %c0_28 = arith.constant 0 : index
    %35 = vector.load %arg12[%c0_27, %c0_28] : memref<1x64xf32, #tpu.memory_space<vmem>>, vector<1x64xf32>
    %36 = arith.truncf %33 : vector<16x128xf32> to vector<16x128xbf16>
    %cst_29 = arith.constant dense<0.000000e+00> : vector<16x64xf32>
    %37 = tpu.matmul %36, %34, %cst_29 {dimension_numbers = #tpu.dot_dimension_numbers<[1], [0], [0], [1], [0, 0, 1, 1], [], []>} : vector<16x128xbf16>, vector<128x64xbf16>, vector<16x64xf32> -> vector<16x64xf32>
    %38 = vector.broadcast %35 : vector<1x64xf32> to vector<16x64xf32>
    %39 = arith.addf %37, %38 : vector<16x64xf32>
    %cst_30 = arith.constant 0.000000e+00 : f32
    %40 = vector.broadcast %cst_30 : f32 to vector<16x64xf32>
    %41 = arith.maximumf %39, %40 : vector<16x64xf32>
    %c0_31 = arith.constant 0 : index
    %c0_32 = arith.constant 0 : index
    %42 = vector.load %arg13[%c0_31, %c0_32] : memref<64x32xbf16, #tpu.memory_space<vmem>>, vector<64x32xbf16>
    %c0_33 = arith.constant 0 : index
    %c0_34 = arith.constant 0 : index
    %43 = vector.load %arg14[%c0_33, %c0_34] : memref<1x32xf32, #tpu.memory_space<vmem>>, vector<1x32xf32>
    %44 = arith.truncf %41 : vector<16x64xf32> to vector<16x64xbf16>
    %cst_35 = arith.constant dense<0.000000e+00> : vector<16x32xf32>
    %45 = tpu.matmul %44, %42, %cst_35 {dimension_numbers = #tpu.dot_dimension_numbers<[1], [0], [0], [1], [0, 0, 1, 1], [], []>} : vector<16x64xbf16>, vector<64x32xbf16>, vector<16x32xf32> -> vector<16x32xf32>
    %46 = vector.broadcast %43 : vector<1x32xf32> to vector<16x32xf32>
    %47 = arith.addf %45, %46 : vector<16x32xf32>
    %48 = vector.extract_strided_slice %47 {offsets = [0, 0], sizes = [8, 32], strides = [1, 1]} : vector<16x32xf32> to vector<8x32xf32>
    %c0_36 = arith.constant 0 : index
    %49 = memref.load %arg1[%c0_36] : memref<2xf32, #tpu.memory_space<smem>>
    %50 = vector.broadcast %49 : f32 to vector<8x32xf32>
    %51 = arith.mulf %48, %50 : vector<8x32xf32>
    %52 = vector.extract_strided_slice %47 {offsets = [8, 0], sizes = [8, 32], strides = [1, 1]} : vector<16x32xf32> to vector<8x32xf32>
    %c1 = arith.constant 1 : index
    %53 = memref.load %arg1[%c1] : memref<2xf32, #tpu.memory_space<smem>>
    %54 = vector.broadcast %53 : f32 to vector<8x32xf32>
    %55 = arith.mulf %52, %54 : vector<8x32xf32>
    %c0_37 = arith.constant 0 : index
    %c0_38 = arith.constant 0 : index
    %56 = vector.load %arg15[%c0_37, %c0_38] : memref<32x32xf32, #tpu.memory_space<vmem>>, vector<32x32xf32>
    %cst_39 = arith.constant dense<0.000000e+00> : vector<8x32xf32>
    %57 = tpu.matmul %51, %56, %cst_39 {dimension_numbers = #tpu.dot_dimension_numbers<[1], [0], [0], [1], [0, 0, 1, 1], [], []>} : vector<8x32xf32>, vector<32x32xf32>, vector<8x32xf32> -> vector<8x32xf32>
    %c0_40 = arith.constant 0 : index
    %c0_41 = arith.constant 0 : index
    %58 = vector.load %arg16[%c0_40, %c0_41] : memref<32x32xf32, #tpu.memory_space<vmem>>, vector<32x32xf32>
    %cst_42 = arith.constant dense<0.000000e+00> : vector<8x32xf32>
    %59 = tpu.matmul %55, %58, %cst_42 {dimension_numbers = #tpu.dot_dimension_numbers<[1], [0], [0], [1], [0, 0, 1, 1], [], []>} : vector<8x32xf32>, vector<32x32xf32>, vector<8x32xf32> -> vector<8x32xf32>
    %60 = arith.addf %57, %59 : vector<8x32xf32>
    %c0_43 = arith.constant 0 : index
    %c0_44 = arith.constant 0 : index
    %61 = vector.load %arg17[%c0_43, %c0_44] : memref<1x32xf32, #tpu.memory_space<vmem>>, vector<1x32xf32>
    %62 = vector.broadcast %61 : vector<1x32xf32> to vector<8x32xf32>
    %63 = arith.addf %60, %62 : vector<8x32xf32>
    %cst_45 = arith.constant 0.000000e+00 : f32
    %64 = vector.broadcast %cst_45 : f32 to vector<8x32xf32>
    %65 = arith.maximumf %63, %64 : vector<8x32xf32>
    %c0_46 = arith.constant 0 : index
    %c0_47 = arith.constant 0 : index
    %66 = vector.load %arg18[%c0_46, %c0_47] : memref<32x16xf32, #tpu.memory_space<vmem>>, vector<32x16xf32>
    %c0_48 = arith.constant 0 : index
    %c0_49 = arith.constant 0 : index
    %67 = vector.load %arg19[%c0_48, %c0_49] : memref<1x16xf32, #tpu.memory_space<vmem>>, vector<1x16xf32>
    %cst_50 = arith.constant dense<0.000000e+00> : vector<8x16xf32>
    %68 = tpu.matmul %65, %66, %cst_50 {dimension_numbers = #tpu.dot_dimension_numbers<[1], [0], [0], [1], [0, 0, 1, 1], [], []>} : vector<8x32xf32>, vector<32x16xf32>, vector<8x16xf32> -> vector<8x16xf32>
    %69 = vector.broadcast %67 : vector<1x16xf32> to vector<8x16xf32>
    %70 = arith.addf %68, %69 : vector<8x16xf32>
    %cst_51 = arith.constant 0.000000e+00 : f32
    %71 = vector.broadcast %cst_51 : f32 to vector<8x16xf32>
    %72 = arith.maximumf %70, %71 : vector<8x16xf32>
    %c0_52 = arith.constant 0 : index
    %c0_53 = arith.constant 0 : index
    %73 = vector.load %arg20[%c0_52, %c0_53] : memref<16x8xf32, #tpu.memory_space<vmem>>, vector<16x8xf32>
    %c0_54 = arith.constant 0 : index
    %c0_55 = arith.constant 0 : index
    %74 = vector.load %arg21[%c0_54, %c0_55] : memref<1x8xf32, #tpu.memory_space<vmem>>, vector<1x8xf32>
    %cst_56 = arith.constant dense<0.000000e+00> : vector<8x8xf32>
    %75 = tpu.matmul %72, %73, %cst_56 {dimension_numbers = #tpu.dot_dimension_numbers<[1], [0], [0], [1], [0, 0, 1, 1], [], []>} : vector<8x16xf32>, vector<16x8xf32>, vector<8x8xf32> -> vector<8x8xf32>
    %76 = vector.broadcast %74 : vector<1x8xf32> to vector<8x8xf32>
    %77 = arith.addf %75, %76 : vector<8x8xf32>
    %cst_57 = arith.constant 0.000000e+00 : f32
    %78 = vector.broadcast %cst_57 : f32 to vector<8x8xf32>
    %79 = arith.maximumf %77, %78 : vector<8x8xf32>
    %c0_58 = arith.constant 0 : index
    %c0_59 = arith.constant 0 : index
    %80 = vector.load %arg22[%c0_58, %c0_59] : memref<8x3xf32, #tpu.memory_space<vmem>>, vector<8x3xf32>
    %c0_60 = arith.constant 0 : index
    %c0_61 = arith.constant 0 : index
    %81 = vector.load %arg23[%c0_60, %c0_61] : memref<1x3xf32, #tpu.memory_space<vmem>>, vector<1x3xf32>
    %cst_62 = arith.constant dense<0.000000e+00> : vector<8x3xf32>
    %82 = tpu.matmul %79, %80, %cst_62 {dimension_numbers = #tpu.dot_dimension_numbers<[1], [0], [0], [1], [0, 0, 1, 1], [], []>} : vector<8x8xf32>, vector<8x3xf32>, vector<8x3xf32> -> vector<8x3xf32>
    %83 = vector.broadcast %81 : vector<1x3xf32> to vector<8x3xf32>
    %84 = arith.addf %82, %83 : vector<8x3xf32>
    %cst_63 = arith.constant dense<0xFF800000> : vector<8xf32>
    %85 = vector.multi_reduction <maximumf>, %84, %cst_63 [1] : vector<8x3xf32> to vector<8xf32>
    %86 = vector.shape_cast %85 : vector<8xf32> to vector<8x1xf32>
    %87 = vector.broadcast %86 : vector<8x1xf32> to vector<8x3xf32>
    %88 = arith.subf %84, %87 : vector<8x3xf32>
    %89 = math.exp %88 : vector<8x3xf32>
    %cst_64 = arith.constant dense<0.000000e+00> : vector<8xf32>
    %90 = vector.multi_reduction <add>, %89, %cst_64 [1] : vector<8x3xf32> to vector<8xf32>
    %91 = vector.shape_cast %90 : vector<8xf32> to vector<8x1xf32>
    %92 = vector.broadcast %91 : vector<8x1xf32> to vector<8x3xf32>
    %93 = arith.divf %89, %92 : vector<8x3xf32>
    %c0_65 = arith.constant 0 : index
    %c0_66 = arith.constant 0 : index
    %94 = vector.load %arg24[%c0_65, %c0_66] : memref<8x3xf32, #tpu.memory_space<vmem>>, vector<8x3xf32>
    tpu.vector_store %arg24[%c0_65, %c0_66], %93 {strides = array<i32>} : memref<8x3xf32, #tpu.memory_space<vmem>>, vector<8x3xf32>,
    return
  }
  func.func @transform_0(%arg0: i32) -> i32 {
    %c0_i32 = arith.constant 0 : i32
    %c0_i32_0 = arith.constant 0 : i32
    return %c0_i32 : i32
  }
  func.func @transform_1(%arg0: i32) -> (i32, i32, i32) {
    %c0_i32 = arith.constant 0 : i32
    %c0_i32_0 = arith.constant 0 : i32
    %c0_i32_1 = arith.constant 0 : i32
    return %c0_i32, %arg0, %c0_i32_0 : i32, i32, i32
  }
  func.func @transform_2(%arg0: i32) -> (i32, i32) {
    %c0_i32 = arith.constant 0 : i32
    %c0_i32_0 = arith.constant 0 : i32
    %c0_i32_1 = arith.constant 0 : i32
    return %c0_i32, %c0_i32_0 : i32, i32
  }
  func.func @transform_3(%arg0: i32) -> (i32, i32) {
    %c0_i32 = arith.constant 0 : i32
    %c0_i32_0 = arith.constant 0 : i32
    %c0_i32_1 = arith.constant 0 : i32
    return %c0_i32, %c0_i32_0 : i32, i32
  }
  func.func @transform_4(%arg0: i32) -> (i32, i32) {
    %c0_i32 = arith.constant 0 : i32
    %c0_i32_0 = arith.constant 0 : i32
    %c0_i32_1 = arith.constant 0 : i32
    return %c0_i32, %c0_i32_0 : i32, i32
  }
  func.func @transform_5(%arg0: i32) -> (i32, i32) {
    %c0_i32 = arith.constant 0 : i32
    %c0_i32_0 = arith.constant 0 : i32
    %c0_i32_1 = arith.constant 0 : i32
    return %c0_i32, %c0_i32_0 : i32, i32
  }
  func.func @transform_6(%arg0: i32) -> (i32, i32) {
    %c0_i32 = arith.constant 0 : i32
    %c0_i32_0 = arith.constant 0 : i32
    %c0_i32_1 = arith.constant 0 : i32
    return %c0_i32, %c0_i32_0 : i32, i32
  }
  func.func @transform_7(%arg0: i32) -> (i32, i32) {
    %c0_i32 = arith.constant 0 : i32
    %c0_i32_0 = arith.constant 0 : i32
    %c0_i32_1 = arith.constant 0 : i32
    return %c0_i32, %c0_i32_0 : i32, i32
  }
  func.func @transform_8(%arg0: i32) -> (i32, i32) {
    %c0_i32 = arith.constant 0 : i32
    %c0_i32_0 = arith.constant 0 : i32
    %c0_i32_1 = arith.constant 0 : i32
    return %c0_i32, %c0_i32_0 : i32, i32
  }
  func.func @transform_9(%arg0: i32) -> (i32, i32) {
    %c0_i32 = arith.constant 0 : i32
    %c0_i32_0 = arith.constant 0 : i32
    %c0_i32_1 = arith.constant 0 : i32
    return %c0_i32, %c0_i32_0 : i32, i32
  }
  func.func @transform_10(%arg0: i32) -> (i32, i32) {
    %c0_i32 = arith.constant 0 : i32
    %c0_i32_0 = arith.constant 0 : i32
    %c0_i32_1 = arith.constant 0 : i32
    return %c0_i32, %c0_i32_0 : i32, i32
  }
  func.func @transform_11(%arg0: i32) -> (i32, i32) {
    %c0_i32 = arith.constant 0 : i32
    %c0_i32_0 = arith.constant 0 : i32
    %c0_i32_1 = arith.constant 0 : i32
    return %c0_i32, %c0_i32_0 : i32, i32
  }
  func.func @transform_12(%arg0: i32) -> (i32, i32) {
    %c0_i32 = arith.constant 0 : i32
    %c0_i32_0 = arith.constant 0 : i32
    %c0_i32_1 = arith.constant 0 : i32
    return %c0_i32, %c0_i32_0 : i32, i32
  }
  func.func @transform_13(%arg0: i32) -> (i32, i32) {
    %c0_i32 = arith.constant 0 : i32
    %c0_i32_0 = arith.constant 0 : i32
    %c0_i32_1 = arith.constant 0 : i32
    return %c0_i32, %c0_i32_0 : i32, i32
  }
  func.func @transform_14(%arg0: i32) -> (i32, i32) {
    %c0_i32 = arith.constant 0 : i32
    %c0_i32_0 = arith.constant 0 : i32
    %c0_i32_1 = arith.constant 0 : i32
    return %c0_i32, %c0_i32_0 : i32, i32
  }
  func.func @transform_15(%arg0: i32) -> (i32, i32) {
    %c0_i32 = arith.constant 0 : i32
    %c0_i32_0 = arith.constant 0 : i32
    %c0_i32_1 = arith.constant 0 : i32
    return %c0_i32, %c0_i32_0 : i32, i32
  }
  func.func @transform_16(%arg0: i32) -> (i32, i32) {
    %c0_i32 = arith.constant 0 : i32
    %c0_i32_0 = arith.constant 0 : i32
    %c0_i32_1 = arith.constant 0 : i32
    return %c0_i32, %c0_i32_0 : i32, i32
  }
  func.func @transform_17(%arg0: i32) -> (i32, i32) {
    %c0_i32 = arith.constant 0 : i32
    %c0_i32_0 = arith.constant 0 : i32
    %c0_i32_1 = arith.constant 0 : i32
    return %c0_i32, %c0_i32_0 : i32, i32
  }
  func.func @transform_18(%arg0: i32) -> (i32, i32) {
    %c0_i32 = arith.constant 0 : i32
    %c0_i32_0 = arith.constant 0 : i32
    %c0_i32_1 = arith.constant 0 : i32
    return %c0_i32, %c0_i32_0 : i32, i32
  }
  func.func @transform_19(%arg0: i32) -> (i32, i32) {
    %c0_i32 = arith.constant 0 : i32
    %c0_i32_0 = arith.constant 0 : i32
    %c0_i32_1 = arith.constant 0 : i32
    return %c0_i32, %c0_i32_0 : i32, i32
  }
  func.func @transform_20(%arg0: i32) -> (i32, i32) {
    %c0_i32 = arith.constant 0 : i32
    %c0_i32_0 = arith.constant 0 : i32
    %c0_i32_1 = arith.constant 0 : i32
    return %c0_i32, %c0_i32_0 : i32, i32
  }
  func.func @transform_21(%arg0: i32) -> (i32, i32) {
    %c0_i32 = arith.constant 0 : i32
    %c0_i32_0 = arith.constant 0 : i32
    %c0_i32_1 = arith.constant 0 : i32
    return %c0_i32, %c0_i32_0 : i32, i32
  }
  func.func @transform_22(%arg0: i32) -> (i32, i32) {
    %c0_i32 = arith.constant 0 : i32
    %c0_i32_0 = arith.constant 0 : i32
    %c0_i32_1 = arith.constant 0 : i32
    return %c0_i32, %c0_i32_0 : i32, i32
  }
  func.func @transform_23(%arg0: i32) -> (i32, i32) {
    %c0_i32 = arith.constant 0 : i32
    %c0_i32_0 = arith.constant 0 : i32
    return %arg0, %c0_i32 : i32, i32
  }
}

</mosaic_0001>

<llo_original>
// kernel: em_model_forward.1
$region0: #{em_model_forward.1}
  #allocation0 [shape = 'u32[]', space=smem, size = 0x4, offset = 0x4, fixed_abs, tag = 'smem constant byte address 0x4 - core index']
  #allocation1 [shape = 'u32[144,128]{1,0:T(1,128)}', space=vmem, size = 0x12000, scoped, tag = 'internal scratch']
  %s0 = inlined_call_operand.vmem [shape: f32[2], index: 0, kind: input, shape index: {}]
  %s1 = inlined_call_operand.vmem [shape: f32[2,8,640], index: 1, kind: input, shape index: {}]
  %s2 = inlined_call_operand.hbm [shape: bf16[640,1024], index: 2, kind: input, shape index: {}]
  %s3 = inlined_call_operand.hbm [shape: f32[1,1024], index: 3, kind: input, shape index: {}]
  %s4 = inlined_call_operand.vmem [shape: bf16[1024,512], index: 4, kind: input, shape index: {}]
  %s5 = inlined_call_operand.hbm [shape: f32[1,512], index: 5, kind: input, shape index: {}]
  %s6 = inlined_call_operand.hbm [shape: bf16[512,256], index: 6, kind: input, shape index: {}]
  %s7 = inlined_call_operand.hbm [shape: f32[1,256], index: 7, kind: input, shape index: {}]
  %s8 = inlined_call_operand.vmem [shape: bf16[256,128], index: 8, kind: input, shape index: {}]
  %s9 = inlined_call_operand.hbm [shape: f32[1,128], index: 9, kind: input, shape index: {}]
  %s10 = inlined_call_operand.vmem [shape: bf16[128,64], index: 10, kind: input, shape index: {}]
  %s11 = inlined_call_operand.hbm [shape: f32[1,64], index: 11, kind: input, shape index: {}]
  %s12 = inlined_call_operand.vmem [shape: bf16[64,32], index: 12, kind: input, shape index: {}]
  %s13 = inlined_call_operand.hbm [shape: f32[1,32], index: 13, kind: input, shape index: {}]
  %s14 = inlined_call_operand.vmem [shape: f32[32,32], index: 14, kind: input, shape index: {}]
  %s15 = inlined_call_operand.vmem [shape: f32[32,32], index: 15, kind: input, shape index: {}]
  %s16 = inlined_call_operand.hbm [shape: f32[1,32], index: 16, kind: input, shape index: {}]
  %s17 = inlined_call_operand.vmem [shape: f32[32,16], index: 17, kind: input, shape index: {}]
  %s18 = inlined_call_operand.hbm [shape: f32[1,16], index: 18, kind: input, shape index: {}]
  %s19 = inlined_call_operand.vmem [shape: f32[16,8], index: 19, kind: input, shape index: {}]
  %s20 = inlined_call_operand.hbm [shape: f32[1,8], index: 20, kind: input, shape index: {}]
  %s21 = inlined_call_operand.vmem [shape: f32[8,3], index: 21, kind: input, shape index: {}]
  %s22 = inlined_call_operand.hbm [shape: f32[1,3], index: 22, kind: input, shape index: {}]
  %s23 = inlined_call_operand.vmem [shape: f32[8,3], index: 23, kind: output, shape index: {}]
  %s24 = sld [smem:[#allocation0]]
  $region154: #{em_model_forward.1} parent=0
    _
  %s26 = ssub.s32 1, %s24
  %s27 = scalar_select 0, %s26, %s24
  $region1: #{em_model_forward.1} parent=0
    #allocation2 [shape = 'u8[512]{0}', space=smem, size = 0x200, scoped, tag = 'input window, operand 0, single buffered']
    #allocation3 [shape = 's32[1]{0}', space=sflag, size = 0x4, scoped, tag = 'scoped memory for em_model_forward.1']
    #allocation4 [shape = 's32[1]{0}', space=sflag, size = 0x4, scoped, tag = 'scoped memory for em_model_forward.1']
    #allocation5 [shape = 'u8[1310720]{0}', space=vmem, size = 0x140000, scoped, tag = 'input window, operand 2, single buffered']
    #allocation6 [shape = 'u8[4096]{0}', space=vmem, size = 0x1000, scoped, tag = 'input window, operand 3, single buffered']
    #allocation7 [shape = 's32[1]{0}', space=sflag, size = 0x4, scoped, tag = 'scoped memory for em_model_forward.1']
    #allocation8 [shape = 'u8[2048]{0}', space=vmem, size = 0x800, scoped, tag = 'input window, operand 5, single buffered']
    #allocation9 [shape = 'u8[262144]{0}', space=vmem, size = 0x40000, scoped, tag = 'input window, operand 6, single buffered']
    #allocation10 [shape = 's32[1]{0}', space=sflag, size = 0x4, scoped, tag = 'scoped memory for em_model_forward.1']
    #allocation11 [shape = 'u8[1024]{0}', space=vmem, size = 0x400, scoped, tag = 'input window, operand 7, single buffered']
    #allocation12 [shape = 'u8[512]{0}', space=vmem, size = 0x400, scoped, tag = 'input window, operand 9, single buffered']
    #allocation13 [shape = 's32[1]{0}', space=sflag, size = 0x4, scoped, tag = 'scoped memory for em_model_forward.1']
    #allocation14 [shape = 'u8[512]{0}', space=vmem, size = 0x400, scoped, tag = 'input window, operand 11, single buffered']
    #allocation15 [shape = 'u8[512]{0}', space=vmem, size = 0x400, scoped, tag = 'input window, operand 13, single buffered']
    #allocation16 [shape = 's32[1]{0}', space=sflag, size = 0x4, scoped, tag = 'scoped memory for em_model_forward.1']
    #allocation17 [shape = 'u8[512]{0}', space=vmem, size = 0x400, scoped, tag = 'input window, operand 16, single buffered']
    #allocation18 [shape = 'u8[512]{0}', space=vmem, size = 0x400, scoped, tag = 'input window, operand 18, single buffered']
    #allocation19 [shape = 's32[1]{0}', space=sflag, size = 0x4, scoped, tag = 'scoped memory for em_model_forward.1']
    #allocation20 [shape = 'u8[512]{0}', space=vmem, size = 0x400, scoped, tag = 'input window, operand 20, single buffered']
    #allocation21 [shape = 'u8[512]{0}', space=vmem, size = 0x400, scoped, tag = 'input window, operand 22, single buffered']
    #allocation22 [shape = 's32[1]{0}', space=sflag, size = 0x4, scoped, tag = 'scoped memory for em_model_forward.1']
    %28 = vsyncpa [#allocation4], 0
    %29 = vsyncpa [#allocation3], 0
    %30 = vsyncpa [#allocation7], 0
    %31 = vsyncpa [#allocation10], 0
    %32 = vsyncpa [#allocation13], 0
    %33 = vsyncpa [#allocation16], 0
    %34 = vsyncpa [#allocation19], 0
    %35 = vsyncpa [#allocation22], 0
    // Predicated region
    $region2: #{em_model_forward.1} parent=1 // pred_check
      _
    $region3: #{em_model_forward.1} parent=1 // pred_check_branch
      %37 = sbr.rel (0) target = $region5
    $region4: #{em_model_forward.1} parent=1 // pred_region
      %s39 = ssub.s32 16, 16
      %40 = vsyncadd [#allocation4], %s39
      %s42 = sshll.u32 %s0, 4
      %s43 = int_to_ptr.vmem [resolvable:$true] %s42
      %45 = dma.vmem_to_smem %s43, 16, [#allocation2], [#allocation4]
    $region5: #{em_model_forward.1} parent=1 // pred_fallthru
      _
    // Predicated region
    $region6: #{em_model_forward.1} parent=1 // pred_check
      _
    $region7: #{em_model_forward.1} parent=1 // pred_check_branch
      %47 = sbr.rel (0) target = $region9
    $region8: #{em_model_forward.1} parent=1 // pred_region
      _
    $region9: #{em_model_forward.1} parent=1 // pred_fallthru
      _
    // Predicated region
    $region10: #{em_model_forward.1} parent=1 // pred_check
      _
    $region11: #{em_model_forward.1} parent=1 // pred_check_branch
      %49 = sbr.rel (0) target = $region13
    $region12: #{em_model_forward.1} parent=1 // pred_region
      %s51 = ssub.s32 40960, 40960
      %52 = vsyncadd [#allocation3], %s51
      %s53 = sshll.u32 [#allocation5], 4
      %s54 = int_to_ptr.vmem [resolvable:$true] %s53
      %59 = dma.hbm_to_vmem [thread:$0]  %s2, 40960, %s54, [#allocation3], 512, 512, 32
    $region13: #{em_model_forward.1} parent=1 // pred_fallthru
      _
    // Predicated region
    $region14: #{em_model_forward.1} parent=1 // pred_check
      _
    $region15: #{em_model_forward.1} parent=1 // pred_check_branch
      %61 = sbr.rel (0) target = $region17
    $region16: #{em_model_forward.1} parent=1 // pred_region
      %s63 = ssub.s32 128, 128
      %64 = vsyncadd [#allocation7], %s63
      %s66 = sshll.u32 [#allocation6], 4
      %s67 = int_to_ptr.vmem [resolvable:$true] %s66
      %69 = dma.hbm_to_vmem [thread:$0]  %s3, 128, %s67, [#allocation7]
    $region17: #{em_model_forward.1} parent=1 // pred_fallthru
      _
    // Predicated region
    $region18: #{em_model_forward.1} parent=1 // pred_check
      _
    $region19: #{em_model_forward.1} parent=1 // pred_check_branch
      %71 = sbr.rel (0) target = $region21
    $region20: #{em_model_forward.1} parent=1 // pred_region
      _
    $region21: #{em_model_forward.1} parent=1 // pred_fallthru
      _
    // Predicated region
    $region22: #{em_model_forward.1} parent=1 // pred_check
      _
    $region23: #{em_model_forward.1} parent=1 // pred_check_branch
      %73 = sbr.rel (0) target = $region25
    $region24: #{em_model_forward.1} parent=1 // pred_region
      %s75 = ssub.s32 64, 64
      %76 = vsyncadd [#allocation7], %s75
      %s78 = sshll.u32 [#allocation8], 4
      %s79 = int_to_ptr.vmem [resolvable:$true] %s78
      %81 = dma.hbm_to_vmem [thread:$0]  %s5, 64, %s79, [#allocation7]
    $region25: #{em_model_forward.1} parent=1 // pred_fallthru
      _
    // Predicated region
    $region26: #{em_model_forward.1} parent=1 // pred_check
      _
    $region27: #{em_model_forward.1} parent=1 // pred_check_branch
      %83 = sbr.rel (0) target = $region29
    $region28: #{em_model_forward.1} parent=1 // pred_region
      %s85 = ssub.s32 8192, 8192
      %86 = vsyncadd [#allocation10], %s85
      %s87 = sshll.u32 [#allocation9], 4
      %s88 = int_to_ptr.vmem [resolvable:$true] %s87
      %93 = dma.hbm_to_vmem [thread:$0]  %s6, 8192, %s88, [#allocation10], 128, 128, 8
    $region29: #{em_model_forward.1} parent=1 // pred_fallthru
      _
    // Predicated region
    $region30: #{em_model_forward.1} parent=1 // pred_check
      _
    $region31: #{em_model_forward.1} parent=1 // pred_check_branch
      %95 = sbr.rel (0) target = $region33
    $region32: #{em_model_forward.1} parent=1 // pred_region
      %s97 = ssub.s32 32, 32
      %98 = vsyncadd [#allocation10], %s97
      %s100 = sshll.u32 [#allocation11], 4
      %s101 = int_to_ptr.vmem [resolvable:$true] %s100
      %103 = dma.hbm_to_vmem [thread:$0]  %s7, 32, %s101, [#allocation10]
    $region33: #{em_model_forward.1} parent=1 // pred_fallthru
      _
    // Predicated region
    $region34: #{em_model_forward.1} parent=1 // pred_check
      _
    $region35: #{em_model_forward.1} parent=1 // pred_check_branch
      %105 = sbr.rel (0) target = $region37
    $region36: #{em_model_forward.1} parent=1 // pred_region
      _
    $region37: #{em_model_forward.1} parent=1 // pred_fallthru
      _
    // Predicated region
    $region38: #{em_model_forward.1} parent=1 // pred_check
      _
    $region39: #{em_model_forward.1} parent=1 // pred_check_branch
      %107 = sbr.rel (0) target = $region41
    $region40: #{em_model_forward.1} parent=1 // pred_region
      %s109 = ssub.s32 16, 16
      %110 = vsyncadd [#allocation13], %s109
      %s112 = sshll.u32 [#allocation12], 4
      %s113 = int_to_ptr.vmem [resolvable:$true] %s112
      %115 = dma.hbm_to_vmem [thread:$0]  %s9, 16, %s113, [#allocation13]
    $region41: #{em_model_forward.1} parent=1 // pred_fallthru
      _
    // Predicated region
    $region42: #{em_model_forward.1} parent=1 // pred_check
      _
    $region43: #{em_model_forward.1} parent=1 // pred_check_branch
      %117 = sbr.rel (0) target = $region45
    $region44: #{em_model_forward.1} parent=1 // pred_region
      _
    $region45: #{em_model_forward.1} parent=1 // pred_fallthru
      _
    // Predicated region
    $region46: #{em_model_forward.1} parent=1 // pred_check
      _
    $region47: #{em_model_forward.1} parent=1 // pred_check_branch
      %119 = sbr.rel (0) target = $region49
    $region48: #{em_model_forward.1} parent=1 // pred_region
      %s121 = ssub.s32 16, 16
      %122 = vsyncadd [#allocation13], %s121
      %s124 = sshll.u32 [#allocation14], 4
      %s125 = int_to_ptr.vmem [resolvable:$true] %s124
      %127 = dma.hbm_to_vmem [thread:$0]  %s11, 16, %s125, [#allocation13]
    $region49: #{em_model_forward.1} parent=1 // pred_fallthru
      _
    // Predicated region
    $region50: #{em_model_forward.1} parent=1 // pred_check
      _
    $region51: #{em_model_forward.1} parent=1 // pred_check_branch
      %129 = sbr.rel (0) target = $region53
    $region52: #{em_model_forward.1} parent=1 // pred_region
      _
    $region53: #{em_model_forward.1} parent=1 // pred_fallthru
      _
    // Predicated region
    $region54: #{em_model_forward.1} parent=1 // pred_check
      _
    $region55: #{em_model_forward.1} parent=1 // pred_check_branch
      %131 = sbr.rel (0) target = $region57
    $region56: #{em_model_forward.1} parent=1 // pred_region
      %s133 = ssub.s32 16, 16
      %134 = vsyncadd [#allocation16], %s133
      %s136 = sshll.u32 [#allocation15], 4
      %s137 = int_to_ptr.vmem [resolvable:$true] %s136
      %139 = dma.hbm_to_vmem [thread:$0]  %s13, 16, %s137, [#allocation16]
    $region57: #{em_model_forward.1} parent=1 // pred_fallthru
      _
    // Predicated region
    $region58: #{em_model_forward.1} parent=1 // pred_check
      _
    $region59: #{em_model_forward.1} parent=1 // pred_check_branch
      %141 = sbr.rel (0) target = $region61
    $region60: #{em_model_forward.1} parent=1 // pred_region
      _
    $region61: #{em_model_forward.1} parent=1 // pred_fallthru
      _
    // Predicated region
    $region62: #{em_model_forward.1} parent=1 // pred_check
      _
    $region63: #{em_model_forward.1} parent=1 // pred_check_branch
      %143 = sbr.rel (0) target = $region65
    $region64: #{em_model_forward.1} parent=1 // pred_region
      _
    $region65: #{em_model_forward.1} parent=1 // pred_fallthru
      _
    // Predicated region
    $region66: #{em_model_forward.1} parent=1 // pred_check
      _
    $region67: #{em_model_forward.1} parent=1 // pred_check_branch
      %145 = sbr.rel (0) target = $region69
    $region68: #{em_model_forward.1} parent=1 // pred_region
      %s147 = ssub.s32 16, 16
      %148 = vsyncadd [#allocation16], %s147
      %s150 = sshll.u32 [#allocation17], 4
      %s151 = int_to_ptr.vmem [resolvable:$true] %s150
      %153 = dma.hbm_to_vmem [thread:$0]  %s16, 16, %s151, [#allocation16]
    $region69: #{em_model_forward.1} parent=1 // pred_fallthru
      _
    // Predicated region
    $region70: #{em_model_forward.1} parent=1 // pred_check
      _
    $region71: #{em_model_forward.1} parent=1 // pred_check_branch
      %155 = sbr.rel (0) target = $region73
    $region72: #{em_model_forward.1} parent=1 // pred_region
      _
    $region73: #{em_model_forward.1} parent=1 // pred_fallthru
      _
    // Predicated region
    $region74: #{em_model_forward.1} parent=1 // pred_check
      _
    $region75: #{em_model_forward.1} parent=1 // pred_check_branch
      %157 = sbr.rel (0) target = $region77
    $region76: #{em_model_forward.1} parent=1 // pred_region
      %s159 = ssub.s32 16, 16
      %160 = vsyncadd [#allocation19], %s159
      %s162 = sshll.u32 [#allocation18], 4
      %s163 = int_to_ptr.vmem [resolvable:$true] %s162
      %165 = dma.hbm_to_vmem [thread:$0]  %s18, 16, %s163, [#allocation19]
    $region77: #{em_model_forward.1} parent=1 // pred_fallthru
      _
    // Predicated region
    $region78: #{em_model_forward.1} parent=1 // pred_check
      _
    $region79: #{em_model_forward.1} parent=1 // pred_check_branch
      %167 = sbr.rel (0) target = $region81
    $region80: #{em_model_forward.1} parent=1 // pred_region
      _
    $region81: #{em_model_forward.1} parent=1 // pred_fallthru
      _
    // Predicated region
    $region82: #{em_model_forward.1} parent=1 // pred_check
      _
    $region83: #{em_model_forward.1} parent=1 // pred_check_branch
      %169 = sbr.rel (0) target = $region85
    $region84: #{em_model_forward.1} parent=1 // pred_region
      %s171 = ssub.s32 16, 16
      %172 = vsyncadd [#allocation19], %s171
      %s174 = sshll.u32 [#allocation20], 4
      %s175 = int_to_ptr.vmem [resolvable:$true] %s174
      %177 = dma.hbm_to_vmem [thread:$0]  %s20, 16, %s175, [#allocation19]
    $region85: #{em_model_forward.1} parent=1 // pred_fallthru
      _
    // Predicated region
    $region86: #{em_model_forward.1} parent=1 // pred_check
      _
    $region87: #{em_model_forward.1} parent=1 // pred_check_branch
      %179 = sbr.rel (0) target = $region89
    $region88: #{em_model_forward.1} parent=1 // pred_region
      _
    $region89: #{em_model_forward.1} parent=1 // pred_fallthru
      _
    // Predicated region
    $region90: #{em_model_forward.1} parent=1 // pred_check
      _
    $region91: #{em_model_forward.1} parent=1 // pred_check_branch
      %181 = sbr.rel (0) target = $region93
    $region92: #{em_model_forward.1} parent=1 // pred_region
      %s183 = ssub.s32 16, 16
      %184 = vsyncadd [#allocation22], %s183
      %s186 = sshll.u32 [#allocation21], 4
      %s187 = int_to_ptr.vmem [resolvable:$true] %s186
      %189 = dma.hbm_to_vmem [thread:$0]  %s22, 16, %s187, [#allocation22]
    $region93: #{em_model_forward.1} parent=1 // pred_fallthru
      _
    // Predicated region
    $region94: #{em_model_forward.1} parent=1 // pred_check
      _
    $region95: #{em_model_forward.1} parent=1 // pred_check_branch
      %191 = sbr.rel (0) target = $region97
    $region96: #{em_model_forward.1} parent=1 // pred_region
      %192 = dma.done [#allocation4], 16
    $region97: #{em_model_forward.1} parent=1 // pred_fallthru
      _
    // Predicated region
    $region98: #{em_model_forward.1} parent=1 // pred_check
      _
    $region99: #{em_model_forward.1} parent=1 // pred_check_branch
      %194 = sbr.rel (0) target = $region101
    $region100: #{em_model_forward.1} parent=1 // pred_region
      %195 = dma.done [#allocation3], 40960
    $region101: #{em_model_forward.1} parent=1 // pred_fallthru
      _
    // Predicated region
    $region102: #{em_model_forward.1} parent=1 // pred_check
      _
    $region103: #{em_model_forward.1} parent=1 // pred_check_branch
      %197 = sbr.rel (0) target = $region105
    $region104: #{em_model_forward.1} parent=1 // pred_region
      %198 = dma.done [#allocation7], 128
    $region105: #{em_model_forward.1} parent=1 // pred_fallthru
      _
    // Predicated region
    $region106: #{em_model_forward.1} parent=1 // pred_check
      _
    $region107: #{em_model_forward.1} parent=1 // pred_check_branch
      %200 = sbr.rel (0) target = $region109
    $region108: #{em_model_forward.1} parent=1 // pred_region
      %201 = dma.done [#allocation7], 64
    $region109: #{em_model_forward.1} parent=1 // pred_fallthru
      _
    // Predicated region
    $region110: #{em_model_forward.1} parent=1 // pred_check
      _
    $region111: #{em_model_forward.1} parent=1 // pred_check_branch
      %203 = sbr.rel (0) target = $region113
    $region112: #{em_model_forward.1} parent=1 // pred_region
      %204 = dma.done [#allocation10], 8192
    $region113: #{em_model_forward.1} parent=1 // pred_fallthru
      _
    // Predicated region
    $region114: #{em_model_forward.1} parent=1 // pred_check
      _
    $region115: #{em_model_forward.1} parent=1 // pred_check_branch
      %206 = sbr.rel (0) target = $region117
    $region116: #{em_model_forward.1} parent=1 // pred_region
      %207 = dma.done [#allocation10], 32
    $region117: #{em_model_forward.1} parent=1 // pred_fallthru
      _
    // Predicated region
    $region118: #{em_model_forward.1} parent=1 // pred_check
      _
    $region119: #{em_model_forward.1} parent=1 // pred_check_branch
      %209 = sbr.rel (0) target = $region121
    $region120: #{em_model_forward.1} parent=1 // pred_region
      %210 = dma.done [#allocation13], 16
    $region121: #{em_model_forward.1} parent=1 // pred_fallthru
      _
    // Predicated region
    $region122: #{em_model_forward.1} parent=1 // pred_check
      _
    $region123: #{em_model_forward.1} parent=1 // pred_check_branch
      %212 = sbr.rel (0) target = $region125
    $region124: #{em_model_forward.1} parent=1 // pred_region
      %213 = dma.done [#allocation13], 16
    $region125: #{em_model_forward.1} parent=1 // pred_fallthru
      _
    // Predicated region
    $region126: #{em_model_forward.1} parent=1 // pred_check
      _
    $region127: #{em_model_forward.1} parent=1 // pred_check_branch
      %215 = sbr.rel (0) target = $region129
    $region128: #{em_model_forward.1} parent=1 // pred_region
      %216 = dma.done [#allocation16], 16
    $region129: #{em_model_forward.1} parent=1 // pred_fallthru
      _
    // Predicated region
    $region130: #{em_model_forward.1} parent=1 // pred_check
      _
    $region131: #{em_model_forward.1} parent=1 // pred_check_branch
      %218 = sbr.rel (0) target = $region133
    $region132: #{em_model_forward.1} parent=1 // pred_region
      %219 = dma.done [#allocation16], 16
    $region133: #{em_model_forward.1} parent=1 // pred_fallthru
      _
    // Predicated region
    $region134: #{em_model_forward.1} parent=1 // pred_check
      _
    $region135: #{em_model_forward.1} parent=1 // pred_check_branch
      %221 = sbr.rel (0) target = $region137
    $region136: #{em_model_forward.1} parent=1 // pred_region
      %222 = dma.done [#allocation19], 16
    $region137: #{em_model_forward.1} parent=1 // pred_fallthru
      _
    // Predicated region
    $region138: #{em_model_forward.1} parent=1 // pred_check
      _
    $region139: #{em_model_forward.1} parent=1 // pred_check_branch
      %224 = sbr.rel (0) target = $region141
    $region140: #{em_model_forward.1} parent=1 // pred_region
      %225 = dma.done [#allocation19], 16
    $region141: #{em_model_forward.1} parent=1 // pred_fallthru
      _
    // Predicated region
    $region142: #{em_model_forward.1} parent=1 // pred_check
      _
    $region143: #{em_model_forward.1} parent=1 // pred_check_branch
      %227 = sbr.rel (0) target = $region145
    $region144: #{em_model_forward.1} parent=1 // pred_region
      %228 = dma.done [#allocation22], 16
    $region145: #{em_model_forward.1} parent=1 // pred_fallthru
      _
    %229 = sfence
    %v231 = vld [vmem:[%s1] sm:$0xff]
    %v232 = vld [vmem:[%s1 + $0x8] sm:$0xff]
    %v233 = vld [vmem:[%s1 + $0x10] sm:$0xff]
    %v234 = vld [vmem:[%s1 + $0x18] sm:$0xff]
    %v235 = vld [vmem:[%s1 + $0x20] sm:$0xff]
    %v236 = vld [vmem:[%s1 + $0x28] sm:$0xff]
    %v237 = vld [vmem:[%s1 + $0x30] sm:$0xff]
    %v238 = vld [vmem:[%s1 + $0x38] sm:$0xff]
    %v239 = vld [vmem:[%s1 + $0x40] sm:$0xff]
    %v240 = vld [vmem:[%s1 + $0x48] sm:$0xff]
    %v241 = vld [vmem:[#allocation5] sm:$0xff]
    %v242 = vld [vmem:[#allocation5 + $0x8] sm:$0xff]
    %v243 = vld [vmem:[#allocation5 + $0x10] sm:$0xff]
    %v244 = vld [vmem:[#allocation5 + $0x18] sm:$0xff]
    %v245 = vld [vmem:[#allocation5 + $0x20] sm:$0xff]
    %v246 = vld [vmem:[#allocation5 + $0x28] sm:$0xff]
    %v247 = vld [vmem:[#allocation5 + $0x30] sm:$0xff]
    %v248 = vld [vmem:[#allocation5 + $0x38] sm:$0xff]
    %v249 = vld [vmem:[#allocation5 + $0x40] sm:$0xff]
    %v250 = vld [vmem:[#allocation5 + $0x48] sm:$0xff]
    %v251 = vld [vmem:[#allocation5 + $0x50] sm:$0xff]
    %v252 = vld [vmem:[#allocation5 + $0x58] sm:$0xff]
    %v253 = vld [vmem:[#allocation5 + $0x60] sm:$0xff]
    %v254 = vld [vmem:[#allocation5 + $0x68] sm:$0xff]
    %v255 = vld [vmem:[#allocation5 + $0x70] sm:$0xff]
    %v256 = vld [vmem:[#allocation5 + $0x78] sm:$0xff]
    %v257 = vld [vmem:[#allocation5 + $0x80] sm:$0xff]
    %v258 = vld [vmem:[#allocation5 + $0x88] sm:$0xff]
    %v259 = vld [vmem:[#allocation5 + $0x90] sm:$0xff]
    %v260 = vld [vmem:[#allocation5 + $0x98] sm:$0xff]
    %v261 = vld [vmem:[#allocation5 + $0xa0] sm:$0xff]
    %v262 = vld [vmem:[#allocation5 + $0xa8] sm:$0xff]
    %v263 = vld [vmem:[#allocation5 + $0xb0] sm:$0xff]
    %v264 = vld [vmem:[#allocation5 + $0xb8] sm:$0xff]
    %v265 = vld [vmem:[#allocation5 + $0xc0] sm:$0xff]
    %v266 = vld [vmem:[#allocation5 + $0xc8] sm:$0xff]
    %v267 = vld [vmem:[#allocation5 + $0xd0] sm:$0xff]
    %v268 = vld [vmem:[#allocation5 + $0xd8] sm:$0xff]
    %v269 = vld [vmem:[#allocation5 + $0xe0] sm:$0xff]
    %v270 = vld [vmem:[#allocation5 + $0xe8] sm:$0xff]
    %v271 = vld [vmem:[#allocation5 + $0xf0] sm:$0xff]
    %v272 = vld [vmem:[#allocation5 + $0xf8] sm:$0xff]
    %v273 = vld [vmem:[#allocation5 + $0x100] sm:$0xff]
    %v274 = vld [vmem:[#allocation5 + $0x108] sm:$0xff]
    %v275 = vld [vmem:[#allocation5 + $0x110] sm:$0xff]
    %v276 = vld [vmem:[#allocation5 + $0x118] sm:$0xff]
    %v277 = vld [vmem:[#allocation5 + $0x120] sm:$0xff]
    %v278 = vld [vmem:[#allocation5 + $0x128] sm:$0xff]
    %v279 = vld [vmem:[#allocation5 + $0x130] sm:$0xff]
    %v280 = vld [vmem:[#allocation5 + $0x138] sm:$0xff]
    %v281 = vld [vmem:[#allocation5 + $0x140] sm:$0xff]
    %v282 = vld [vmem:[#allocation5 + $0x148] sm:$0xff]
    %v283 = vld [vmem:[#allocation5 + $0x150] sm:$0xff]
    %v284 = vld [vmem:[#allocation5 + $0x158] sm:$0xff]
    %v285 = vld [vmem:[#allocation5 + $0x160] sm:$0xff]
    %v286 = vld [vmem:[#allocation5 + $0x168] sm:$0xff]
    %v287 = vld [vmem:[#allocation5 + $0x170] sm:$0xff]
    %v288 = vld [vmem:[#allocation5 + $0x178] sm:$0xff]
    %v289 = vld [vmem:[#allocation5 + $0x180] sm:$0xff]
    %v290 = vld [vmem:[#allocation5 + $0x188] sm:$0xff]
    %v291 = vld [vmem:[#allocation5 + $0x190] sm:$0xff]
    %v292 = vld [vmem:[#allocation5 + $0x198] sm:$0xff]
    %v293 = vld [vmem:[#allocation5 + $0x1a0] sm:$0xff]
    %v294 = vld [vmem:[#allocation5 + $0x1a8] sm:$0xff]
    %v295 = vld [vmem:[#allocation5 + $0x1b0] sm:$0xff]
    %v296 = vld [vmem:[#allocation5 + $0x1b8] sm:$0xff]
    %v297 = vld [vmem:[#allocation5 + $0x1c0] sm:$0xff]
    %v298 = vld [vmem:[#allocation5 + $0x1c8] sm:$0xff]
    %v299 = vld [vmem:[#allocation5 + $0x1d0] sm:$0xff]
    %v300 = vld [vmem:[#allocation5 + $0x1d8] sm:$0xff]
    %v301 = vld [vmem:[#allocation5 + $0x1e0] sm:$0xff]
    %v302 = vld [vmem:[#allocation5 + $0x1e8] sm:$0xff]
    %v303 = vld [vmem:[#allocation5 + $0x1f0] sm:$0xff]
    %v304 = vld [vmem:[#allocation5 + $0x1f8] sm:$0xff]
    %v305 = vld [vmem:[#allocation5 + $0x200] sm:$0xff]
    %v306 = vld [vmem:[#allocation5 + $0x208] sm:$0xff]
    %v307 = vld [vmem:[#allocation5 + $0x210] sm:$0xff]
    %v308 = vld [vmem:[#allocation5 + $0x218] sm:$0xff]
    %v309 = vld [vmem:[#allocation5 + $0x220] sm:$0xff]
    %v310 = vld [vmem:[#allocation5 + $0x228] sm:$0xff]
    %v311 = vld [vmem:[#allocation5 + $0x230] sm:$0xff]
    %v312 = vld [vmem:[#allocation5 + $0x238] sm:$0xff]
    %v313 = vld [vmem:[#allocation5 + $0x240] sm:$0xff]
    %v314 = vld [vmem:[#allocation5 + $0x248] sm:$0xff]
    %v315 = vld [vmem:[#allocation5 + $0x250] sm:$0xff]
    %v316 = vld [vmem:[#allocation5 + $0x258] sm:$0xff]
    %v317 = vld [vmem:[#allocation5 + $0x260] sm:$0xff]
    %v318 = vld [vmem:[#allocation5 + $0x268] sm:$0xff]
    %v319 = vld [vmem:[#allocation5 + $0x270] sm:$0xff]
    %v320 = vld [vmem:[#allocation5 + $0x278] sm:$0xff]
    %v321 = vld [vmem:[#allocation5 + $0x280] sm:$0xff]
    %v322 = vld [vmem:[#allocation5 + $0x288] sm:$0xff]
    %v323 = vld [vmem:[#allocation5 + $0x290] sm:$0xff]
    %v324 = vld [vmem:[#allocation5 + $0x298] sm:$0xff]
    %v325 = vld [vmem:[#allocation5 + $0x2a0] sm:$0xff]
    %v326 = vld [vmem:[#allocation5 + $0x2a8] sm:$0xff]
    %v327 = vld [vmem:[#allocation5 + $0x2b0] sm:$0xff]
    %v328 = vld [vmem:[#allocation5 + $0x2b8] sm:$0xff]
    %v329 = vld [vmem:[#allocation5 + $0x2c0] sm:$0xff]
    %v330 = vld [vmem:[#allocation5 + $0x2c8] sm:$0xff]
    %v331 = vld [vmem:[#allocation5 + $0x2d0] sm:$0xff]
    %v332 = vld [vmem:[#allocation5 + $0x2d8] sm:$0xff]
    %v333 = vld [vmem:[#allocation5 + $0x2e0] sm:$0xff]
    %v334 = vld [vmem:[#allocation5 + $0x2e8] sm:$0xff]
    %v335 = vld [vmem:[#allocation5 + $0x2f0] sm:$0xff]
    %v336 = vld [vmem:[#allocation5 + $0x2f8] sm:$0xff]
    %v337 = vld [vmem:[#allocation5 + $0x300] sm:$0xff]
    %v338 = vld [vmem:[#allocation5 + $0x308] sm:$0xff]
    %v339 = vld [vmem:[#allocation5 + $0x310] sm:$0xff]
    %v340 = vld [vmem:[#allocation5 + $0x318] sm:$0xff]
    %v341 = vld [vmem:[#allocation5 + $0x320] sm:$0xff]
    %v342 = vld [vmem:[#allocation5 + $0x328] sm:$0xff]
    %v343 = vld [vmem:[#allocation5 + $0x330] sm:$0xff]
    %v344 = vld [vmem:[#allocation5 + $0x338] sm:$0xff]
    %v345 = vld [vmem:[#allocation5 + $0x340] sm:$0xff]
    %v346 = vld [vmem:[#allocation5 + $0x348] sm:$0xff]
    %v347 = vld [vmem:[#allocation5 + $0x350] sm:$0xff]
    %v348 = vld [vmem:[#allocation5 + $0x358] sm:$0xff]
    %v349 = vld [vmem:[#allocation5 + $0x360] sm:$0xff]
    %v350 = vld [vmem:[#allocation5 + $0x368] sm:$0xff]
    %v351 = vld [vmem:[#allocation5 + $0x370] sm:$0xff]
    %v352 = vld [vmem:[#allocation5 + $0x378] sm:$0xff]
    %v353 = vld [vmem:[#allocation5 + $0x380] sm:$0xff]
    %v354 = vld [vmem:[#allocation5 + $0x388] sm:$0xff]
    %v355 = vld [vmem:[#allocation5 + $0x390] sm:$0xff]
    %v356 = vld [vmem:[#allocation5 + $0x398] sm:$0xff]
    %v357 = vld [vmem:[#allocation5 + $0x3a0] sm:$0xff]
    %v358 = vld [vmem:[#allocation5 + $0x3a8] sm:$0xff]
    %v359 = vld [vmem:[#allocation5 + $0x3b0] sm:$0xff]
    %v360 = vld [vmem:[#allocation5 + $0x3b8] sm:$0xff]
    %v361 = vld [vmem:[#allocation5 + $0x3c0] sm:$0xff]
    %v362 = vld [vmem:[#allocation5 + $0x3c8] sm:$0xff]
    %v363 = vld [vmem:[#allocation5 + $0x3d0] sm:$0xff]
    %v364 = vld [vmem:[#allocation5 + $0x3d8] sm:$0xff]
    %v365 = vld [vmem:[#allocation5 + $0x3e0] sm:$0xff]
    %v366 = vld [vmem:[#allocation5 + $0x3e8] sm:$0xff]
    %v367 = vld [vmem:[#allocation5 + $0x3f0] sm:$0xff]
    %v368 = vld [vmem:[#allocation5 + $0x3f8] sm:$0xff]
    %v369 = vld [vmem:[#allocation5 + $0x400] sm:$0xff]
    %v370 = vld [vmem:[#allocation5 + $0x408] sm:$0xff]
    %v371 = vld [vmem:[#allocation5 + $0x410] sm:$0xff]
    %v372 = vld [vmem:[#allocation5 + $0x418] sm:$0xff]
    %v373 = vld [vmem:[#allocation5 + $0x420] sm:$0xff]
    %v374 = vld [vmem:[#allocation5 + $0x428] sm:$0xff]
    %v375 = vld [vmem:[#allocation5 + $0x430] sm:$0xff]
    %v376 = vld [vmem:[#allocation5 + $0x438] sm:$0xff]
    %v377 = vld [vmem:[#allocation5 + $0x440] sm:$0xff]
    %v378 = vld [vmem:[#allocation5 + $0x448] sm:$0xff]
    %v379 = vld [vmem:[#allocation5 + $0x450] sm:$0xff]
    %v380 = vld [vmem:[#allocation5 + $0x458] sm:$0xff]
    %v381 = vld [vmem:[#allocation5 + $0x460] sm:$0xff]
    %v382 = vld [vmem:[#allocation5 + $0x468] sm:$0xff]
    %v383 = vld [vmem:[#allocation5 + $0x470] sm:$0xff]
    %v384 = vld [vmem:[#allocation5 + $0x478] sm:$0xff]
    %v385 = vld [vmem:[#allocation5 + $0x480] sm:$0xff]
    %v386 = vld [vmem:[#allocation5 + $0x488] sm:$0xff]
    %v387 = vld [vmem:[#allocation5 + $0x490] sm:$0xff]
    %v388 = vld [vmem:[#allocation5 + $0x498] sm:$0xff]
    %v389 = vld [vmem:[#allocation5 + $0x4a0] sm:$0xff]
    %v390 = vld [vmem:[#allocation5 + $0x4a8] sm:$0xff]
    %v391 = vld [vmem:[#allocation5 + $0x4b0] sm:$0xff]
    %v392 = vld [vmem:[#allocation5 + $0x4b8] sm:$0xff]
    %v393 = vld [vmem:[#allocation5 + $0x4c0] sm:$0xff]
    %v394 = vld [vmem:[#allocation5 + $0x4c8] sm:$0xff]
    %v395 = vld [vmem:[#allocation5 + $0x4d0] sm:$0xff]
    %v396 = vld [vmem:[#allocation5 + $0x4d8] sm:$0xff]
    %v397 = vld [vmem:[#allocation5 + $0x4e0] sm:$0xff]
    %v398 = vld [vmem:[#allocation5 + $0x4e8] sm:$0xff]
    %v399 = vld [vmem:[#allocation5 + $0x4f0] sm:$0xff]
    %v400 = vld [vmem:[#allocation5 + $0x4f8] sm:$0xff]
    %v401 = vld [vmem:[#allocation5 + $0x500] sm:$0xff]
    %v402 = vld [vmem:[#allocation5 + $0x508] sm:$0xff]
    %v403 = vld [vmem:[#allocation5 + $0x510] sm:$0xff]
    %v404 = vld [vmem:[#allocation5 + $0x518] sm:$0xff]
    %v405 = vld [vmem:[#allocation5 + $0x520] sm:$0xff]
    %v406 = vld [vmem:[#allocation5 + $0x528] sm:$0xff]
    %v407 = vld [vmem:[#allocation5 + $0x530] sm:$0xff]
    %v408 = vld [vmem:[#allocation5 + $0x538] sm:$0xff]
    %v409 = vld [vmem:[#allocation5 + $0x540] sm:$0xff]
    %v410 = vld [vmem:[#allocation5 + $0x548] sm:$0xff]
    %v411 = vld [vmem:[#allocation5 + $0x550] sm:$0xff]
    %v412 = vld [vmem:[#allocation5 + $0x558] sm:$0xff]
    %v413 = vld [vmem:[#allocation5 + $0x560] sm:$0xff]
    %v414 = vld [vmem:[#allocation5 + $0x568] sm:$0xff]
    %v415 = vld [vmem:[#allocation5 + $0x570] sm:$0xff]
    %v416 = vld [vmem:[#allocation5 + $0x578] sm:$0xff]
    %v417 = vld [vmem:[#allocation5 + $0x580] sm:$0xff]
    %v418 = vld [vmem:[#allocation5 + $0x588] sm:$0xff]
    %v419 = vld [vmem:[#allocation5 + $0x590] sm:$0xff]
    %v420 = vld [vmem:[#allocation5 + $0x598] sm:$0xff]
    %v421 = vld [vmem:[#allocation5 + $0x5a0] sm:$0xff]
    %v422 = vld [vmem:[#allocation5 + $0x5a8] sm:$0xff]
    %v423 = vld [vmem:[#allocation5 + $0x5b0] sm:$0xff]
    %v424 = vld [vmem:[#allocation5 + $0x5b8] sm:$0xff]
    %v425 = vld [vmem:[#allocation5 + $0x5c0] sm:$0xff]
    %v426 = vld [vmem:[#allocation5 + $0x5c8] sm:$0xff]
    %v427 = vld [vmem:[#allocation5 + $0x5d0] sm:$0xff]
    %v428 = vld [vmem:[#allocation5 + $0x5d8] sm:$0xff]
    %v429 = vld [vmem:[#allocation5 + $0x5e0] sm:$0xff]
    %v430 = vld [vmem:[#allocation5 + $0x5e8] sm:$0xff]
    %v431 = vld [vmem:[#allocation5 + $0x5f0] sm:$0xff]
    %v432 = vld [vmem:[#allocation5 + $0x5f8] sm:$0xff]
    %v433 = vld [vmem:[#allocation5 + $0x600] sm:$0xff]
    %v434 = vld [vmem:[#allocation5 + $0x608] sm:$0xff]
    %v435 = vld [vmem:[#allocation5 + $0x610] sm:$0xff]
    %v436 = vld [vmem:[#allocation5 + $0x618] sm:$0xff]
    %v437 = vld [vmem:[#allocation5 + $0x620] sm:$0xff]
    %v438 = vld [vmem:[#allocation5 + $0x628] sm:$0xff]
    %v439 = vld [vmem:[#allocation5 + $0x630] sm:$0xff]
    %v440 = vld [vmem:[#allocation5 + $0x638] sm:$0xff]
    %v441 = vld [vmem:[#allocation5 + $0x640] sm:$0xff]
    %v442 = vld [vmem:[#allocation5 + $0x648] sm:$0xff]
    %v443 = vld [vmem:[#allocation5 + $0x650] sm:$0xff]
    %v444 = vld [vmem:[#allocation5 + $0x658] sm:$0xff]
    %v445 = vld [vmem:[#allocation5 + $0x660] sm:$0xff]
    %v446 = vld [vmem:[#allocation5 + $0x668] sm:$0xff]
    %v447 = vld [vmem:[#allocation5 + $0x670] sm:$0xff]
    %v448 = vld [vmem:[#allocation5 + $0x678] sm:$0xff]
    %v449 = vld [vmem:[#allocation5 + $0x680] sm:$0xff]
    %v450 = vld [vmem:[#allocation5 + $0x688] sm:$0xff]
    %v451 = vld [vmem:[#allocation5 + $0x690] sm:$0xff]
    %v452 = vld [vmem:[#allocation5 + $0x698] sm:$0xff]
    %v453 = vld [vmem:[#allocation5 + $0x6a0] sm:$0xff]
    %v454 = vld [vmem:[#allocation5 + $0x6a8] sm:$0xff]
    %v455 = vld [vmem:[#allocation5 + $0x6b0] sm:$0xff]
    %v456 = vld [vmem:[#allocation5 + $0x6b8] sm:$0xff]
    %v457 = vld [vmem:[#allocation5 + $0x6c0] sm:$0xff]
    %v458 = vld [vmem:[#allocation5 + $0x6c8] sm:$0xff]
    %v459 = vld [vmem:[#allocation5 + $0x6d0] sm:$0xff]
    %v460 = vld [vmem:[#allocation5 + $0x6d8] sm:$0xff]
    %v461 = vld [vmem:[#allocation5 + $0x6e0] sm:$0xff]
    %v462 = vld [vmem:[#allocation5 + $0x6e8] sm:$0xff]
    %v463 = vld [vmem:[#allocation5 + $0x6f0] sm:$0xff]
    %v464 = vld [vmem:[#allocation5 + $0x6f8] sm:$0xff]
    %v465 = vld [vmem:[#allocation5 + $0x700] sm:$0xff]
    %v466 = vld [vmem:[#allocation5 + $0x708] sm:$0xff]
    %v467 = vld [vmem:[#allocation5 + $0x710] sm:$0xff]
    %v468 = vld [vmem:[#allocation5 + $0x718] sm:$0xff]
    %v469 = vld [vmem:[#allocation5 + $0x720] sm:$0xff]
    %v470 = vld [vmem:[#allocation5 + $0x728] sm:$0xff]
    %v471 = vld [vmem:[#allocation5 + $0x730] sm:$0xff]
    %v472 = vld [vmem:[#allocation5 + $0x738] sm:$0xff]
    %v473 = vld [vmem:[#allocation5 + $0x740] sm:$0xff]
    %v474 = vld [vmem:[#allocation5 + $0x748] sm:$0xff]
    %v475 = vld [vmem:[#allocation5 + $0x750] sm:$0xff]
    %v476 = vld [vmem:[#allocation5 + $0x758] sm:$0xff]
    %v477 = vld [vmem:[#allocation5 + $0x760] sm:$0xff]
    %v478 = vld [vmem:[#allocation5 + $0x768] sm:$0xff]
    %v479 = vld [vmem:[#allocation5 + $0x770] sm:$0xff]
    %v480 = vld [vmem:[#allocation5 + $0x778] sm:$0xff]
    %v481 = vld [vmem:[#allocation5 + $0x780] sm:$0xff]
    %v482 = vld [vmem:[#allocation5 + $0x788] sm:$0xff]
    %v483 = vld [vmem:[#allocation5 + $0x790] sm:$0xff]
    %v484 = vld [vmem:[#allocation5 + $0x798] sm:$0xff]
    %v485 = vld [vmem:[#allocation5 + $0x7a0] sm:$0xff]
    %v486 = vld [vmem:[#allocation5 + $0x7a8] sm:$0xff]
    %v487 = vld [vmem:[#allocation5 + $0x7b0] sm:$0xff]
    %v488 = vld [vmem:[#allocation5 + $0x7b8] sm:$0xff]
    %v489 = vld [vmem:[#allocation5 + $0x7c0] sm:$0xff]
    %v490 = vld [vmem:[#allocation5 + $0x7c8] sm:$0xff]
    %v491 = vld [vmem:[#allocation5 + $0x7d0] sm:$0xff]
    %v492 = vld [vmem:[#allocation5 + $0x7d8] sm:$0xff]
    %v493 = vld [vmem:[#allocation5 + $0x7e0] sm:$0xff]
    %v494 = vld [vmem:[#allocation5 + $0x7e8] sm:$0xff]
    %v495 = vld [vmem:[#allocation5 + $0x7f0] sm:$0xff]
    %v496 = vld [vmem:[#allocation5 + $0x7f8] sm:$0xff]
    %v497 = vld [vmem:[#allocation5 + $0x800] sm:$0xff]
    %v498 = vld [vmem:[#allocation5 + $0x808] sm:$0xff]
    %v499 = vld [vmem:[#allocation5 + $0x810] sm:$0xff]
    %v500 = vld [vmem:[#allocation5 + $0x818] sm:$0xff]
    %v501 = vld [vmem:[#allocation5 + $0x820] sm:$0xff]
    %v502 = vld [vmem:[#allocation5 + $0x828] sm:$0xff]
    %v503 = vld [vmem:[#allocation5 + $0x830] sm:$0xff]
    %v504 = vld [vmem:[#allocation5 + $0x838] sm:$0xff]
    %v505 = vld [vmem:[#allocation5 + $0x840] sm:$0xff]
    %v506 = vld [vmem:[#allocation5 + $0x848] sm:$0xff]
    %v507 = vld [vmem:[#allocation5 + $0x850] sm:$0xff]
    %v508 = vld [vmem:[#allocation5 + $0x858] sm:$0xff]
    %v509 = vld [vmem:[#allocation5 + $0x860] sm:$0xff]
    %v510 = vld [vmem:[#allocation5 + $0x868] sm:$0xff]
    %v511 = vld [vmem:[#allocation5 + $0x870] sm:$0xff]
    %v512 = vld [vmem:[#allocation5 + $0x878] sm:$0xff]
    %v513 = vld [vmem:[#allocation5 + $0x880] sm:$0xff]
    %v514 = vld [vmem:[#allocation5 + $0x888] sm:$0xff]
    %v515 = vld [vmem:[#allocation5 + $0x890] sm:$0xff]
    %v516 = vld [vmem:[#allocation5 + $0x898] sm:$0xff]
    %v517 = vld [vmem:[#allocation5 + $0x8a0] sm:$0xff]
    %v518 = vld [vmem:[#allocation5 + $0x8a8] sm:$0xff]
    %v519 = vld [vmem:[#allocation5 + $0x8b0] sm:$0xff]
    %v520 = vld [vmem:[#allocation5 + $0x8b8] sm:$0xff]
    %v521 = vld [vmem:[#allocation5 + $0x8c0] sm:$0xff]
    %v522 = vld [vmem:[#allocation5 + $0x8c8] sm:$0xff]
    %v523 = vld [vmem:[#allocation5 + $0x8d0] sm:$0xff]
    %v524 = vld [vmem:[#allocation5 + $0x8d8] sm:$0xff]
    %v525 = vld [vmem:[#allocation5 + $0x8e0] sm:$0xff]
    %v526 = vld [vmem:[#allocation5 + $0x8e8] sm:$0xff]
    %v527 = vld [vmem:[#allocation5 + $0x8f0] sm:$0xff]
    %v528 = vld [vmem:[#allocation5 + $0x8f8] sm:$0xff]
    %v529 = vld [vmem:[#allocation5 + $0x900] sm:$0xff]
    %v530 = vld [vmem:[#allocation5 + $0x908] sm:$0xff]
    %v531 = vld [vmem:[#allocation5 + $0x910] sm:$0xff]
    %v532 = vld [vmem:[#allocation5 + $0x918] sm:$0xff]
    %v533 = vld [vmem:[#allocation5 + $0x920] sm:$0xff]
    %v534 = vld [vmem:[#allocation5 + $0x928] sm:$0xff]
    %v535 = vld [vmem:[#allocation5 + $0x930] sm:$0xff]
    %v536 = vld [vmem:[#allocation5 + $0x938] sm:$0xff]
    %v537 = vld [vmem:[#allocation5 + $0x940] sm:$0xff]
    %v538 = vld [vmem:[#allocation5 + $0x948] sm:$0xff]
    %v539 = vld [vmem:[#allocation5 + $0x950] sm:$0xff]
    %v540 = vld [vmem:[#allocation5 + $0x958] sm:$0xff]
    %v541 = vld [vmem:[#allocation5 + $0x960] sm:$0xff]
    %v542 = vld [vmem:[#allocation5 + $0x968] sm:$0xff]
    %v543 = vld [vmem:[#allocation5 + $0x970] sm:$0xff]
    %v544 = vld [vmem:[#allocation5 + $0x978] sm:$0xff]
    %v545 = vld [vmem:[#allocation5 + $0x980] sm:$0xff]
    %v546 = vld [vmem:[#allocation5 + $0x988] sm:$0xff]
    %v547 = vld [vmem:[#allocation5 + $0x990] sm:$0xff]
    %v548 = vld [vmem:[#allocation5 + $0x998] sm:$0xff]
    %v549 = vld [vmem:[#allocation5 + $0x9a0] sm:$0xff]
    %v550 = vld [vmem:[#allocation5 + $0x9a8] sm:$0xff]
    %v551 = vld [vmem:[#allocation5 + $0x9b0] sm:$0xff]
    %v552 = vld [vmem:[#allocation5 + $0x9b8] sm:$0xff]
    %v553 = vld [vmem:[#allocation5 + $0x9c0] sm:$0xff]
    %v554 = vld [vmem:[#allocation5 + $0x9c8] sm:$0xff]
    %v555 = vld [vmem:[#allocation5 + $0x9d0] sm:$0xff]
    %v556 = vld [vmem:[#allocation5 + $0x9d8] sm:$0xff]
    %v557 = vld [vmem:[#allocation5 + $0x9e0] sm:$0xff]
    %v558 = vld [vmem:[#allocation5 + $0x9e8] sm:$0xff]
    %v559 = vld [vmem:[#allocation5 + $0x9f0] sm:$0xff]
    %v560 = vld [vmem:[#allocation5 + $0x9f8] sm:$0xff]
    %v561 = vld [vmem:[#allocation6] sm:$0xff]
    %v562 = vpack.c.bf16 %v236, %v231
    %v563 = vpack.c.bf16 %v237, %v232
    %v564 = vpack.c.bf16 %v238, %v233
    %v565 = vpack.c.bf16 %v239, %v234
    %v566 = vpack.c.bf16 %v240, %v235
    %v568 = vlaneseq
    %v569 = vshrl.u32 %v568, 7
    %v570 = vsub.s32 0, %v569
    %v571 = vrot.slane %v561, %v570
    %v572 = vlaneseq
    %v573 = vshrl.u32 %v572, 7
    %v574 = vsub.s32 1, %v573
    %v575 = vrot.slane %v561, %v574
    %v576 = vlaneseq
    %v577 = vshrl.u32 %v576, 7
    %v578 = vsub.s32 2, %v577
    %v579 = vrot.slane %v561, %v578
    %v580 = vlaneseq
    %v581 = vshrl.u32 %v580, 7
    %v582 = vsub.s32 3, %v581
    %v583 = vrot.slane %v561, %v582
    %v584 = vlaneseq
    %v585 = vshrl.u32 %v584, 7
    %v586 = vsub.s32 4, %v585
    %v587 = vrot.slane %v561, %v586
    %v588 = vlaneseq
    %v589 = vshrl.u32 %v588, 7
    %v590 = vsub.s32 5, %v589
    %v591 = vrot.slane %v561, %v590
    %v592 = vlaneseq
    %v593 = vshrl.u32 %v592, 7
    %v594 = vsub.s32 6, %v593
    %v595 = vrot.slane %v561, %v594
    %v596 = vlaneseq
    %v597 = vshrl.u32 %v596, 7
    %v598 = vsub.s32 7, %v597
    %v599 = vrot.slane %v561, %v598
    %v928 = vunpack.c.l.b16 %v241
    %v929 = vunpack.c.h.b16 %v241
    %v930 = vunpack.c.l.b16 %v242
    %v931 = vunpack.c.h.b16 %v242
    %v932 = vunpack.c.l.b16 %v243
    %v933 = vunpack.c.h.b16 %v243
    %v934 = vunpack.c.l.b16 %v244
    %v935 = vunpack.c.h.b16 %v244
    %v936 = vunpack.c.l.b16 %v245
    %v937 = vunpack.c.h.b16 %v245
    %v938 = vunpack.c.l.b16 %v246
    %v939 = vunpack.c.h.b16 %v246
    %v940 = vunpack.c.l.b16 %v247
    %v941 = vunpack.c.h.b16 %v247
    %v942 = vunpack.c.l.b16 %v248
    %v943 = vunpack.c.h.b16 %v248
    %v944 = vunpack.c.l.b16 %v249
    %v945 = vunpack.c.h.b16 %v249
    %v946 = vunpack.c.l.b16 %v250
    %v947 = vunpack.c.h.b16 %v250
    %v948 = vunpack.c.l.b16 %v251
    %v949 = vunpack.c.h.b16 %v251
    %v950 = vunpack.c.l.b16 %v252
    %v951 = vunpack.c.h.b16 %v252
    %v952 = vunpack.c.l.b16 %v253
    %v953 = vunpack.c.h.b16 %v253
    %v954 = vunpack.c.l.b16 %v254
    %v955 = vunpack.c.h.b16 %v254
    %v956 = vunpack.c.l.b16 %v255
    %v957 = vunpack.c.h.b16 %v255
    %v958 = vunpack.c.l.b16 %v256
    %v959 = vunpack.c.h.b16 %v256
    %v960 = vunpack.c.l.b16 %v257
    %v961 = vunpack.c.h.b16 %v257
    %v962 = vunpack.c.l.b16 %v258
    %v963 = vunpack.c.h.b16 %v258
    %v964 = vunpack.c.l.b16 %v259
    %v965 = vunpack.c.h.b16 %v259
    %v966 = vunpack.c.l.b16 %v260
    %v967 = vunpack.c.h.b16 %v260
    %v968 = vunpack.c.l.b16 %v261
    %v969 = vunpack.c.h.b16 %v261
    %v970 = vunpack.c.l.b16 %v262
    %v971 = vunpack.c.h.b16 %v262
    %v972 = vunpack.c.l.b16 %v263
    %v973 = vunpack.c.h.b16 %v263
    %v974 = vunpack.c.l.b16 %v264
    %v975 = vunpack.c.h.b16 %v264
    %v976 = vunpack.c.l.b16 %v265
    %v977 = vunpack.c.h.b16 %v265
    %v978 = vunpack.c.l.b16 %v266
    %v979 = vunpack.c.h.b16 %v266
    %v980 = vunpack.c.l.b16 %v267
    %v981 = vunpack.c.h.b16 %v267
    %v982 = vunpack.c.l.b16 %v268
    %v983 = vunpack.c.h.b16 %v268
    %v984 = vunpack.c.l.b16 %v269
    %v985 = vunpack.c.h.b16 %v269
    %v986 = vunpack.c.l.b16 %v270
    %v987 = vunpack.c.h.b16 %v270
    %v988 = vunpack.c.l.b16 %v271
    %v989 = vunpack.c.h.b16 %v271
    %v990 = vunpack.c.l.b16 %v272
    %v991 = vunpack.c.h.b16 %v272
    %v992 = vunpack.c.l.b16 %v273
    %v993 = vunpack.c.h.b16 %v273
    %v994 = vunpack.c.l.b16 %v274
    %v995 = vunpack.c.h.b16 %v274
    %v996 = vunpack.c.l.b16 %v275
    %v997 = vunpack.c.h.b16 %v275
    %v998 = vunpack.c.l.b16 %v276
    %v999 = vunpack.c.h.b16 %v276
    %v1000 = vunpack.c.l.b16 %v277
    %v1001 = vunpack.c.h.b16 %v277
    %v1002 = vunpack.c.l.b16 %v278
    %v1003 = vunpack.c.h.b16 %v278
    %v1004 = vunpack.c.l.b16 %v279
    %v1005 = vunpack.c.h.b16 %v279
    %v1006 = vunpack.c.l.b16 %v280
    %v1007 = vunpack.c.h.b16 %v280
    %v1008 = vunpack.c.l.b16 %v281
    %v1009 = vunpack.c.h.b16 %v281
    %v1010 = vunpack.c.l.b16 %v282
    %v1011 = vunpack.c.h.b16 %v282
    %v1012 = vunpack.c.l.b16 %v283
    %v1013 = vunpack.c.h.b16 %v283
    %v1014 = vunpack.c.l.b16 %v284
    %v1015 = vunpack.c.h.b16 %v284
    %v1016 = vunpack.c.l.b16 %v285
    %v1017 = vunpack.c.h.b16 %v285
    %v1018 = vunpack.c.l.b16 %v286
    %v1019 = vunpack.c.h.b16 %v286
    %v1020 = vunpack.c.l.b16 %v287
    %v1021 = vunpack.c.h.b16 %v287
    %v1022 = vunpack.c.l.b16 %v288
    %v1023 = vunpack.c.h.b16 %v288
    %v1024 = vunpack.c.l.b16 %v289
    %v1025 = vunpack.c.h.b16 %v289
    %v1026 = vunpack.c.l.b16 %v290
    %v1027 = vunpack.c.h.b16 %v290
    %v1028 = vunpack.c.l.b16 %v291
    %v1029 = vunpack.c.h.b16 %v291
    %v1030 = vunpack.c.l.b16 %v292
    %v1031 = vunpack.c.h.b16 %v292
    %v1032 = vunpack.c.l.b16 %v293
    %v1033 = vunpack.c.h.b16 %v293
    %v1034 = vunpack.c.l.b16 %v294
    %v1035 = vunpack.c.h.b16 %v294
    %v1036 = vunpack.c.l.b16 %v295
    %v1037 = vunpack.c.h.b16 %v295
    %v1038 = vunpack.c.l.b16 %v296
    %v1039 = vunpack.c.h.b16 %v296
    %v1040 = vunpack.c.l.b16 %v297
    %v1041 = vunpack.c.h.b16 %v297
    %v1042 = vunpack.c.l.b16 %v298
    %v1043 = vunpack.c.h.b16 %v298
    %v1044 = vunpack.c.l.b16 %v299
    %v1045 = vunpack.c.h.b16 %v299
    %v1046 = vunpack.c.l.b16 %v300
    %v1047 = vunpack.c.h.b16 %v300
    %v1048 = vunpack.c.l.b16 %v301
    %v1049 = vunpack.c.h.b16 %v301
    %v1050 = vunpack.c.l.b16 %v302
    %v1051 = vunpack.c.h.b16 %v302
    %v1052 = vunpack.c.l.b16 %v303
    %v1053 = vunpack.c.h.b16 %v303
    %v1054 = vunpack.c.l.b16 %v304
    %v1055 = vunpack.c.h.b16 %v304
    %v1056 = vunpack.c.l.b16 %v305
    %v1057 = vunpack.c.h.b16 %v305
    %v1058 = vunpack.c.l.b16 %v306
    %v1059 = vunpack.c.h.b16 %v306
    %v1060 = vunpack.c.l.b16 %v307
    %v1061 = vunpack.c.h.b16 %v307
    %v1062 = vunpack.c.l.b16 %v308
    %v1063 = vunpack.c.h.b16 %v308
    %v1064 = vunpack.c.l.b16 %v309
    %v1065 = vunpack.c.h.b16 %v309
    %v1066 = vunpack.c.l.b16 %v310
    %v1067 = vunpack.c.h.b16 %v310
    %v1068 = vunpack.c.l.b16 %v311
    %v1069 = vunpack.c.h.b16 %v311
    %v1070 = vunpack.c.l.b16 %v312
    %v1071 = vunpack.c.h.b16 %v312
    %v1072 = vunpack.c.l.b16 %v313
    %v1073 = vunpack.c.h.b16 %v313
    %v1074 = vunpack.c.l.b16 %v314
    %v1075 = vunpack.c.h.b16 %v314
    %v1076 = vunpack.c.l.b16 %v315
    %v1077 = vunpack.c.h.b16 %v315
    %v1078 = vunpack.c.l.b16 %v316
    %v1079 = vunpack.c.h.b16 %v316
    %v1080 = vunpack.c.l.b16 %v317
    %v1081 = vunpack.c.h.b16 %v317
    %v1082 = vunpack.c.l.b16 %v318
    %v1083 = vunpack.c.h.b16 %v318
    %v1084 = vunpack.c.l.b16 %v319
    %v1085 = vunpack.c.h.b16 %v319
    %v1086 = vunpack.c.l.b16 %v320
    %v1087 = vunpack.c.h.b16 %v320
    %v1088 = vunpack.c.l.b16 %v321
    %v1089 = vunpack.c.h.b16 %v321
    %v1090 = vunpack.c.l.b16 %v322
    %v1091 = vunpack.c.h.b16 %v322
    %v1092 = vunpack.c.l.b16 %v323
    %v1093 = vunpack.c.h.b16 %v323
    %v1094 = vunpack.c.l.b16 %v324
    %v1095 = vunpack.c.h.b16 %v324
    %v1096 = vunpack.c.l.b16 %v325
    %v1097 = vunpack.c.h.b16 %v325
    %v1098 = vunpack.c.l.b16 %v326
    %v1099 = vunpack.c.h.b16 %v326
    %v1100 = vunpack.c.l.b16 %v327
    %v1101 = vunpack.c.h.b16 %v327
    %v1102 = vunpack.c.l.b16 %v328
    %v1103 = vunpack.c.h.b16 %v328
    %v1104 = vunpack.c.l.b16 %v329
    %v1105 = vunpack.c.h.b16 %v329
    %v1106 = vunpack.c.l.b16 %v330
    %v1107 = vunpack.c.h.b16 %v330
    %v1108 = vunpack.c.l.b16 %v331
    %v1109 = vunpack.c.h.b16 %v331
    %v1110 = vunpack.c.l.b16 %v332
    %v1111 = vunpack.c.h.b16 %v332
    %v1112 = vunpack.c.l.b16 %v333
    %v1113 = vunpack.c.h.b16 %v333
    %v1114 = vunpack.c.l.b16 %v334
    %v1115 = vunpack.c.h.b16 %v334
    %v1116 = vunpack.c.l.b16 %v335
    %v1117 = vunpack.c.h.b16 %v335
    %v1118 = vunpack.c.l.b16 %v336
    %v1119 = vunpack.c.h.b16 %v336
    %v1120 = vunpack.c.l.b16 %v337
    %v1121 = vunpack.c.h.b16 %v337
    %v1122 = vunpack.c.l.b16 %v338
    %v1123 = vunpack.c.h.b16 %v338
    %v1124 = vunpack.c.l.b16 %v339
    %v1125 = vunpack.c.h.b16 %v339
    %v1126 = vunpack.c.l.b16 %v340
    %v1127 = vunpack.c.h.b16 %v340
    %v1128 = vunpack.c.l.b16 %v341
    %v1129 = vunpack.c.h.b16 %v341
    %v1130 = vunpack.c.l.b16 %v342
    %v1131 = vunpack.c.h.b16 %v342
    %v1132 = vunpack.c.l.b16 %v343
    %v1133 = vunpack.c.h.b16 %v343
    %v1134 = vunpack.c.l.b16 %v344
    %v1135 = vunpack.c.h.b16 %v344
    %v1136 = vunpack.c.l.b16 %v345
    %v1137 = vunpack.c.h.b16 %v345
    %v1138 = vunpack.c.l.b16 %v346
    %v1139 = vunpack.c.h.b16 %v346
    %v1140 = vunpack.c.l.b16 %v347
    %v1141 = vunpack.c.h.b16 %v347
    %v1142 = vunpack.c.l.b16 %v348
    %v1143 = vunpack.c.h.b16 %v348
    %v1144 = vunpack.c.l.b16 %v349
    %v1145 = vunpack.c.h.b16 %v349
    %v1146 = vunpack.c.l.b16 %v350
    %v1147 = vunpack.c.h.b16 %v350
    %v1148 = vunpack.c.l.b16 %v351
    %v1149 = vunpack.c.h.b16 %v351
    %v1150 = vunpack.c.l.b16 %v352
    %v1151 = vunpack.c.h.b16 %v352
    %v1152 = vunpack.c.l.b16 %v353
    %v1153 = vunpack.c.h.b16 %v353
    %v1154 = vunpack.c.l.b16 %v354
    %v1155 = vunpack.c.h.b16 %v354
    %v1156 = vunpack.c.l.b16 %v355
    %v1157 = vunpack.c.h.b16 %v355
    %v1158 = vunpack.c.l.b16 %v356
    %v1159 = vunpack.c.h.b16 %v356
    %v1160 = vunpack.c.l.b16 %v357
    %v1161 = vunpack.c.h.b16 %v357
    %v1162 = vunpack.c.l.b16 %v358
    %v1163 = vunpack.c.h.b16 %v358
    %v1164 = vunpack.c.l.b16 %v359
    %v1165 = vunpack.c.h.b16 %v359
    %v1166 = vunpack.c.l.b16 %v360
    %v1167 = vunpack.c.h.b16 %v360
    %v1168 = vunpack.c.l.b16 %v361
    %v1169 = vunpack.c.h.b16 %v361
    %v1170 = vunpack.c.l.b16 %v362
    %v1171 = vunpack.c.h.b16 %v362
    %v1172 = vunpack.c.l.b16 %v363
    %v1173 = vunpack.c.h.b16 %v363
    %v1174 = vunpack.c.l.b16 %v364
    %v1175 = vunpack.c.h.b16 %v364
    %v1176 = vunpack.c.l.b16 %v365
    %v1177 = vunpack.c.h.b16 %v365
    %v1178 = vunpack.c.l.b16 %v366
    %v1179 = vunpack.c.h.b16 %v366
    %v1180 = vunpack.c.l.b16 %v367
    %v1181 = vunpack.c.h.b16 %v367
    %v1182 = vunpack.c.l.b16 %v368
    %v1183 = vunpack.c.h.b16 %v368
    %v1184 = vunpack.c.l.b16 %v369
    %v1185 = vunpack.c.h.b16 %v369
    %v1186 = vunpack.c.l.b16 %v370
    %v1187 = vunpack.c.h.b16 %v370
    %v1188 = vunpack.c.l.b16 %v371
    %v1189 = vunpack.c.h.b16 %v371
    %v1190 = vunpack.c.l.b16 %v372
    %v1191 = vunpack.c.h.b16 %v372
    %v1192 = vunpack.c.l.b16 %v373
    %v1193 = vunpack.c.h.b16 %v373
    %v1194 = vunpack.c.l.b16 %v374
    %v1195 = vunpack.c.h.b16 %v374
    %v1196 = vunpack.c.l.b16 %v375
    %v1197 = vunpack.c.h.b16 %v375
    %v1198 = vunpack.c.l.b16 %v376
    %v1199 = vunpack.c.h.b16 %v376
    %v1200 = vunpack.c.l.b16 %v377
    %v1201 = vunpack.c.h.b16 %v377
    %v1202 = vunpack.c.l.b16 %v378
    %v1203 = vunpack.c.h.b16 %v378
    %v1204 = vunpack.c.l.b16 %v379
    %v1205 = vunpack.c.h.b16 %v379
    %v1206 = vunpack.c.l.b16 %v380
    %v1207 = vunpack.c.h.b16 %v380
    %v1208 = vunpack.c.l.b16 %v381
    %v1209 = vunpack.c.h.b16 %v381
    %v1210 = vunpack.c.l.b16 %v382
    %v1211 = vunpack.c.h.b16 %v382
    %v1212 = vunpack.c.l.b16 %v383
    %v1213 = vunpack.c.h.b16 %v383
    %v1214 = vunpack.c.l.b16 %v384
    %v1215 = vunpack.c.h.b16 %v384
    %v1216 = vunpack.c.l.b16 %v385
    %v1217 = vunpack.c.h.b16 %v385
    %v1218 = vunpack.c.l.b16 %v386
    %v1219 = vunpack.c.h.b16 %v386
    %v1220 = vunpack.c.l.b16 %v387
    %v1221 = vunpack.c.h.b16 %v387
    %v1222 = vunpack.c.l.b16 %v388
    %v1223 = vunpack.c.h.b16 %v388
    %v1224 = vunpack.c.l.b16 %v389
    %v1225 = vunpack.c.h.b16 %v389
    %v1226 = vunpack.c.l.b16 %v390
    %v1227 = vunpack.c.h.b16 %v390
    %v1228 = vunpack.c.l.b16 %v391
    %v1229 = vunpack.c.h.b16 %v391
    %v1230 = vunpack.c.l.b16 %v392
    %v1231 = vunpack.c.h.b16 %v392
    %v1232 = vunpack.c.l.b16 %v393
    %v1233 = vunpack.c.h.b16 %v393
    %v1234 = vunpack.c.l.b16 %v394
    %v1235 = vunpack.c.h.b16 %v394
    %v1236 = vunpack.c.l.b16 %v395
    %v1237 = vunpack.c.h.b16 %v395
    %v1238 = vunpack.c.l.b16 %v396
    %v1239 = vunpack.c.h.b16 %v396
    %v1240 = vunpack.c.l.b16 %v397
    %v1241 = vunpack.c.h.b16 %v397
    %v1242 = vunpack.c.l.b16 %v398
    %v1243 = vunpack.c.h.b16 %v398
    %v1244 = vunpack.c.l.b16 %v399
    %v1245 = vunpack.c.h.b16 %v399
    %v1246 = vunpack.c.l.b16 %v400
    %v1247 = vunpack.c.h.b16 %v400
    %v1248 = vunpack.c.l.b16 %v401
    %v1249 = vunpack.c.h.b16 %v401
    %v1250 = vunpack.c.l.b16 %v402
    %v1251 = vunpack.c.h.b16 %v402
    %v1252 = vunpack.c.l.b16 %v403
    %v1253 = vunpack.c.h.b16 %v403
    %v1254 = vunpack.c.l.b16 %v404
    %v1255 = vunpack.c.h.b16 %v404
    %v1256 = vunpack.c.l.b16 %v405
    %v1257 = vunpack.c.h.b16 %v405
    %v1258 = vunpack.c.l.b16 %v406
    %v1259 = vunpack.c.h.b16 %v406
    %v1260 = vunpack.c.l.b16 %v407
    %v1261 = vunpack.c.h.b16 %v407
    %v1262 = vunpack.c.l.b16 %v408
    %v1263 = vunpack.c.h.b16 %v408
    %v1264 = vunpack.c.l.b16 %v409
    %v1265 = vunpack.c.h.b16 %v409
    %v1266 = vunpack.c.l.b16 %v410
    %v1267 = vunpack.c.h.b16 %v410
    %v1268 = vunpack.c.l.b16 %v411
    %v1269 = vunpack.c.h.b16 %v411
    %v1270 = vunpack.c.l.b16 %v412
    %v1271 = vunpack.c.h.b16 %v412
    %v1272 = vunpack.c.l.b16 %v413
    %v1273 = vunpack.c.h.b16 %v413
    %v1274 = vunpack.c.l.b16 %v414
    %v1275 = vunpack.c.h.b16 %v414
    %v1276 = vunpack.c.l.b16 %v415
    %v1277 = vunpack.c.h.b16 %v415
    %v1278 = vunpack.c.l.b16 %v416
    %v1279 = vunpack.c.h.b16 %v416
    %v1280 = vunpack.c.l.b16 %v417
    %v1281 = vunpack.c.h.b16 %v417
    %v1282 = vunpack.c.l.b16 %v418
    %v1283 = vunpack.c.h.b16 %v418
    %v1284 = vunpack.c.l.b16 %v419
    %v1285 = vunpack.c.h.b16 %v419
    %v1286 = vunpack.c.l.b16 %v420
    %v1287 = vunpack.c.h.b16 %v420
    %v1288 = vunpack.c.l.b16 %v421
    %v1289 = vunpack.c.h.b16 %v421
    %v1290 = vunpack.c.l.b16 %v422
    %v1291 = vunpack.c.h.b16 %v422
    %v1292 = vunpack.c.l.b16 %v423
    %v1293 = vunpack.c.h.b16 %v423
    %v1294 = vunpack.c.l.b16 %v424
    %v1295 = vunpack.c.h.b16 %v424
    %v1296 = vunpack.c.l.b16 %v425
    %v1297 = vunpack.c.h.b16 %v425
    %v1298 = vunpack.c.l.b16 %v426
    %v1299 = vunpack.c.h.b16 %v426
    %v1300 = vunpack.c.l.b16 %v427
    %v1301 = vunpack.c.h.b16 %v427
    %v1302 = vunpack.c.l.b16 %v428
    %v1303 = vunpack.c.h.b16 %v428
    %v1304 = vunpack.c.l.b16 %v429
    %v1305 = vunpack.c.h.b16 %v429
    %v1306 = vunpack.c.l.b16 %v430
    %v1307 = vunpack.c.h.b16 %v430
    %v1308 = vunpack.c.l.b16 %v431
    %v1309 = vunpack.c.h.b16 %v431
    %v1310 = vunpack.c.l.b16 %v432
    %v1311 = vunpack.c.h.b16 %v432
    %v1312 = vunpack.c.l.b16 %v433
    %v1313 = vunpack.c.h.b16 %v433
    %v1314 = vunpack.c.l.b16 %v434
    %v1315 = vunpack.c.h.b16 %v434
    %v1316 = vunpack.c.l.b16 %v435
    %v1317 = vunpack.c.h.b16 %v435
    %v1318 = vunpack.c.l.b16 %v436
    %v1319 = vunpack.c.h.b16 %v436
    %v1320 = vunpack.c.l.b16 %v437
    %v1321 = vunpack.c.h.b16 %v437
    %v1322 = vunpack.c.l.b16 %v438
    %v1323 = vunpack.c.h.b16 %v438
    %v1324 = vunpack.c.l.b16 %v439
    %v1325 = vunpack.c.h.b16 %v439
    %v1326 = vunpack.c.l.b16 %v440
    %v1327 = vunpack.c.h.b16 %v440
    %v1328 = vunpack.c.l.b16 %v441
    %v1329 = vunpack.c.h.b16 %v441
    %v1330 = vunpack.c.l.b16 %v442
    %v1331 = vunpack.c.h.b16 %v442
    %v1332 = vunpack.c.l.b16 %v443
    %v1333 = vunpack.c.h.b16 %v443
    %v1334 = vunpack.c.l.b16 %v444
    %v1335 = vunpack.c.h.b16 %v444
    %v1336 = vunpack.c.l.b16 %v445
    %v1337 = vunpack.c.h.b16 %v445
    %v1338 = vunpack.c.l.b16 %v446
    %v1339 = vunpack.c.h.b16 %v446
    %v1340 = vunpack.c.l.b16 %v447
    %v1341 = vunpack.c.h.b16 %v447
    %v1342 = vunpack.c.l.b16 %v448
    %v1343 = vunpack.c.h.b16 %v448
    %v1344 = vunpack.c.l.b16 %v449
    %v1345 = vunpack.c.h.b16 %v449
    %v1346 = vunpack.c.l.b16 %v450
    %v1347 = vunpack.c.h.b16 %v450
    %v1348 = vunpack.c.l.b16 %v451
    %v1349 = vunpack.c.h.b16 %v451
    %v1350 = vunpack.c.l.b16 %v452
    %v1351 = vunpack.c.h.b16 %v452
    %v1352 = vunpack.c.l.b16 %v453
    %v1353 = vunpack.c.h.b16 %v453
    %v1354 = vunpack.c.l.b16 %v454
    %v1355 = vunpack.c.h.b16 %v454
    %v1356 = vunpack.c.l.b16 %v455
    %v1357 = vunpack.c.h.b16 %v455
    %v1358 = vunpack.c.l.b16 %v456
    %v1359 = vunpack.c.h.b16 %v456
    %v1360 = vunpack.c.l.b16 %v457
    %v1361 = vunpack.c.h.b16 %v457
    %v1362 = vunpack.c.l.b16 %v458
    %v1363 = vunpack.c.h.b16 %v458
    %v1364 = vunpack.c.l.b16 %v459
    %v1365 = vunpack.c.h.b16 %v459
    %v1366 = vunpack.c.l.b16 %v460
    %v1367 = vunpack.c.h.b16 %v460
    %v1368 = vunpack.c.l.b16 %v461
    %v1369 = vunpack.c.h.b16 %v461
    %v1370 = vunpack.c.l.b16 %v462
    %v1371 = vunpack.c.h.b16 %v462
    %v1372 = vunpack.c.l.b16 %v463
    %v1373 = vunpack.c.h.b16 %v463
    %v1374 = vunpack.c.l.b16 %v464
    %v1375 = vunpack.c.h.b16 %v464
    %v1376 = vunpack.c.l.b16 %v465
    %v1377 = vunpack.c.h.b16 %v465
    %v1378 = vunpack.c.l.b16 %v466
    %v1379 = vunpack.c.h.b16 %v466
    %v1380 = vunpack.c.l.b16 %v467
    %v1381 = vunpack.c.h.b16 %v467
    %v1382 = vunpack.c.l.b16 %v468
    %v1383 = vunpack.c.h.b16 %v468
    %v1384 = vunpack.c.l.b16 %v469
    %v1385 = vunpack.c.h.b16 %v469
    %v1386 = vunpack.c.l.b16 %v470
    %v1387 = vunpack.c.h.b16 %v470
    %v1388 = vunpack.c.l.b16 %v471
    %v1389 = vunpack.c.h.b16 %v471
    %v1390 = vunpack.c.l.b16 %v472
    %v1391 = vunpack.c.h.b16 %v472
    %v1392 = vunpack.c.l.b16 %v473
    %v1393 = vunpack.c.h.b16 %v473
    %v1394 = vunpack.c.l.b16 %v474
    %v1395 = vunpack.c.h.b16 %v474
    %v1396 = vunpack.c.l.b16 %v475
    %v1397 = vunpack.c.h.b16 %v475
    %v1398 = vunpack.c.l.b16 %v476
    %v1399 = vunpack.c.h.b16 %v476
    %v1400 = vunpack.c.l.b16 %v477
    %v1401 = vunpack.c.h.b16 %v477
    %v1402 = vunpack.c.l.b16 %v478
    %v1403 = vunpack.c.h.b16 %v478
    %v1404 = vunpack.c.l.b16 %v479
    %v1405 = vunpack.c.h.b16 %v479
    %v1406 = vunpack.c.l.b16 %v480
    %v1407 = vunpack.c.h.b16 %v480
    %v1408 = vunpack.c.l.b16 %v481
    %v1409 = vunpack.c.h.b16 %v481
    %v1410 = vunpack.c.l.b16 %v482
    %v1411 = vunpack.c.h.b16 %v482
    %v1412 = vunpack.c.l.b16 %v483
    %v1413 = vunpack.c.h.b16 %v483
    %v1414 = vunpack.c.l.b16 %v484
    %v1415 = vunpack.c.h.b16 %v484
    %v1416 = vunpack.c.l.b16 %v485
    %v1417 = vunpack.c.h.b16 %v485
    %v1418 = vunpack.c.l.b16 %v486
    %v1419 = vunpack.c.h.b16 %v486
    %v1420 = vunpack.c.l.b16 %v487
    %v1421 = vunpack.c.h.b16 %v487
    %v1422 = vunpack.c.l.b16 %v488
    %v1423 = vunpack.c.h.b16 %v488
    %v1424 = vunpack.c.l.b16 %v489
    %v1425 = vunpack.c.h.b16 %v489
    %v1426 = vunpack.c.l.b16 %v490
    %v1427 = vunpack.c.h.b16 %v490
    %v1428 = vunpack.c.l.b16 %v491
    %v1429 = vunpack.c.h.b16 %v491
    %v1430 = vunpack.c.l.b16 %v492
    %v1431 = vunpack.c.h.b16 %v492
    %v1432 = vunpack.c.l.b16 %v493
    %v1433 = vunpack.c.h.b16 %v493
    %v1434 = vunpack.c.l.b16 %v494
    %v1435 = vunpack.c.h.b16 %v494
    %v1436 = vunpack.c.l.b16 %v495
    %v1437 = vunpack.c.h.b16 %v495
    %v1438 = vunpack.c.l.b16 %v496
    %v1439 = vunpack.c.h.b16 %v496
    %v1440 = vunpack.c.l.b16 %v497
    %v1441 = vunpack.c.h.b16 %v497
    %v1442 = vunpack.c.l.b16 %v498
    %v1443 = vunpack.c.h.b16 %v498
    %v1444 = vunpack.c.l.b16 %v499
    %v1445 = vunpack.c.h.b16 %v499
    %v1446 = vunpack.c.l.b16 %v500
    %v1447 = vunpack.c.h.b16 %v500
    %v1448 = vunpack.c.l.b16 %v501
    %v1449 = vunpack.c.h.b16 %v501
    %v1450 = vunpack.c.l.b16 %v502
    %v1451 = vunpack.c.h.b16 %v502
    %v1452 = vunpack.c.l.b16 %v503
    %v1453 = vunpack.c.h.b16 %v503
    %v1454 = vunpack.c.l.b16 %v504
    %v1455 = vunpack.c.h.b16 %v504
    %v1456 = vunpack.c.l.b16 %v505
    %v1457 = vunpack.c.h.b16 %v505
    %v1458 = vunpack.c.l.b16 %v506
    %v1459 = vunpack.c.h.b16 %v506
    %v1460 = vunpack.c.l.b16 %v507
    %v1461 = vunpack.c.h.b16 %v507
    %v1462 = vunpack.c.l.b16 %v508
    %v1463 = vunpack.c.h.b16 %v508
    %v1464 = vunpack.c.l.b16 %v509
    %v1465 = vunpack.c.h.b16 %v509
    %v1466 = vunpack.c.l.b16 %v510
    %v1467 = vunpack.c.h.b16 %v510
    %v1468 = vunpack.c.l.b16 %v511
    %v1469 = vunpack.c.h.b16 %v511
    %v1470 = vunpack.c.l.b16 %v512
    %v1471 = vunpack.c.h.b16 %v512
    %v1472 = vunpack.c.l.b16 %v513
    %v1473 = vunpack.c.h.b16 %v513
    %v1474 = vunpack.c.l.b16 %v514
    %v1475 = vunpack.c.h.b16 %v514
    %v1476 = vunpack.c.l.b16 %v515
    %v1477 = vunpack.c.h.b16 %v515
    %v1478 = vunpack.c.l.b16 %v516
    %v1479 = vunpack.c.h.b16 %v516
    %v1480 = vunpack.c.l.b16 %v517
    %v1481 = vunpack.c.h.b16 %v517
    %v1482 = vunpack.c.l.b16 %v518
    %v1483 = vunpack.c.h.b16 %v518
    %v1484 = vunpack.c.l.b16 %v519
    %v1485 = vunpack.c.h.b16 %v519
    %v1486 = vunpack.c.l.b16 %v520
    %v1487 = vunpack.c.h.b16 %v520
    %v1488 = vunpack.c.l.b16 %v521
    %v1489 = vunpack.c.h.b16 %v521
    %v1490 = vunpack.c.l.b16 %v522
    %v1491 = vunpack.c.h.b16 %v522
    %v1492 = vunpack.c.l.b16 %v523
    %v1493 = vunpack.c.h.b16 %v523
    %v1494 = vunpack.c.l.b16 %v524
    %v1495 = vunpack.c.h.b16 %v524
    %v1496 = vunpack.c.l.b16 %v525
    %v1497 = vunpack.c.h.b16 %v525
    %v1498 = vunpack.c.l.b16 %v526
    %v1499 = vunpack.c.h.b16 %v526
    %v1500 = vunpack.c.l.b16 %v527
    %v1501 = vunpack.c.h.b16 %v527
    %v1502 = vunpack.c.l.b16 %v528
    %v1503 = vunpack.c.h.b16 %v528
    %v1504 = vunpack.c.l.b16 %v529
    %v1505 = vunpack.c.h.b16 %v529
    %v1506 = vunpack.c.l.b16 %v530
    %v1507 = vunpack.c.h.b16 %v530
    %v1508 = vunpack.c.l.b16 %v531
    %v1509 = vunpack.c.h.b16 %v531
    %v1510 = vunpack.c.l.b16 %v532
    %v1511 = vunpack.c.h.b16 %v532
    %v1512 = vunpack.c.l.b16 %v533
    %v1513 = vunpack.c.h.b16 %v533
    %v1514 = vunpack.c.l.b16 %v534
    %v1515 = vunpack.c.h.b16 %v534
    %v1516 = vunpack.c.l.b16 %v535
    %v1517 = vunpack.c.h.b16 %v535
    %v1518 = vunpack.c.l.b16 %v536
    %v1519 = vunpack.c.h.b16 %v536
    %v1520 = vunpack.c.l.b16 %v537
    %v1521 = vunpack.c.h.b16 %v537
    %v1522 = vunpack.c.l.b16 %v538
    %v1523 = vunpack.c.h.b16 %v538
    %v1524 = vunpack.c.l.b16 %v539
    %v1525 = vunpack.c.h.b16 %v539
    %v1526 = vunpack.c.l.b16 %v540
    %v1527 = vunpack.c.h.b16 %v540
    %v1528 = vunpack.c.l.b16 %v541
    %v1529 = vunpack.c.h.b16 %v541
    %v1530 = vunpack.c.l.b16 %v542
    %v1531 = vunpack.c.h.b16 %v542
    %v1532 = vunpack.c.l.b16 %v543
    %v1533 = vunpack.c.h.b16 %v543
    %v1534 = vunpack.c.l.b16 %v544
    %v1535 = vunpack.c.h.b16 %v544
    %v1536 = vunpack.c.l.b16 %v545
    %v1537 = vunpack.c.h.b16 %v545
    %v1538 = vunpack.c.l.b16 %v546
    %v1539 = vunpack.c.h.b16 %v546
    %v1540 = vunpack.c.l.b16 %v547
    %v1541 = vunpack.c.h.b16 %v547
    %v1542 = vunpack.c.l.b16 %v548
    %v1543 = vunpack.c.h.b16 %v548
    %v1544 = vunpack.c.l.b16 %v549
    %v1545 = vunpack.c.h.b16 %v549
    %v1546 = vunpack.c.l.b16 %v550
    %v1547 = vunpack.c.h.b16 %v550
    %v1548 = vunpack.c.l.b16 %v551
    %v1549 = vunpack.c.h.b16 %v551
    %v1550 = vunpack.c.l.b16 %v552
    %v1551 = vunpack.c.h.b16 %v552
    %v1552 = vunpack.c.l.b16 %v553
    %v1553 = vunpack.c.h.b16 %v553
    %v1554 = vunpack.c.l.b16 %v554
    %v1555 = vunpack.c.h.b16 %v554
    %v1556 = vunpack.c.l.b16 %v555
    %v1557 = vunpack.c.h.b16 %v555
    %v1558 = vunpack.c.l.b16 %v556
    %v1559 = vunpack.c.h.b16 %v556
    %v1560 = vunpack.c.l.b16 %v557
    %v1561 = vunpack.c.h.b16 %v557
    %v1562 = vunpack.c.l.b16 %v558
    %v1563 = vunpack.c.h.b16 %v558
    %v1564 = vunpack.c.l.b16 %v559
    %v1565 = vunpack.c.h.b16 %v559
    %v1566 = vunpack.c.l.b16 %v560
    %v1567 = vunpack.c.h.b16 %v560
    %v1568 = vpack.c.b16 %v936, %v928
    %v1569 = vpack.c.b16 %v937, %v929
    %v1570 = vpack.c.b16 %v938, %v930
    %v1571 = vpack.c.b16 %v939, %v931
    %v1572 = vpack.c.b16 %v940, %v932
    %v1573 = vpack.c.b16 %v941, %v933
    %v1574 = vpack.c.b16 %v942, %v934
    %v1575 = vpack.c.b16 %v943, %v935
    %v1576 = vpack.c.b16 %v952, %v944
    %v1577 = vpack.c.b16 %v953, %v945
    %v1578 = vpack.c.b16 %v954, %v946
    %v1579 = vpack.c.b16 %v955, %v947
    %v1580 = vpack.c.b16 %v956, %v948
    %v1581 = vpack.c.b16 %v957, %v949
    %v1582 = vpack.c.b16 %v958, %v950
    %v1583 = vpack.c.b16 %v959, %v951
    %v1584 = vpack.c.b16 %v968, %v960
    %v1585 = vpack.c.b16 %v969, %v961
    %v1586 = vpack.c.b16 %v970, %v962
    %v1587 = vpack.c.b16 %v971, %v963
    %v1588 = vpack.c.b16 %v972, %v964
    %v1589 = vpack.c.b16 %v973, %v965
    %v1590 = vpack.c.b16 %v974, %v966
    %v1591 = vpack.c.b16 %v975, %v967
    %v1592 = vpack.c.b16 %v984, %v976
    %v1593 = vpack.c.b16 %v985, %v977
    %v1594 = vpack.c.b16 %v986, %v978
    %v1595 = vpack.c.b16 %v987, %v979
    %v1596 = vpack.c.b16 %v988, %v980
    %v1597 = vpack.c.b16 %v989, %v981
    %v1598 = vpack.c.b16 %v990, %v982
    %v1599 = vpack.c.b16 %v991, %v983
    %v1600 = vpack.c.b16 %v1000, %v992
    %v1601 = vpack.c.b16 %v1001, %v993
    %v1602 = vpack.c.b16 %v1002, %v994
    %v1603 = vpack.c.b16 %v1003, %v995
    %v1604 = vpack.c.b16 %v1004, %v996
    %v1605 = vpack.c.b16 %v1005, %v997
    %v1606 = vpack.c.b16 %v1006, %v998
    %v1607 = vpack.c.b16 %v1007, %v999
    %v1608 = vpack.c.b16 %v1016, %v1008
    %v1609 = vpack.c.b16 %v1017, %v1009
    %v1610 = vpack.c.b16 %v1018, %v1010
    %v1611 = vpack.c.b16 %v1019, %v1011
    %v1612 = vpack.c.b16 %v1020, %v1012
    %v1613 = vpack.c.b16 %v1021, %v1013
    %v1614 = vpack.c.b16 %v1022, %v1014
    %v1615 = vpack.c.b16 %v1023, %v1015
    %v1616 = vpack.c.b16 %v1032, %v1024
    %v1617 = vpack.c.b16 %v1033, %v1025
    %v1618 = vpack.c.b16 %v1034, %v1026
    %v1619 = vpack.c.b16 %v1035, %v1027
    %v1620 = vpack.c.b16 %v1036, %v1028
    %v1621 = vpack.c.b16 %v1037, %v1029
    %v1622 = vpack.c.b16 %v1038, %v1030
    %v1623 = vpack.c.b16 %v1039, %v1031
    %v1624 = vpack.c.b16 %v1048, %v1040
    %v1625 = vpack.c.b16 %v1049, %v1041
    %v1626 = vpack.c.b16 %v1050, %v1042
    %v1627 = vpack.c.b16 %v1051, %v1043
    %v1628 = vpack.c.b16 %v1052, %v1044
    %v1629 = vpack.c.b16 %v1053, %v1045
    %v1630 = vpack.c.b16 %v1054, %v1046
    %v1631 = vpack.c.b16 %v1055, %v1047
    %v1632 = vpack.c.b16 %v1064, %v1056
    %v1633 = vpack.c.b16 %v1065, %v1057
    %v1634 = vpack.c.b16 %v1066, %v1058
    %v1635 = vpack.c.b16 %v1067, %v1059
    %v1636 = vpack.c.b16 %v1068, %v1060
    %v1637 = vpack.c.b16 %v1069, %v1061
    %v1638 = vpack.c.b16 %v1070, %v1062
    %v1639 = vpack.c.b16 %v1071, %v1063
    %v1640 = vpack.c.b16 %v1080, %v1072
    %v1641 = vpack.c.b16 %v1081, %v1073
    %v1642 = vpack.c.b16 %v1082, %v1074
    %v1643 = vpack.c.b16 %v1083, %v1075
    %v1644 = vpack.c.b16 %v1084, %v1076
    %v1645 = vpack.c.b16 %v1085, %v1077
    %v1646 = vpack.c.b16 %v1086, %v1078
    %v1647 = vpack.c.b16 %v1087, %v1079
    %v1648 = vpack.c.b16 %v1096, %v1088
    %v1649 = vpack.c.b16 %v1097, %v1089
    %v1650 = vpack.c.b16 %v1098, %v1090
    %v1651 = vpack.c.b16 %v1099, %v1091
    %v1652 = vpack.c.b16 %v1100, %v1092
    %v1653 = vpack.c.b16 %v1101, %v1093
    %v1654 = vpack.c.b16 %v1102, %v1094
    %v1655 = vpack.c.b16 %v1103, %v1095
    %v1656 = vpack.c.b16 %v1112, %v1104
    %v1657 = vpack.c.b16 %v1113, %v1105
    %v1658 = vpack.c.b16 %v1114, %v1106
    %v1659 = vpack.c.b16 %v1115, %v1107
    %v1660 = vpack.c.b16 %v1116, %v1108
    %v1661 = vpack.c.b16 %v1117, %v1109
    %v1662 = vpack.c.b16 %v1118, %v1110
    %v1663 = vpack.c.b16 %v1119, %v1111
    %v1664 = vpack.c.b16 %v1128, %v1120
    %v1665 = vpack.c.b16 %v1129, %v1121
    %v1666 = vpack.c.b16 %v1130, %v1122
    %v1667 = vpack.c.b16 %v1131, %v1123
    %v1668 = vpack.c.b16 %v1132, %v1124
    %v1669 = vpack.c.b16 %v1133, %v1125
    %v1670 = vpack.c.b16 %v1134, %v1126
    %v1671 = vpack.c.b16 %v1135, %v1127
    %v1672 = vpack.c.b16 %v1144, %v1136
    %v1673 = vpack.c.b16 %v1145, %v1137
    %v1674 = vpack.c.b16 %v1146, %v1138
    %v1675 = vpack.c.b16 %v1147, %v1139
    %v1676 = vpack.c.b16 %v1148, %v1140
    %v1677 = vpack.c.b16 %v1149, %v1141
    %v1678 = vpack.c.b16 %v1150, %v1142
    %v1679 = vpack.c.b16 %v1151, %v1143
    %v1680 = vpack.c.b16 %v1160, %v1152
    %v1681 = vpack.c.b16 %v1161, %v1153
    %v1682 = vpack.c.b16 %v1162, %v1154
    %v1683 = vpack.c.b16 %v1163, %v1155
    %v1684 = vpack.c.b16 %v1164, %v1156
    %v1685 = vpack.c.b16 %v1165, %v1157
    %v1686 = vpack.c.b16 %v1166, %v1158
    %v1687 = vpack.c.b16 %v1167, %v1159
    %v1688 = vpack.c.b16 %v1176, %v1168
    %v1689 = vpack.c.b16 %v1177, %v1169
    %v1690 = vpack.c.b16 %v1178, %v1170
    %v1691 = vpack.c.b16 %v1179, %v1171
    %v1692 = vpack.c.b16 %v1180, %v1172
    %v1693 = vpack.c.b16 %v1181, %v1173
    %v1694 = vpack.c.b16 %v1182, %v1174
    %v1695 = vpack.c.b16 %v1183, %v1175
    %v1696 = vpack.c.b16 %v1192, %v1184
    %v1697 = vpack.c.b16 %v1193, %v1185
    %v1698 = vpack.c.b16 %v1194, %v1186
    %v1699 = vpack.c.b16 %v1195, %v1187
    %v1700 = vpack.c.b16 %v1196, %v1188
    %v1701 = vpack.c.b16 %v1197, %v1189
    %v1702 = vpack.c.b16 %v1198, %v1190
    %v1703 = vpack.c.b16 %v1199, %v1191
    %v1704 = vpack.c.b16 %v1208, %v1200
    %v1705 = vpack.c.b16 %v1209, %v1201
    %v1706 = vpack.c.b16 %v1210, %v1202
    %v1707 = vpack.c.b16 %v1211, %v1203
    %v1708 = vpack.c.b16 %v1212, %v1204
    %v1709 = vpack.c.b16 %v1213, %v1205
    %v1710 = vpack.c.b16 %v1214, %v1206
    %v1711 = vpack.c.b16 %v1215, %v1207
    %v1712 = vpack.c.b16 %v1224, %v1216
    %v1713 = vpack.c.b16 %v1225, %v1217
    %v1714 = vpack.c.b16 %v1226, %v1218
    %v1715 = vpack.c.b16 %v1227, %v1219
    %v1716 = vpack.c.b16 %v1228, %v1220
    %v1717 = vpack.c.b16 %v1229, %v1221
    %v1718 = vpack.c.b16 %v1230, %v1222
    %v1719 = vpack.c.b16 %v1231, %v1223
    %v1720 = vpack.c.b16 %v1240, %v1232
    %v1721 = vpack.c.b16 %v1241, %v1233
    %v1722 = vpack.c.b16 %v1242, %v1234
    %v1723 = vpack.c.b16 %v1243, %v1235
    %v1724 = vpack.c.b16 %v1244, %v1236
    %v1725 = vpack.c.b16 %v1245, %v1237
    %v1726 = vpack.c.b16 %v1246, %v1238
    %v1727 = vpack.c.b16 %v1247, %v1239
    %v1728 = vpack.c.b16 %v1256, %v1248
    %v1729 = vpack.c.b16 %v1257, %v1249
    %v1730 = vpack.c.b16 %v1258, %v1250
    %v1731 = vpack.c.b16 %v1259, %v1251
    %v1732 = vpack.c.b16 %v1260, %v1252
    %v1733 = vpack.c.b16 %v1261, %v1253
    %v1734 = vpack.c.b16 %v1262, %v1254
    %v1735 = vpack.c.b16 %v1263, %v1255
    %v1736 = vpack.c.b16 %v1272, %v1264
    %v1737 = vpack.c.b16 %v1273, %v1265
    %v1738 = vpack.c.b16 %v1274, %v1266
    %v1739 = vpack.c.b16 %v1275, %v1267
    %v1740 = vpack.c.b16 %v1276, %v1268
    %v1741 = vpack.c.b16 %v1277, %v1269
    %v1742 = vpack.c.b16 %v1278, %v1270
    %v1743 = vpack.c.b16 %v1279, %v1271
    %v1744 = vpack.c.b16 %v1288, %v1280
    %v1745 = vpack.c.b16 %v1289, %v1281
    %v1746 = vpack.c.b16 %v1290, %v1282
    %v1747 = vpack.c.b16 %v1291, %v1283
    %v1748 = vpack.c.b16 %v1292, %v1284
    %v1749 = vpack.c.b16 %v1293, %v1285
    %v1750 = vpack.c.b16 %v1294, %v1286
    %v1751 = vpack.c.b16 %v1295, %v1287
    %v1752 = vpack.c.b16 %v1304, %v1296
    %v1753 = vpack.c.b16 %v1305, %v1297
    %v1754 = vpack.c.b16 %v1306, %v1298
    %v1755 = vpack.c.b16 %v1307, %v1299
    %v1756 = vpack.c.b16 %v1308, %v1300
    %v1757 = vpack.c.b16 %v1309, %v1301
    %v1758 = vpack.c.b16 %v1310, %v1302
    %v1759 = vpack.c.b16 %v1311, %v1303
    %v1760 = vpack.c.b16 %v1320, %v1312
    %v1761 = vpack.c.b16 %v1321, %v1313
    %v1762 = vpack.c.b16 %v1322, %v1314
    %v1763 = vpack.c.b16 %v1323, %v1315
    %v1764 = vpack.c.b16 %v1324, %v1316
    %v1765 = vpack.c.b16 %v1325, %v1317
    %v1766 = vpack.c.b16 %v1326, %v1318
    %v1767 = vpack.c.b16 %v1327, %v1319
    %v1768 = vpack.c.b16 %v1336, %v1328
    %v1769 = vpack.c.b16 %v1337, %v1329
    %v1770 = vpack.c.b16 %v1338, %v1330
    %v1771 = vpack.c.b16 %v1339, %v1331
    %v1772 = vpack.c.b16 %v1340, %v1332
    %v1773 = vpack.c.b16 %v1341, %v1333
    %v1774 = vpack.c.b16 %v1342, %v1334
    %v1775 = vpack.c.b16 %v1343, %v1335
    %v1776 = vpack.c.b16 %v1352, %v1344
    %v1777 = vpack.c.b16 %v1353, %v1345
    %v1778 = vpack.c.b16 %v1354, %v1346
    %v1779 = vpack.c.b16 %v1355, %v1347
    %v1780 = vpack.c.b16 %v1356, %v1348
    %v1781 = vpack.c.b16 %v1357, %v1349
    %v1782 = vpack.c.b16 %v1358, %v1350
    %v1783 = vpack.c.b16 %v1359, %v1351
    %v1784 = vpack.c.b16 %v1368, %v1360
    %v1785 = vpack.c.b16 %v1369, %v1361
    %v1786 = vpack.c.b16 %v1370, %v1362
    %v1787 = vpack.c.b16 %v1371, %v1363
    %v1788 = vpack.c.b16 %v1372, %v1364
    %v1789 = vpack.c.b16 %v1373, %v1365
    %v1790 = vpack.c.b16 %v1374, %v1366
    %v1791 = vpack.c.b16 %v1375, %v1367
    %v1792 = vpack.c.b16 %v1384, %v1376
    %v1793 = vpack.c.b16 %v1385, %v1377
    %v1794 = vpack.c.b16 %v1386, %v1378
    %v1795 = vpack.c.b16 %v1387, %v1379
    %v1796 = vpack.c.b16 %v1388, %v1380
    %v1797 = vpack.c.b16 %v1389, %v1381
    %v1798 = vpack.c.b16 %v1390, %v1382
    %v1799 = vpack.c.b16 %v1391, %v1383
    %v1800 = vpack.c.b16 %v1400, %v1392
    %v1801 = vpack.c.b16 %v1401, %v1393
    %v1802 = vpack.c.b16 %v1402, %v1394
    %v1803 = vpack.c.b16 %v1403, %v1395
    %v1804 = vpack.c.b16 %v1404, %v1396
    %v1805 = vpack.c.b16 %v1405, %v1397
    %v1806 = vpack.c.b16 %v1406, %v1398
    %v1807 = vpack.c.b16 %v1407, %v1399
    %v1808 = vpack.c.b16 %v1416, %v1408
    %v1809 = vpack.c.b16 %v1417, %v1409
    %v1810 = vpack.c.b16 %v1418, %v1410
    %v1811 = vpack.c.b16 %v1419, %v1411
    %v1812 = vpack.c.b16 %v1420, %v1412
    %v1813 = vpack.c.b16 %v1421, %v1413
    %v1814 = vpack.c.b16 %v1422, %v1414
    %v1815 = vpack.c.b16 %v1423, %v1415
    %v1816 = vpack.c.b16 %v1432, %v1424
    %v1817 = vpack.c.b16 %v1433, %v1425
    %v1818 = vpack.c.b16 %v1434, %v1426
    %v1819 = vpack.c.b16 %v1435, %v1427
    %v1820 = vpack.c.b16 %v1436, %v1428
    %v1821 = vpack.c.b16 %v1437, %v1429
    %v1822 = vpack.c.b16 %v1438, %v1430
    %v1823 = vpack.c.b16 %v1439, %v1431
    %v1824 = vpack.c.b16 %v1448, %v1440
    %v1825 = vpack.c.b16 %v1449, %v1441
    %v1826 = vpack.c.b16 %v1450, %v1442
    %v1827 = vpack.c.b16 %v1451, %v1443
    %v1828 = vpack.c.b16 %v1452, %v1444
    %v1829 = vpack.c.b16 %v1453, %v1445
    %v1830 = vpack.c.b16 %v1454, %v1446
    %v1831 = vpack.c.b16 %v1455, %v1447
    %v1832 = vpack.c.b16 %v1464, %v1456
    %v1833 = vpack.c.b16 %v1465, %v1457
    %v1834 = vpack.c.b16 %v1466, %v1458
    %v1835 = vpack.c.b16 %v1467, %v1459
    %v1836 = vpack.c.b16 %v1468, %v1460
    %v1837 = vpack.c.b16 %v1469, %v1461
    %v1838 = vpack.c.b16 %v1470, %v1462
    %v1839 = vpack.c.b16 %v1471, %v1463
    %v1840 = vpack.c.b16 %v1480, %v1472
    %v1841 = vpack.c.b16 %v1481, %v1473
    %v1842 = vpack.c.b16 %v1482, %v1474
    %v1843 = vpack.c.b16 %v1483, %v1475
    %v1844 = vpack.c.b16 %v1484, %v1476
    %v1845 = vpack.c.b16 %v1485, %v1477
    %v1846 = vpack.c.b16 %v1486, %v1478
    %v1847 = vpack.c.b16 %v1487, %v1479
    %v1848 = vpack.c.b16 %v1496, %v1488
    %v1849 = vpack.c.b16 %v1497, %v1489
    %v1850 = vpack.c.b16 %v1498, %v1490
    %v1851 = vpack.c.b16 %v1499, %v1491
    %v1852 = vpack.c.b16 %v1500, %v1492
    %v1853 = vpack.c.b16 %v1501, %v1493
    %v1854 = vpack.c.b16 %v1502, %v1494
    %v1855 = vpack.c.b16 %v1503, %v1495
    %v1856 = vpack.c.b16 %v1512, %v1504
    %v1857 = vpack.c.b16 %v1513, %v1505
    %v1858 = vpack.c.b16 %v1514, %v1506
    %v1859 = vpack.c.b16 %v1515, %v1507
    %v1860 = vpack.c.b16 %v1516, %v1508
    %v1861 = vpack.c.b16 %v1517, %v1509
    %v1862 = vpack.c.b16 %v1518, %v1510
    %v1863 = vpack.c.b16 %v1519, %v1511
    %v1864 = vpack.c.b16 %v1528, %v1520
    %v1865 = vpack.c.b16 %v1529, %v1521
    %v1866 = vpack.c.b16 %v1530, %v1522
    %v1867 = vpack.c.b16 %v1531, %v1523
    %v1868 = vpack.c.b16 %v1532, %v1524
    %v1869 = vpack.c.b16 %v1533, %v1525
    %v1870 = vpack.c.b16 %v1534, %v1526
    %v1871 = vpack.c.b16 %v1535, %v1527
    %v1872 = vpack.c.b16 %v1544, %v1536
    %v1873 = vpack.c.b16 %v1545, %v1537
    %v1874 = vpack.c.b16 %v1546, %v1538
    %v1875 = vpack.c.b16 %v1547, %v1539
    %v1876 = vpack.c.b16 %v1548, %v1540
    %v1877 = vpack.c.b16 %v1549, %v1541
    %v1878 = vpack.c.b16 %v1550, %v1542
    %v1879 = vpack.c.b16 %v1551, %v1543
    %v1880 = vpack.c.b16 %v1560, %v1552
    %v1881 = vpack.c.b16 %v1561, %v1553
    %v1882 = vpack.c.b16 %v1562, %v1554
    %v1883 = vpack.c.b16 %v1563, %v1555
    %v1884 = vpack.c.b16 %v1564, %v1556
    %v1885 = vpack.c.b16 %v1565, %v1557
    %v1886 = vpack.c.b16 %v1566, %v1558
    %v1887 = vpack.c.b16 %v1567, %v1559
    %2208 = vmatprep.subr.bf16.mxu0 %v1569
    %2209 = vmatpush1.bf16.msra.mxu0 %v1568
    %2210 = vmatprep.subr.bf16.mxu0 %v1577
    %2211 = vmatpush1.bf16.msra.mxu0 %v1576
    %2212 = vmatprep.subr.bf16.mxu0 %v1585
    %2213 = vmatpush1.bf16.msra.mxu0 %v1584
    %2214 = vmatprep.subr.bf16.mxu0 %v1593
    %2215 = vmatpush1.bf16.msra.mxu0 %v1592
    %2216 = vmatprep.subr.bf16.mxu0 %v1601
    %2217 = vmatpush1.bf16.msra.mxu0 %v1600
    %2218 = vmatprep.subr.bf16.mxu0 %v1609
    %2219 = vmatpush1.bf16.msra.mxu0 %v1608
    %2220 = vmatprep.subr.bf16.mxu0 %v1617
    %2221 = vmatpush1.bf16.msra.mxu0 %v1616
    %2222 = vmatprep.subr.bf16.mxu0 %v1625
    %2223 = vmatpush1.bf16.msra.mxu0 %v1624
    %2224 = vmatprep.subr.bf16.mxu0 %v1633
    %2225 = vmatpush1.bf16.msra.mxu0 %v1632
    %2226 = vmatprep.subr.bf16.mxu0 %v1641
    %2227 = vmatpush1.bf16.msra.mxu0 %v1640
    %2228 = vmatprep.subr.bf16.mxu0 %v1649
    %2229 = vmatpush1.bf16.msra.mxu0 %v1648
    %2230 = vmatprep.subr.bf16.mxu0 %v1657
    %2231 = vmatpush1.bf16.msra.mxu0 %v1656
    %2232 = vmatprep.subr.bf16.mxu0 %v1665
    %2233 = vmatpush1.bf16.msra.mxu0 %v1664
    %2234 = vmatprep.subr.bf16.mxu0 %v1673
    %2235 = vmatpush1.bf16.msra.mxu0 %v1672
    %2236 = vmatprep.subr.bf16.mxu0 %v1681
    %2237 = vmatpush1.bf16.msra.mxu0 %v1680
    %2238 = vmatprep.subr.bf16.mxu0 %v1689
    %2239 = vmatpush1.bf16.msra.mxu0 %v1688
    %2240 = vmatprep.mubr.bf16.mxu0 %v563
    %2241 = vmatmul.mubr.bf16.gmra.mrb[0].mxu0 %v562
    %v2242 = vpop.f32.mrb[0].mxu0
    %v2243 = vadd.f32 %v571, %v2242
    %v2244 = vpop.f32.mrb[0].mxu0
    %v2245 = vadd.f32 %v575, %v2244
    %v2246 = vpop.f32.mrb[0].mxu0
    %v2247 = vadd.f32 %v571, %v2246
    %v2248 = vpop.f32.mrb[0].mxu0
    %v2249 = vadd.f32 %v575, %v2248
    %2250 = vdwg.mxu0
    %2251 = vmatprep.subr.bf16.mxu0 %v1697
    %2252 = vmatpush1.bf16.msra.mxu0 %v1696
    %2253 = vmatprep.subr.bf16.mxu0 %v1705
    %2254 = vmatpush1.bf16.msra.mxu0 %v1704
    %2255 = vmatprep.subr.bf16.mxu0 %v1713
    %2256 = vmatpush1.bf16.msra.mxu0 %v1712
    %2257 = vmatprep.subr.bf16.mxu0 %v1721
    %2258 = vmatpush1.bf16.msra.mxu0 %v1720
    %2259 = vmatprep.subr.bf16.mxu0 %v1729
    %2260 = vmatpush1.bf16.msra.mxu0 %v1728
    %2261 = vmatprep.subr.bf16.mxu0 %v1737
    %2262 = vmatpush1.bf16.msra.mxu0 %v1736
    %2263 = vmatprep.subr.bf16.mxu0 %v1745
    %2264 = vmatpush1.bf16.msra.mxu0 %v1744
    %2265 = vmatprep.subr.bf16.mxu0 %v1753
    %2266 = vmatpush1.bf16.msra.mxu0 %v1752
    %2267 = vmatprep.subr.bf16.mxu0 %v1761
    %2268 = vmatpush1.bf16.msra.mxu0 %v1760
    %2269 = vmatprep.subr.bf16.mxu0 %v1769
    %2270 = vmatpush1.bf16.msra.mxu0 %v1768
    %2271 = vmatprep.subr.bf16.mxu0 %v1777
    %2272 = vmatpush1.bf16.msra.mxu0 %v1776
    %2273 = vmatprep.subr.bf16.mxu0 %v1785
    %2274 = vmatpush1.bf16.msra.mxu0 %v1784
    %2275 = vmatprep.subr.bf16.mxu0 %v1793
    %2276 = vmatpush1.bf16.msra.mxu0 %v1792
    %2277 = vmatprep.subr.bf16.mxu0 %v1801
    %2278 = vmatpush1.bf16.msra.mxu0 %v1800
    %2279 = vmatprep.subr.bf16.mxu0 %v1809
    %2280 = vmatpush1.bf16.msra.mxu0 %v1808
    %2281 = vmatprep.subr.bf16.mxu0 %v1817
    %2282 = vmatpush1.bf16.msra.mxu0 %v1816
    %2283 = vmatprep.mubr.bf16.mxu0 %v565
    %2284 = vmatmul.mubr.bf16.gmra.mrb[0].mxu0 %v564
    %v2285 = vpop.f32.mrb[0].mxu0
    %v2286 = vadd.f32 %v2243, %v2285
    %v2287 = vpop.f32.mrb[0].mxu0
    %v2288 = vadd.f32 %v2245, %v2287
    %v2289 = vpop.f32.mrb[0].mxu0
    %v2290 = vadd.f32 %v2247, %v2289
    %v2291 = vpop.f32.mrb[0].mxu0
    %v2292 = vadd.f32 %v2249, %v2291
    %2293 = vdwg.mxu0
    %2294 = vmatprep.subr.bf16.mxu0 %v1825
    %2295 = vmatpush1.bf16.msra.mxu0 %v1824
    %2296 = vmatprep.subr.bf16.mxu0 %v1833
    %2297 = vmatpush1.bf16.msra.mxu0 %v1832
    %2298 = vmatprep.subr.bf16.mxu0 %v1841
    %2299 = vmatpush1.bf16.msra.mxu0 %v1840
    %2300 = vmatprep.subr.bf16.mxu0 %v1849
    %2301 = vmatpush1.bf16.msra.mxu0 %v1848
    %2302 = vmatprep.subr.bf16.mxu0 %v1857
    %2303 = vmatpush1.bf16.msra.mxu0 %v1856
    %2304 = vmatprep.subr.bf16.mxu0 %v1865
    %2305 = vmatpush1.bf16.msra.mxu0 %v1864
    %2306 = vmatprep.subr.bf16.mxu0 %v1873
    %2307 = vmatpush1.bf16.msra.mxu0 %v1872
    %2308 = vmatprep.subr.bf16.mxu0 %v1881
    %2309 = vmatpush1.bf16.msra.mxu0 %v1880
    %2310 = vmatprep.subr.bf16.mxu0 0
    %2311 = vmatpush1.bf16.msra.mxu0 0
    %2312 = vmatprep.subr.bf16.mxu0 0
    %2313 = vmatpush1.bf16.msra.mxu0 0
    %2314 = vmatprep.subr.bf16.mxu0 0
    %2315 = vmatpush1.bf16.msra.mxu0 0
    %2316 = vmatprep.subr.bf16.mxu0 0
    %2317 = vmatpush1.bf16.msra.mxu0 0
    %2318 = vmatprep.subr.bf16.mxu0 0
    %2319 = vmatpush1.bf16.msra.mxu0 0
    %2320 = vmatprep.subr.bf16.mxu0 0
    %2321 = vmatpush1.bf16.msra.mxu0 0
    %2322 = vmatprep.subr.bf16.mxu0 0
    %2323 = vmatpush1.bf16.msra.mxu0 0
    %2324 = vmatprep.subr.bf16.mxu0 0
    %2325 = vmatpush1.bf16.msra.mxu0 0
    %2326 = vmatprep.mubr.bf16.mxu0 0
    %2327 = vmatmul.mubr.bf16.gmra.mrb[0].mxu0 %v566
    %v2328 = vpop.f32.mrb[0].mxu0
    %v2329 = vadd.f32 %v2286, %v2328
    %v2330 = vpop.f32.mrb[0].mxu0
    %v2331 = vadd.f32 %v2288, %v2330
    %v2332 = vpop.f32.mrb[0].mxu0
    %v2333 = vadd.f32 %v2290, %v2332
    %v2334 = vpop.f32.mrb[0].mxu0
    %v2335 = vadd.f32 %v2292, %v2334
    %2336 = vdwg.mxu0
    %2337 = vmatprep.subr.bf16.mxu0 %v1571
    %2338 = vmatpush1.bf16.msra.mxu0 %v1570
    %2339 = vmatprep.subr.bf16.mxu0 %v1579
    %2340 = vmatpush1.bf16.msra.mxu0 %v1578
    %2341 = vmatprep.subr.bf16.mxu0 %v1587
    %2342 = vmatpush1.bf16.msra.mxu0 %v1586
    %2343 = vmatprep.subr.bf16.mxu0 %v1595
    %2344 = vmatpush1.bf16.msra.mxu0 %v1594
    %2345 = vmatprep.subr.bf16.mxu0 %v1603
    %2346 = vmatpush1.bf16.msra.mxu0 %v1602
    %2347 = vmatprep.subr.bf16.mxu0 %v1611
    %2348 = vmatpush1.bf16.msra.mxu0 %v1610
    %2349 = vmatprep.subr.bf16.mxu0 %v1619
    %2350 = vmatpush1.bf16.msra.mxu0 %v1618
    %2351 = vmatprep.subr.bf16.mxu0 %v1627
    %2352 = vmatpush1.bf16.msra.mxu0 %v1626
    %2353 = vmatprep.subr.bf16.mxu0 %v1635
    %2354 = vmatpush1.bf16.msra.mxu0 %v1634
    %2355 = vmatprep.subr.bf16.mxu0 %v1643
    %2356 = vmatpush1.bf16.msra.mxu0 %v1642
    %2357 = vmatprep.subr.bf16.mxu0 %v1651
    %2358 = vmatpush1.bf16.msra.mxu0 %v1650
    %2359 = vmatprep.subr.bf16.mxu0 %v1659
    %2360 = vmatpush1.bf16.msra.mxu0 %v1658
    %2361 = vmatprep.subr.bf16.mxu0 %v1667
    %2362 = vmatpush1.bf16.msra.mxu0 %v1666
    %2363 = vmatprep.subr.bf16.mxu0 %v1675
    %2364 = vmatpush1.bf16.msra.mxu0 %v1674
    %2365 = vmatprep.subr.bf16.mxu0 %v1683
    %2366 = vmatpush1.bf16.msra.mxu0 %v1682
    %2367 = vmatprep.subr.bf16.mxu0 %v1691
    %2368 = vmatpush1.bf16.msra.mxu0 %v1690
    %2369 = vmatprep.mubr.bf16.mxu0 %v563
    %2370 = vmatmul.mubr.bf16.gmra.mrb[0].mxu0 %v562
    %v2371 = vpop.f32.mrb[0].mxu0
    %v2372 = vadd.f32 %v579, %v2371
    %v2373 = vpop.f32.mrb[0].mxu0
    %v2374 = vadd.f32 %v583, %v2373
    %v2375 = vpop.f32.mrb[0].mxu0
    %v2376 = vadd.f32 %v579, %v2375
    %v2377 = vpop.f32.mrb[0].mxu0
    %v2378 = vadd.f32 %v583, %v2377
    %2379 = vdwg.mxu0
    %2380 = vmatprep.subr.bf16.mxu0 %v1699
    %2381 = vmatpush1.bf16.msra.mxu0 %v1698
    %2382 = vmatprep.subr.bf16.mxu0 %v1707
    %2383 = vmatpush1.bf16.msra.mxu0 %v1706
    %2384 = vmatprep.subr.bf16.mxu0 %v1715
    %2385 = vmatpush1.bf16.msra.mxu0 %v1714
    %2386 = vmatprep.subr.bf16.mxu0 %v1723
    %2387 = vmatpush1.bf16.msra.mxu0 %v1722
    %2388 = vmatprep.subr.bf16.mxu0 %v1731
    %2389 = vmatpush1.bf16.msra.mxu0 %v1730
    %2390 = vmatprep.subr.bf16.mxu0 %v1739
    %2391 = vmatpush1.bf16.msra.mxu0 %v1738
    %2392 = vmatprep.subr.bf16.mxu0 %v1747
    %2393 = vmatpush1.bf16.msra.mxu0 %v1746
    %2394 = vmatprep.subr.bf16.mxu0 %v1755
    %2395 = vmatpush1.bf16.msra.mxu0 %v1754
    %2396 = vmatprep.subr.bf16.mxu0 %v1763
    %2397 = vmatpush1.bf16.msra.mxu0 %v1762
    %2398 = vmatprep.subr.bf16.mxu0 %v1771
    %2399 = vmatpush1.bf16.msra.mxu0 %v1770
    %2400 = vmatprep.subr.bf16.mxu0 %v1779
    %2401 = vmatpush1.bf16.msra.mxu0 %v1778
    %2402 = vmatprep.subr.bf16.mxu0 %v1787
    %2403 = vmatpush1.bf16.msra.mxu0 %v1786
    %2404 = vmatprep.subr.bf16.mxu0 %v1795
    %2405 = vmatpush1.bf16.msra.mxu0 %v1794
    %2406 = vmatprep.subr.bf16.mxu0 %v1803
    %2407 = vmatpush1.bf16.msra.mxu0 %v1802
    %2408 = vmatprep.subr.bf16.mxu0 %v1811
    %2409 = vmatpush1.bf16.msra.mxu0 %v1810
    %2410 = vmatprep.subr.bf16.mxu0 %v1819
    %2411 = vmatpush1.bf16.msra.mxu0 %v1818
    %2412 = vmatprep.mubr.bf16.mxu0 %v565
    %2413 = vmatmul.mubr.bf16.gmra.mrb[0].mxu0 %v564
    %v2414 = vpop.f32.mrb[0].mxu0
    %v2415 = vadd.f32 %v2372, %v2414
    %v2416 = vpop.f32.mrb[0].mxu0
    %v2417 = vadd.f32 %v2374, %v2416
    %v2418 = vpop.f32.mrb[0].mxu0
    %v2419 = vadd.f32 %v2376, %v2418
    %v2420 = vpop.f32.mrb[0].mxu0
    %v2421 = vadd.f32 %v2378, %v2420
    %2422 = vdwg.mxu0
    %2423 = vmatprep.subr.bf16.mxu0 %v1827
    %2424 = vmatpush1.bf16.msra.mxu0 %v1826
    %2425 = vmatprep.subr.bf16.mxu0 %v1835
    %2426 = vmatpush1.bf16.msra.mxu0 %v1834
    %2427 = vmatprep.subr.bf16.mxu0 %v1843
    %2428 = vmatpush1.bf16.msra.mxu0 %v1842
    %2429 = vmatprep.subr.bf16.mxu0 %v1851
    %2430 = vmatpush1.bf16.msra.mxu0 %v1850
    %2431 = vmatprep.subr.bf16.mxu0 %v1859
    %2432 = vmatpush1.bf16.msra.mxu0 %v1858
    %2433 = vmatprep.subr.bf16.mxu0 %v1867
    %2434 = vmatpush1.bf16.msra.mxu0 %v1866
    %2435 = vmatprep.subr.bf16.mxu0 %v1875
    %2436 = vmatpush1.bf16.msra.mxu0 %v1874
    %2437 = vmatprep.subr.bf16.mxu0 %v1883
    %2438 = vmatpush1.bf16.msra.mxu0 %v1882
    %2439 = vmatprep.subr.bf16.mxu0 0
    %2440 = vmatpush1.bf16.msra.mxu0 0
    %2441 = vmatprep.subr.bf16.mxu0 0
    %2442 = vmatpush1.bf16.msra.mxu0 0
    %2443 = vmatprep.subr.bf16.mxu0 0
    %2444 = vmatpush1.bf16.msra.mxu0 0
    %2445 = vmatprep.subr.bf16.mxu0 0
    %2446 = vmatpush1.bf16.msra.mxu0 0
    %2447 = vmatprep.subr.bf16.mxu0 0
    %2448 = vmatpush1.bf16.msra.mxu0 0
    %2449 = vmatprep.subr.bf16.mxu0 0
    %2450 = vmatpush1.bf16.msra.mxu0 0
    %2451 = vmatprep.subr.bf16.mxu0 0
    %2452 = vmatpush1.bf16.msra.mxu0 0
    %2453 = vmatprep.subr.bf16.mxu0 0
    %2454 = vmatpush1.bf16.msra.mxu0 0
    %2455 = vmatprep.mubr.bf16.mxu0 0
    %2456 = vmatmul.mubr.bf16.gmra.mrb[0].mxu0 %v566
    %v2457 = vpop.f32.mrb[0].mxu0
    %v2458 = vadd.f32 %v2415, %v2457
    %v2459 = vpop.f32.mrb[0].mxu0
    %v2460 = vadd.f32 %v2417, %v2459
    %v2461 = vpop.f32.mrb[0].mxu0
    %v2462 = vadd.f32 %v2419, %v2461
    %v2463 = vpop.f32.mrb[0].mxu0
    %v2464 = vadd.f32 %v2421, %v2463
    %2465 = vdwg.mxu0
    %2466 = vmatprep.subr.bf16.mxu0 %v1573
    %2467 = vmatpush1.bf16.msra.mxu0 %v1572
    %2468 = vmatprep.subr.bf16.mxu0 %v1581
    %2469 = vmatpush1.bf16.msra.mxu0 %v1580
    %2470 = vmatprep.subr.bf16.mxu0 %v1589
    %2471 = vmatpush1.bf16.msra.mxu0 %v1588
    %2472 = vmatprep.subr.bf16.mxu0 %v1597
    %2473 = vmatpush1.bf16.msra.mxu0 %v1596
    %2474 = vmatprep.subr.bf16.mxu0 %v1605
    %2475 = vmatpush1.bf16.msra.mxu0 %v1604
    %2476 = vmatprep.subr.bf16.mxu0 %v1613
    %2477 = vmatpush1.bf16.msra.mxu0 %v1612
    %2478 = vmatprep.subr.bf16.mxu0 %v1621
    %2479 = vmatpush1.bf16.msra.mxu0 %v1620
    %2480 = vmatprep.subr.bf16.mxu0 %v1629
    %2481 = vmatpush1.bf16.msra.mxu0 %v1628
    %2482 = vmatprep.subr.bf16.mxu0 %v1637
    %2483 = vmatpush1.bf16.msra.mxu0 %v1636
    %2484 = vmatprep.subr.bf16.mxu0 %v1645
    %2485 = vmatpush1.bf16.msra.mxu0 %v1644
    %2486 = vmatprep.subr.bf16.mxu0 %v1653
    %2487 = vmatpush1.bf16.msra.mxu0 %v1652
    %2488 = vmatprep.subr.bf16.mxu0 %v1661
    %2489 = vmatpush1.bf16.msra.mxu0 %v1660
    %2490 = vmatprep.subr.bf16.mxu0 %v1669
    %2491 = vmatpush1.bf16.msra.mxu0 %v1668
    %2492 = vmatprep.subr.bf16.mxu0 %v1677
    %2493 = vmatpush1.bf16.msra.mxu0 %v1676
    %2494 = vmatprep.subr.bf16.mxu0 %v1685
    %2495 = vmatpush1.bf16.msra.mxu0 %v1684
    %2496 = vmatprep.subr.bf16.mxu0 %v1693
    %2497 = vmatpush1.bf16.msra.mxu0 %v1692
    %2498 = vmatprep.mubr.bf16.mxu0 %v563
    %2499 = vmatmul.mubr.bf16.gmra.mrb[0].mxu0 %v562
    %v2500 = vpop.f32.mrb[0].mxu0
    %v2501 = vadd.f32 %v587, %v2500
    %v2502 = vpop.f32.mrb[0].mxu0
    %v2503 = vadd.f32 %v591, %v2502
    %v2504 = vpop.f32.mrb[0].mxu0
    %v2505 = vadd.f32 %v587, %v2504
    %v2506 = vpop.f32.mrb[0].mxu0
    %v2507 = vadd.f32 %v591, %v2506
    %2508 = vdwg.mxu0
    %2509 = vmatprep.subr.bf16.mxu0 %v1701
    %2510 = vmatpush1.bf16.msra.mxu0 %v1700
    %2511 = vmatprep.subr.bf16.mxu0 %v1709
    %2512 = vmatpush1.bf16.msra.mxu0 %v1708
    %2513 = vmatprep.subr.bf16.mxu0 %v1717
    %2514 = vmatpush1.bf16.msra.mxu0 %v1716
    %2515 = vmatprep.subr.bf16.mxu0 %v1725
    %2516 = vmatpush1.bf16.msra.mxu0 %v1724
    %2517 = vmatprep.subr.bf16.mxu0 %v1733
    %2518 = vmatpush1.bf16.msra.mxu0 %v1732
    %2519 = vmatprep.subr.bf16.mxu0 %v1741
    %2520 = vmatpush1.bf16.msra.mxu0 %v1740
    %2521 = vmatprep.subr.bf16.mxu0 %v1749
    %2522 = vmatpush1.bf16.msra.mxu0 %v1748
    %2523 = vmatprep.subr.bf16.mxu0 %v1757
    %2524 = vmatpush1.bf16.msra.mxu0 %v1756
    %2525 = vmatprep.subr.bf16.mxu0 %v1765
    %2526 = vmatpush1.bf16.msra.mxu0 %v1764
    %2527 = vmatprep.subr.bf16.mxu0 %v1773
    %2528 = vmatpush1.bf16.msra.mxu0 %v1772
    %2529 = vmatprep.subr.bf16.mxu0 %v1781
    %2530 = vmatpush1.bf16.msra.mxu0 %v1780
    %2531 = vmatprep.subr.bf16.mxu0 %v1789
    %2532 = vmatpush1.bf16.msra.mxu0 %v1788
    %2533 = vmatprep.subr.bf16.mxu0 %v1797
    %2534 = vmatpush1.bf16.msra.mxu0 %v1796
    %2535 = vmatprep.subr.bf16.mxu0 %v1805
    %2536 = vmatpush1.bf16.msra.mxu0 %v1804
    %2537 = vmatprep.subr.bf16.mxu0 %v1813
    %2538 = vmatpush1.bf16.msra.mxu0 %v1812
    %2539 = vmatprep.subr.bf16.mxu0 %v1821
    %2540 = vmatpush1.bf16.msra.mxu0 %v1820
    %2541 = vmatprep.mubr.bf16.mxu0 %v565
    %2542 = vmatmul.mubr.bf16.gmra.mrb[0].mxu0 %v564
    %v2543 = vpop.f32.mrb[0].mxu0
    %v2544 = vadd.f32 %v2501, %v2543
    %v2545 = vpop.f32.mrb[0].mxu0
    %v2546 = vadd.f32 %v2503, %v2545
    %v2547 = vpop.f32.mrb[0].mxu0
    %v2548 = vadd.f32 %v2505, %v2547
    %v2549 = vpop.f32.mrb[0].mxu0
    %v2550 = vadd.f32 %v2507, %v2549
    %2551 = vdwg.mxu0
    %2552 = vmatprep.subr.bf16.mxu0 %v1829
    %2553 = vmatpush1.bf16.msra.mxu0 %v1828
    %2554 = vmatprep.subr.bf16.mxu0 %v1837
    %2555 = vmatpush1.bf16.msra.mxu0 %v1836
    %2556 = vmatprep.subr.bf16.mxu0 %v1845
    %2557 = vmatpush1.bf16.msra.mxu0 %v1844
    %2558 = vmatprep.subr.bf16.mxu0 %v1853
    %2559 = vmatpush1.bf16.msra.mxu0 %v1852
    %2560 = vmatprep.subr.bf16.mxu0 %v1861
    %2561 = vmatpush1.bf16.msra.mxu0 %v1860
    %2562 = vmatprep.subr.bf16.mxu0 %v1869
    %2563 = vmatpush1.bf16.msra.mxu0 %v1868
    %2564 = vmatprep.subr.bf16.mxu0 %v1877
    %2565 = vmatpush1.bf16.msra.mxu0 %v1876
    %2566 = vmatprep.subr.bf16.mxu0 %v1885
    %2567 = vmatpush1.bf16.msra.mxu0 %v1884
    %2568 = vmatprep.subr.bf16.mxu0 0
    %2569 = vmatpush1.bf16.msra.mxu0 0
    %2570 = vmatprep.subr.bf16.mxu0 0
    %2571 = vmatpush1.bf16.msra.mxu0 0
    %2572 = vmatprep.subr.bf16.mxu0 0
    %2573 = vmatpush1.bf16.msra.mxu0 0
    %2574 = vmatprep.subr.bf16.mxu0 0
    %2575 = vmatpush1.bf16.msra.mxu0 0
    %2576 = vmatprep.subr.bf16.mxu0 0
    %2577 = vmatpush1.bf16.msra.mxu0 0
    %2578 = vmatprep.subr.bf16.mxu0 0
    %2579 = vmatpush1.bf16.msra.mxu0 0
    %2580 = vmatprep.subr.bf16.mxu0 0
    %2581 = vmatpush1.bf16.msra.mxu0 0
    %2582 = vmatprep.subr.bf16.mxu0 0
    %2583 = vmatpush1.bf16.msra.mxu0 0
    %2584 = vmatprep.mubr.bf16.mxu0 0
    %2585 = vmatmul.mubr.bf16.gmra.mrb[0].mxu0 %v566
    %v2586 = vpop.f32.mrb[0].mxu0
    %v2587 = vadd.f32 %v2544, %v2586
    %v2588 = vpop.f32.mrb[0].mxu0
    %v2589 = vadd.f32 %v2546, %v2588
    %v2590 = vpop.f32.mrb[0].mxu0
    %v2591 = vadd.f32 %v2548, %v2590
    %v2592 = vpop.f32.mrb[0].mxu0
    %v2593 = vadd.f32 %v2550, %v2592
    %2594 = vdwg.mxu0
    %2595 = vmatprep.subr.bf16.mxu0 %v1575
    %2596 = vmatpush1.bf16.msra.mxu0 %v1574
    %2597 = vmatprep.subr.bf16.mxu0 %v1583
    %2598 = vmatpush1.bf16.msra.mxu0 %v1582
    %2599 = vmatprep.subr.bf16.mxu0 %v1591
    %2600 = vmatpush1.bf16.msra.mxu0 %v1590
    %2601 = vmatprep.subr.bf16.mxu0 %v1599
    %2602 = vmatpush1.bf16.msra.mxu0 %v1598
    %2603 = vmatprep.subr.bf16.mxu0 %v1607
    %2604 = vmatpush1.bf16.msra.mxu0 %v1606
    %2605 = vmatprep.subr.bf16.mxu0 %v1615
    %2606 = vmatpush1.bf16.msra.mxu0 %v1614
    %2607 = vmatprep.subr.bf16.mxu0 %v1623
    %2608 = vmatpush1.bf16.msra.mxu0 %v1622
    %2609 = vmatprep.subr.bf16.mxu0 %v1631
    %2610 = vmatpush1.bf16.msra.mxu0 %v1630
    %2611 = vmatprep.subr.bf16.mxu0 %v1639
    %2612 = vmatpush1.bf16.msra.mxu0 %v1638
    %2613 = vmatprep.subr.bf16.mxu0 %v1647
    %2614 = vmatpush1.bf16.msra.mxu0 %v1646
    %2615 = vmatprep.subr.bf16.mxu0 %v1655
    %2616 = vmatpush1.bf16.msra.mxu0 %v1654
    %2617 = vmatprep.subr.bf16.mxu0 %v1663
    %2618 = vmatpush1.bf16.msra.mxu0 %v1662
    %2619 = vmatprep.subr.bf16.mxu0 %v1671
    %2620 = vmatpush1.bf16.msra.mxu0 %v1670
    %2621 = vmatprep.subr.bf16.mxu0 %v1679
    %2622 = vmatpush1.bf16.msra.mxu0 %v1678
    %2623 = vmatprep.subr.bf16.mxu0 %v1687
    %2624 = vmatpush1.bf16.msra.mxu0 %v1686
    %2625 = vmatprep.subr.bf16.mxu0 %v1695
    %2626 = vmatpush1.bf16.msra.mxu0 %v1694
    %2627 = vmatprep.mubr.bf16.mxu0 %v563
    %2628 = vmatmul.mubr.bf16.gmra.mrb[0].mxu0 %v562
    %v2629 = vpop.f32.mrb[0].mxu0
    %v2630 = vadd.f32 %v595, %v2629
    %v2631 = vpop.f32.mrb[0].mxu0
    %v2632 = vadd.f32 %v599, %v2631
    %v2633 = vpop.f32.mrb[0].mxu0
    %v2634 = vadd.f32 %v595, %v2633
    %v2635 = vpop.f32.mrb[0].mxu0
    %v2636 = vadd.f32 %v599, %v2635
    %2637 = vdwg.mxu0
    %2638 = vmatprep.subr.bf16.mxu0 %v1703
    %2639 = vmatpush1.bf16.msra.mxu0 %v1702
    %2640 = vmatprep.subr.bf16.mxu0 %v1711
    %2641 = vmatpush1.bf16.msra.mxu0 %v1710
    %2642 = vmatprep.subr.bf16.mxu0 %v1719
    %2643 = vmatpush1.bf16.msra.mxu0 %v1718
    %2644 = vmatprep.subr.bf16.mxu0 %v1727
    %2645 = vmatpush1.bf16.msra.mxu0 %v1726
    %2646 = vmatprep.subr.bf16.mxu0 %v1735
    %2647 = vmatpush1.bf16.msra.mxu0 %v1734
    %2648 = vmatprep.subr.bf16.mxu0 %v1743
    %2649 = vmatpush1.bf16.msra.mxu0 %v1742
    %2650 = vmatprep.subr.bf16.mxu0 %v1751
    %2651 = vmatpush1.bf16.msra.mxu0 %v1750
    %2652 = vmatprep.subr.bf16.mxu0 %v1759
    %2653 = vmatpush1.bf16.msra.mxu0 %v1758
    %2654 = vmatprep.subr.bf16.mxu0 %v1767
    %2655 = vmatpush1.bf16.msra.mxu0 %v1766
    %2656 = vmatprep.subr.bf16.mxu0 %v1775
    %2657 = vmatpush1.bf16.msra.mxu0 %v1774
    %2658 = vmatprep.subr.bf16.mxu0 %v1783
    %2659 = vmatpush1.bf16.msra.mxu0 %v1782
    %2660 = vmatprep.subr.bf16.mxu0 %v1791
    %2661 = vmatpush1.bf16.msra.mxu0 %v1790
    %2662 = vmatprep.subr.bf16.mxu0 %v1799
    %2663 = vmatpush1.bf16.msra.mxu0 %v1798
    %2664 = vmatprep.subr.bf16.mxu0 %v1807
    %2665 = vmatpush1.bf16.msra.mxu0 %v1806
    %2666 = vmatprep.subr.bf16.mxu0 %v1815
    %2667 = vmatpush1.bf16.msra.mxu0 %v1814
    %2668 = vmatprep.subr.bf16.mxu0 %v1823
    %2669 = vmatpush1.bf16.msra.mxu0 %v1822
    %2670 = vmatprep.mubr.bf16.mxu0 %v565
    %2671 = vmatmul.mubr.bf16.gmra.mrb[0].mxu0 %v564
    %v2672 = vpop.f32.mrb[0].mxu0
    %v2673 = vadd.f32 %v2630, %v2672
    %v2674 = vpop.f32.mrb[0].mxu0
    %v2675 = vadd.f32 %v2632, %v2674
    %v2676 = vpop.f32.mrb[0].mxu0
    %v2677 = vadd.f32 %v2634, %v2676
    %v2678 = vpop.f32.mrb[0].mxu0
    %v2679 = vadd.f32 %v2636, %v2678
    %2680 = vdwg.mxu0
    %2681 = vmatprep.subr.bf16.mxu0 %v1831
    %2682 = vmatpush1.bf16.msra.mxu0 %v1830
    %2683 = vmatprep.subr.bf16.mxu0 %v1839
    %2684 = vmatpush1.bf16.msra.mxu0 %v1838
    %2685 = vmatprep.subr.bf16.mxu0 %v1847
    %2686 = vmatpush1.bf16.msra.mxu0 %v1846
    %2687 = vmatprep.subr.bf16.mxu0 %v1855
    %2688 = vmatpush1.bf16.msra.mxu0 %v1854
    %2689 = vmatprep.subr.bf16.mxu0 %v1863
    %2690 = vmatpush1.bf16.msra.mxu0 %v1862
    %2691 = vmatprep.subr.bf16.mxu0 %v1871
    %2692 = vmatpush1.bf16.msra.mxu0 %v1870
    %2693 = vmatprep.subr.bf16.mxu0 %v1879
    %2694 = vmatpush1.bf16.msra.mxu0 %v1878
    %2695 = vmatprep.subr.bf16.mxu0 %v1887
    %2696 = vmatpush1.bf16.msra.mxu0 %v1886
    %2697 = vmatprep.subr.bf16.mxu0 0
    %2698 = vmatpush1.bf16.msra.mxu0 0
    %2699 = vmatprep.subr.bf16.mxu0 0
    %2700 = vmatpush1.bf16.msra.mxu0 0
    %2701 = vmatprep.subr.bf16.mxu0 0
    %2702 = vmatpush1.bf16.msra.mxu0 0
    %2703 = vmatprep.subr.bf16.mxu0 0
    %2704 = vmatpush1.bf16.msra.mxu0 0
    %2705 = vmatprep.subr.bf16.mxu0 0
    %2706 = vmatpush1.bf16.msra.mxu0 0
    %2707 = vmatprep.subr.bf16.mxu0 0
    %2708 = vmatpush1.bf16.msra.mxu0 0
    %2709 = vmatprep.subr.bf16.mxu0 0
    %2710 = vmatpush1.bf16.msra.mxu0 0
    %2711 = vmatprep.subr.bf16.mxu0 0
    %2712 = vmatpush1.bf16.msra.mxu0 0
    %2713 = vmatprep.mubr.bf16.mxu0 0
    %2714 = vmatmul.mubr.bf16.gmra.mrb[0].mxu0 %v566
    %v2715 = vpop.f32.mrb[0].mxu0
    %v2716 = vadd.f32 %v2673, %v2715
    %v2717 = vpop.f32.mrb[0].mxu0
    %v2718 = vadd.f32 %v2675, %v2717
    %v2719 = vpop.f32.mrb[0].mxu0
    %v2720 = vadd.f32 %v2677, %v2719
    %v2721 = vpop.f32.mrb[0].mxu0
    %v2722 = vadd.f32 %v2679, %v2721
    %2723 = vdwg.mxu0
    %v2724 = vmax.f32 %v2329, 0.0
    %v2725 = vmax.f32 %v2331, 0.0
    %v2726 = vmax.f32 %v2458, 0.0
    %v2727 = vmax.f32 %v2460, 0.0
    %v2728 = vmax.f32 %v2587, 0.0
    %v2729 = vmax.f32 %v2589, 0.0
    %v2730 = vmax.f32 %v2716, 0.0
    %v2731 = vmax.f32 %v2718, 0.0
    %v2732 = vmax.f32 %v2333, 0.0
    %v2733 = vmax.f32 %v2335, 0.0
    %v2734 = vmax.f32 %v2462, 0.0
    %v2735 = vmax.f32 %v2464, 0.0
    %v2736 = vmax.f32 %v2591, 0.0
    %v2737 = vmax.f32 %v2593, 0.0
    %v2738 = vmax.f32 %v2720, 0.0
    %v2739 = vmax.f32 %v2722, 0.0
    %v2740 = vld [vmem:[%s4] sm:$0xff]
    %v2741 = vld [vmem:[%s4 + $0x8] sm:$0xff]
    %v2742 = vld [vmem:[%s4 + $0x10] sm:$0xff]
    %v2743 = vld [vmem:[%s4 + $0x18] sm:$0xff]
    %v2744 = vld [vmem:[%s4 + $0x20] sm:$0xff]
    %v2745 = vld [vmem:[%s4 + $0x28] sm:$0xff]
    %v2746 = vld [vmem:[%s4 + $0x30] sm:$0xff]
    %v2747 = vld [vmem:[%s4 + $0x38] sm:$0xff]
    %v2748 = vld [vmem:[%s4 + $0x40] sm:$0xff]
    %v2749 = vld [vmem:[%s4 + $0x48] sm:$0xff]
    %v2750 = vld [vmem:[%s4 + $0x50] sm:$0xff]
    %v2751 = vld [vmem:[%s4 + $0x58] sm:$0xff]
    %v2752 = vld [vmem:[%s4 + $0x60] sm:$0xff]
    %v2753 = vld [vmem:[%s4 + $0x68] sm:$0xff]
    %v2754 = vld [vmem:[%s4 + $0x70] sm:$0xff]
    %v2755 = vld [vmem:[%s4 + $0x78] sm:$0xff]
    %v2756 = vld [vmem:[%s4 + $0x80] sm:$0xff]
    %v2757 = vld [vmem:[%s4 + $0x88] sm:$0xff]
    %v2758 = vld [vmem:[%s4 + $0x90] sm:$0xff]
    %v2759 = vld [vmem:[%s4 + $0x98] sm:$0xff]
    %v2760 = vld [vmem:[%s4 + $0xa0] sm:$0xff]
    %v2761 = vld [vmem:[%s4 + $0xa8] sm:$0xff]
    %v2762 = vld [vmem:[%s4 + $0xb0] sm:$0xff]
    %v2763 = vld [vmem:[%s4 + $0xb8] sm:$0xff]
    %v2764 = vld [vmem:[%s4 + $0xc0] sm:$0xff]
    %v2765 = vld [vmem:[%s4 + $0xc8] sm:$0xff]
    %v2766 = vld [vmem:[%s4 + $0xd0] sm:$0xff]
    %v2767 = vld [vmem:[%s4 + $0xd8] sm:$0xff]
    %v2768 = vld [vmem:[%s4 + $0xe0] sm:$0xff]
    %v2769 = vld [vmem:[%s4 + $0xe8] sm:$0xff]
    %v2770 = vld [vmem:[%s4 + $0xf0] sm:$0xff]
    %v2771 = vld [vmem:[%s4 + $0xf8] sm:$0xff]
    %v2772 = vld [vmem:[%s4 + $0x100] sm:$0xff]
    %v2773 = vld [vmem:[%s4 + $0x108] sm:$0xff]
    %v2774 = vld [vmem:[%s4 + $0x110] sm:$0xff]
    %v2775 = vld [vmem:[%s4 + $0x118] sm:$0xff]
    %v2776 = vld [vmem:[%s4 + $0x120] sm:$0xff]
    %v2777 = vld [vmem:[%s4 + $0x128] sm:$0xff]
    %v2778 = vld [vmem:[%s4 + $0x130] sm:$0xff]
    %v2779 = vld [vmem:[%s4 + $0x138] sm:$0xff]
    %v2780 = vld [vmem:[%s4 + $0x140] sm:$0xff]
    %v2781 = vld [vmem:[%s4 + $0x148] sm:$0xff]
    %v2782 = vld [vmem:[%s4 + $0x150] sm:$0xff]
    %v2783 = vld [vmem:[%s4 + $0x158] sm:$0xff]
    %v2784 = vld [vmem:[%s4 + $0x160] sm:$0xff]
    %v2785 = vld [vmem:[%s4 + $0x168] sm:$0xff]
    %v2786 = vld [vmem:[%s4 + $0x170] sm:$0xff]
    %v2787 = vld [vmem:[%s4 + $0x178] sm:$0xff]
    %v2788 = vld [vmem:[%s4 + $0x180] sm:$0xff]
    %v2789 = vld [vmem:[%s4 + $0x188] sm:$0xff]
    %v2790 = vld [vmem:[%s4 + $0x190] sm:$0xff]
    %v2791 = vld [vmem:[%s4 + $0x198] sm:$0xff]
    %v2792 = vld [vmem:[%s4 + $0x1a0] sm:$0xff]
    %v2793 = vld [vmem:[%s4 + $0x1a8] sm:$0xff]
    %v2794 = vld [vmem:[%s4 + $0x1b0] sm:$0xff]
    %v2795 = vld [vmem:[%s4 + $0x1b8] sm:$0xff]
    %v2796 = vld [vmem:[%s4 + $0x1c0] sm:$0xff]
    %v2797 = vld [vmem:[%s4 + $0x1c8] sm:$0xff]
    %v2798 = vld [vmem:[%s4 + $0x1d0] sm:$0xff]
    %v2799 = vld [vmem:[%s4 + $0x1d8] sm:$0xff]
    %v2800 = vld [vmem:[%s4 + $0x1e0] sm:$0xff]
    %v2801 = vld [vmem:[%s4 + $0x1e8] sm:$0xff]
    %v2802 = vld [vmem:[%s4 + $0x1f0] sm:$0xff]
    %v2803 = vld [vmem:[%s4 + $0x1f8] sm:$0xff]
    %v2804 = vld [vmem:[%s4 + $0x200] sm:$0xff]
    %v2805 = vld [vmem:[%s4 + $0x208] sm:$0xff]
    %v2806 = vld [vmem:[%s4 + $0x210] sm:$0xff]
    %v2807 = vld [vmem:[%s4 + $0x218] sm:$0xff]
    %v2808 = vld [vmem:[%s4 + $0x220] sm:$0xff]
    %v2809 = vld [vmem:[%s4 + $0x228] sm:$0xff]
    %v2810 = vld [vmem:[%s4 + $0x230] sm:$0xff]
    %v2811 = vld [vmem:[%s4 + $0x238] sm:$0xff]
    %v2812 = vld [vmem:[%s4 + $0x240] sm:$0xff]
    %v2813 = vld [vmem:[%s4 + $0x248] sm:$0xff]
    %v2814 = vld [vmem:[%s4 + $0x250] sm:$0xff]
    %v2815 = vld [vmem:[%s4 + $0x258] sm:$0xff]
    %v2816 = vld [vmem:[%s4 + $0x260] sm:$0xff]
    %v2817 = vld [vmem:[%s4 + $0x268] sm:$0xff]
    %v2818 = vld [vmem:[%s4 + $0x270] sm:$0xff]
    %v2819 = vld [vmem:[%s4 + $0x278] sm:$0xff]
    %v2820 = vld [vmem:[%s4 + $0x280] sm:$0xff]
    %v2821 = vld [vmem:[%s4 + $0x288] sm:$0xff]
    %v2822 = vld [vmem:[%s4 + $0x290] sm:$0xff]
    %v2823 = vld [vmem:[%s4 + $0x298] sm:$0xff]
    %v2824 = vld [vmem:[%s4 + $0x2a0] sm:$0xff]
    %v2825 = vld [vmem:[%s4 + $0x2a8] sm:$0xff]
    %v2826 = vld [vmem:[%s4 + $0x2b0] sm:$0xff]
    %v2827 = vld [vmem:[%s4 + $0x2b8] sm:$0xff]
    %v2828 = vld [vmem:[%s4 + $0x2c0] sm:$0xff]
    %v2829 = vld [vmem:[%s4 + $0x2c8] sm:$0xff]
    %v2830 = vld [vmem:[%s4 + $0x2d0] sm:$0xff]
    %v2831 = vld [vmem:[%s4 + $0x2d8] sm:$0xff]
    %v2832 = vld [vmem:[%s4 + $0x2e0] sm:$0xff]
    %v2833 = vld [vmem:[%s4 + $0x2e8] sm:$0xff]
    %v2834 = vld [vmem:[%s4 + $0x2f0] sm:$0xff]
    %v2835 = vld [vmem:[%s4 + $0x2f8] sm:$0xff]
    %v2836 = vld [vmem:[%s4 + $0x300] sm:$0xff]
    %v2837 = vld [vmem:[%s4 + $0x308] sm:$0xff]
    %v2838 = vld [vmem:[%s4 + $0x310] sm:$0xff]
    %v2839 = vld [vmem:[%s4 + $0x318] sm:$0xff]
    %v2840 = vld [vmem:[%s4 + $0x320] sm:$0xff]
    %v2841 = vld [vmem:[%s4 + $0x328] sm:$0xff]
    %v2842 = vld [vmem:[%s4 + $0x330] sm:$0xff]
    %v2843 = vld [vmem:[%s4 + $0x338] sm:$0xff]
    %v2844 = vld [vmem:[%s4 + $0x340] sm:$0xff]
    %v2845 = vld [vmem:[%s4 + $0x348] sm:$0xff]
    %v2846 = vld [vmem:[%s4 + $0x350] sm:$0xff]
    %v2847 = vld [vmem:[%s4 + $0x358] sm:$0xff]
    %v2848 = vld [vmem:[%s4 + $0x360] sm:$0xff]
    %v2849 = vld [vmem:[%s4 + $0x368] sm:$0xff]
    %v2850 = vld [vmem:[%s4 + $0x370] sm:$0xff]
    %v2851 = vld [vmem:[%s4 + $0x378] sm:$0xff]
    %v2852 = vld [vmem:[%s4 + $0x380] sm:$0xff]
    %v2853 = vld [vmem:[%s4 + $0x388] sm:$0xff]
    %v2854 = vld [vmem:[%s4 + $0x390] sm:$0xff]
    %v2855 = vld [vmem:[%s4 + $0x398] sm:$0xff]
    %v2856 = vld [vmem:[%s4 + $0x3a0] sm:$0xff]
    %v2857 = vld [vmem:[%s4 + $0x3a8] sm:$0xff]
    %v2858 = vld [vmem:[%s4 + $0x3b0] sm:$0xff]
    %v2859 = vld [vmem:[%s4 + $0x3b8] sm:$0xff]
    %v2860 = vld [vmem:[%s4 + $0x3c0] sm:$0xff]
    %v2861 = vld [vmem:[%s4 + $0x3c8] sm:$0xff]
    %v2862 = vld [vmem:[%s4 + $0x3d0] sm:$0xff]
    %v2863 = vld [vmem:[%s4 + $0x3d8] sm:$0xff]
    %v2864 = vld [vmem:[%s4 + $0x3e0] sm:$0xff]
    %v2865 = vld [vmem:[%s4 + $0x3e8] sm:$0xff]
    %v2866 = vld [vmem:[%s4 + $0x3f0] sm:$0xff]
    %v2867 = vld [vmem:[%s4 + $0x3f8] sm:$0xff]
    %v2868 = vld [vmem:[%s4 + $0x400] sm:$0xff]
    %v2869 = vld [vmem:[%s4 + $0x408] sm:$0xff]
    %v2870 = vld [vmem:[%s4 + $0x410] sm:$0xff]
    %v2871 = vld [vmem:[%s4 + $0x418] sm:$0xff]
    %v2872 = vld [vmem:[%s4 + $0x420] sm:$0xff]
    %v2873 = vld [vmem:[%s4 + $0x428] sm:$0xff]
    %v2874 = vld [vmem:[%s4 + $0x430] sm:$0xff]
    %v2875 = vld [vmem:[%s4 + $0x438] sm:$0xff]
    %v2876 = vld [vmem:[%s4 + $0x440] sm:$0xff]
    %v2877 = vld [vmem:[%s4 + $0x448] sm:$0xff]
    %v2878 = vld [vmem:[%s4 + $0x450] sm:$0xff]
    %v2879 = vld [vmem:[%s4 + $0x458] sm:$0xff]
    %v2880 = vld [vmem:[%s4 + $0x460] sm:$0xff]
    %v2881 = vld [vmem:[%s4 + $0x468] sm:$0xff]
    %v2882 = vld [vmem:[%s4 + $0x470] sm:$0xff]
    %v2883 = vld [vmem:[%s4 + $0x478] sm:$0xff]
    %v2884 = vld [vmem:[%s4 + $0x480] sm:$0xff]
    %v2885 = vld [vmem:[%s4 + $0x488] sm:$0xff]
    %v2886 = vld [vmem:[%s4 + $0x490] sm:$0xff]
    %v2887 = vld [vmem:[%s4 + $0x498] sm:$0xff]
    %v2888 = vld [vmem:[%s4 + $0x4a0] sm:$0xff]
    %v2889 = vld [vmem:[%s4 + $0x4a8] sm:$0xff]
    %v2890 = vld [vmem:[%s4 + $0x4b0] sm:$0xff]
    %v2891 = vld [vmem:[%s4 + $0x4b8] sm:$0xff]
    %v2892 = vld [vmem:[%s4 + $0x4c0] sm:$0xff]
    %v2893 = vld [vmem:[%s4 + $0x4c8] sm:$0xff]
    %v2894 = vld [vmem:[%s4 + $0x4d0] sm:$0xff]
    %v2895 = vld [vmem:[%s4 + $0x4d8] sm:$0xff]
    %v2896 = vld [vmem:[%s4 + $0x4e0] sm:$0xff]
    %v2897 = vld [vmem:[%s4 + $0x4e8] sm:$0xff]
    %v2898 = vld [vmem:[%s4 + $0x4f0] sm:$0xff]
    %v2899 = vld [vmem:[%s4 + $0x4f8] sm:$0xff]
    %v2900 = vld [vmem:[%s4 + $0x500] sm:$0xff]
    %v2901 = vld [vmem:[%s4 + $0x508] sm:$0xff]
    %v2902 = vld [vmem:[%s4 + $0x510] sm:$0xff]
    %v2903 = vld [vmem:[%s4 + $0x518] sm:$0xff]
    %v2904 = vld [vmem:[%s4 + $0x520] sm:$0xff]
    %v2905 = vld [vmem:[%s4 + $0x528] sm:$0xff]
    %v2906 = vld [vmem:[%s4 + $0x530] sm:$0xff]
    %v2907 = vld [vmem:[%s4 + $0x538] sm:$0xff]
    %v2908 = vld [vmem:[%s4 + $0x540] sm:$0xff]
    %v2909 = vld [vmem:[%s4 + $0x548] sm:$0xff]
    %v2910 = vld [vmem:[%s4 + $0x550] sm:$0xff]
    %v2911 = vld [vmem:[%s4 + $0x558] sm:$0xff]
    %v2912 = vld [vmem:[%s4 + $0x560] sm:$0xff]
    %v2913 = vld [vmem:[%s4 + $0x568] sm:$0xff]
    %v2914 = vld [vmem:[%s4 + $0x570] sm:$0xff]
    %v2915 = vld [vmem:[%s4 + $0x578] sm:$0xff]
    %v2916 = vld [vmem:[%s4 + $0x580] sm:$0xff]
    %v2917 = vld [vmem:[%s4 + $0x588] sm:$0xff]
    %v2918 = vld [vmem:[%s4 + $0x590] sm:$0xff]
    %v2919 = vld [vmem:[%s4 + $0x598] sm:$0xff]
    %v2920 = vld [vmem:[%s4 + $0x5a0] sm:$0xff]
    %v2921 = vld [vmem:[%s4 + $0x5a8] sm:$0xff]
    %v2922 = vld [vmem:[%s4 + $0x5b0] sm:$0xff]
    %v2923 = vld [vmem:[%s4 + $0x5b8] sm:$0xff]
    %v2924 = vld [vmem:[%s4 + $0x5c0] sm:$0xff]
    %v2925 = vld [vmem:[%s4 + $0x5c8] sm:$0xff]
    %v2926 = vld [vmem:[%s4 + $0x5d0] sm:$0xff]
    %v2927 = vld [vmem:[%s4 + $0x5d8] sm:$0xff]
    %v2928 = vld [vmem:[%s4 + $0x5e0] sm:$0xff]
    %v2929 = vld [vmem:[%s4 + $0x5e8] sm:$0xff]
    %v2930 = vld [vmem:[%s4 + $0x5f0] sm:$0xff]
    %v2931 = vld [vmem:[%s4 + $0x5f8] sm:$0xff]
    %v2932 = vld [vmem:[%s4 + $0x600] sm:$0xff]
    %v2933 = vld [vmem:[%s4 + $0x608] sm:$0xff]
    %v2934 = vld [vmem:[%s4 + $0x610] sm:$0xff]
    %v2935 = vld [vmem:[%s4 + $0x618] sm:$0xff]
    %v2936 = vld [vmem:[%s4 + $0x620] sm:$0xff]
    %v2937 = vld [vmem:[%s4 + $0x628] sm:$0xff]
    %v2938 = vld [vmem:[%s4 + $0x630] sm:$0xff]
    %v2939 = vld [vmem:[%s4 + $0x638] sm:$0xff]
    %v2940 = vld [vmem:[%s4 + $0x640] sm:$0xff]
    %v2941 = vld [vmem:[%s4 + $0x648] sm:$0xff]
    %v2942 = vld [vmem:[%s4 + $0x650] sm:$0xff]
    %v2943 = vld [vmem:[%s4 + $0x658] sm:$0xff]
    %v2944 = vld [vmem:[%s4 + $0x660] sm:$0xff]
    %v2945 = vld [vmem:[%s4 + $0x668] sm:$0xff]
    %v2946 = vld [vmem:[%s4 + $0x670] sm:$0xff]
    %v2947 = vld [vmem:[%s4 + $0x678] sm:$0xff]
    %v2948 = vld [vmem:[%s4 + $0x680] sm:$0xff]
    %v2949 = vld [vmem:[%s4 + $0x688] sm:$0xff]
    %v2950 = vld [vmem:[%s4 + $0x690] sm:$0xff]
    %v2951 = vld [vmem:[%s4 + $0x698] sm:$0xff]
    %v2952 = vld [vmem:[%s4 + $0x6a0] sm:$0xff]
    %v2953 = vld [vmem:[%s4 + $0x6a8] sm:$0xff]
    %v2954 = vld [vmem:[%s4 + $0x6b0] sm:$0xff]
    %v2955 = vld [vmem:[%s4 + $0x6b8] sm:$0xff]
    %v2956 = vld [vmem:[%s4 + $0x6c0] sm:$0xff]
    %v2957 = vld [vmem:[%s4 + $0x6c8] sm:$0xff]
    %v2958 = vld [vmem:[%s4 + $0x6d0] sm:$0xff]
    %v2959 = vld [vmem:[%s4 + $0x6d8] sm:$0xff]
    %v2960 = vld [vmem:[%s4 + $0x6e0] sm:$0xff]
    %v2961 = vld [vmem:[%s4 + $0x6e8] sm:$0xff]
    %v2962 = vld [vmem:[%s4 + $0x6f0] sm:$0xff]
    %v2963 = vld [vmem:[%s4 + $0x6f8] sm:$0xff]
    %v2964 = vld [vmem:[%s4 + $0x700] sm:$0xff]
    %v2965 = vld [vmem:[%s4 + $0x708] sm:$0xff]
    %v2966 = vld [vmem:[%s4 + $0x710] sm:$0xff]
    %v2967 = vld [vmem:[%s4 + $0x718] sm:$0xff]
    %v2968 = vld [vmem:[%s4 + $0x720] sm:$0xff]
    %v2969 = vld [vmem:[%s4 + $0x728] sm:$0xff]
    %v2970 = vld [vmem:[%s4 + $0x730] sm:$0xff]
    %v2971 = vld [vmem:[%s4 + $0x738] sm:$0xff]
    %v2972 = vld [vmem:[%s4 + $0x740] sm:$0xff]
    %v2973 = vld [vmem:[%s4 + $0x748] sm:$0xff]
    %v2974 = vld [vmem:[%s4 + $0x750] sm:$0xff]
    %v2975 = vld [vmem:[%s4 + $0x758] sm:$0xff]
    %v2976 = vld [vmem:[%s4 + $0x760] sm:$0xff]
    %v2977 = vld [vmem:[%s4 + $0x768] sm:$0xff]
    %v2978 = vld [vmem:[%s4 + $0x770] sm:$0xff]
    %v2979 = vld [vmem:[%s4 + $0x778] sm:$0xff]
    %v2980 = vld [vmem:[%s4 + $0x780] sm:$0xff]
    %v2981 = vld [vmem:[%s4 + $0x788] sm:$0xff]
    %v2982 = vld [vmem:[%s4 + $0x790] sm:$0xff]
    %v2983 = vld [vmem:[%s4 + $0x798] sm:$0xff]
    %v2984 = vld [vmem:[%s4 + $0x7a0] sm:$0xff]
    %v2985 = vld [vmem:[%s4 + $0x7a8] sm:$0xff]
    %v2986 = vld [vmem:[%s4 + $0x7b0] sm:$0xff]
    %v2987 = vld [vmem:[%s4 + $0x7b8] sm:$0xff]
    %v2988 = vld [vmem:[%s4 + $0x7c0] sm:$0xff]
    %v2989 = vld [vmem:[%s4 + $0x7c8] sm:$0xff]
    %v2990 = vld [vmem:[%s4 + $0x7d0] sm:$0xff]
    %v2991 = vld [vmem:[%s4 + $0x7d8] sm:$0xff]
    %v2992 = vld [vmem:[%s4 + $0x7e0] sm:$0xff]
    %v2993 = vld [vmem:[%s4 + $0x7e8] sm:$0xff]
    %v2994 = vld [vmem:[%s4 + $0x7f0] sm:$0xff]
    %v2995 = vld [vmem:[%s4 + $0x7f8] sm:$0xff]
    %v2996 = vld [vmem:[#allocation8] sm:$0xf]
    %v2997 = vpack.c.bf16 %v2732, %v2724
    %v2998 = vpack.c.bf16 %v2733, %v2725
    %v2999 = vpack.c.bf16 %v2734, %v2726
    %v3000 = vpack.c.bf16 %v2735, %v2727
    %v3001 = vpack.c.bf16 %v2736, %v2728
    %v3002 = vpack.c.bf16 %v2737, %v2729
    %v3003 = vpack.c.bf16 %v2738, %v2730
    %v3004 = vpack.c.bf16 %v2739, %v2731
    %v3006 = vlaneseq
    %v3007 = vshrl.u32 %v3006, 7
    %v3008 = vsub.s32 0, %v3007
    %v3009 = vrot.slane %v2996, %v3008
    %v3010 = vlaneseq
    %v3011 = vshrl.u32 %v3010, 7
    %v3012 = vsub.s32 1, %v3011
    %v3013 = vrot.slane %v2996, %v3012
    %v3014 = vlaneseq
    %v3015 = vshrl.u32 %v3014, 7
    %v3016 = vsub.s32 2, %v3015
    %v3017 = vrot.slane %v2996, %v3016
    %v3018 = vlaneseq
    %v3019 = vshrl.u32 %v3018, 7
    %v3020 = vsub.s32 3, %v3019
    %v3021 = vrot.slane %v2996, %v3020
    %v3282 = vunpack.c.l.b16 %v2740
    %v3283 = vunpack.c.h.b16 %v2740
    %v3284 = vunpack.c.l.b16 %v2741
    %v3285 = vunpack.c.h.b16 %v2741
    %v3286 = vunpack.c.l.b16 %v2742
    %v3287 = vunpack.c.h.b16 %v2742
    %v3288 = vunpack.c.l.b16 %v2743
    %v3289 = vunpack.c.h.b16 %v2743
    %v3290 = vunpack.c.l.b16 %v2744
    %v3291 = vunpack.c.h.b16 %v2744
    %v3292 = vunpack.c.l.b16 %v2745
    %v3293 = vunpack.c.h.b16 %v2745
    %v3294 = vunpack.c.l.b16 %v2746
    %v3295 = vunpack.c.h.b16 %v2746
    %v3296 = vunpack.c.l.b16 %v2747
    %v3297 = vunpack.c.h.b16 %v2747
    %v3298 = vunpack.c.l.b16 %v2748
    %v3299 = vunpack.c.h.b16 %v2748
    %v3300 = vunpack.c.l.b16 %v2749
    %v3301 = vunpack.c.h.b16 %v2749
    %v3302 = vunpack.c.l.b16 %v2750
    %v3303 = vunpack.c.h.b16 %v2750
    %v3304 = vunpack.c.l.b16 %v2751
    %v3305 = vunpack.c.h.b16 %v2751
    %v3306 = vunpack.c.l.b16 %v2752
    %v3307 = vunpack.c.h.b16 %v2752
    %v3308 = vunpack.c.l.b16 %v2753
    %v3309 = vunpack.c.h.b16 %v2753
    %v3310 = vunpack.c.l.b16 %v2754
    %v3311 = vunpack.c.h.b16 %v2754
    %v3312 = vunpack.c.l.b16 %v2755
    %v3313 = vunpack.c.h.b16 %v2755
    %v3314 = vunpack.c.l.b16 %v2756
    %v3315 = vunpack.c.h.b16 %v2756
    %v3316 = vunpack.c.l.b16 %v2757
    %v3317 = vunpack.c.h.b16 %v2757
    %v3318 = vunpack.c.l.b16 %v2758
    %v3319 = vunpack.c.h.b16 %v2758
    %v3320 = vunpack.c.l.b16 %v2759
    %v3321 = vunpack.c.h.b16 %v2759
    %v3322 = vunpack.c.l.b16 %v2760
    %v3323 = vunpack.c.h.b16 %v2760
    %v3324 = vunpack.c.l.b16 %v2761
    %v3325 = vunpack.c.h.b16 %v2761
    %v3326 = vunpack.c.l.b16 %v2762
    %v3327 = vunpack.c.h.b16 %v2762
    %v3328 = vunpack.c.l.b16 %v2763
    %v3329 = vunpack.c.h.b16 %v2763
    %v3330 = vunpack.c.l.b16 %v2764
    %v3331 = vunpack.c.h.b16 %v2764
    %v3332 = vunpack.c.l.b16 %v2765
    %v3333 = vunpack.c.h.b16 %v2765
    %v3334 = vunpack.c.l.b16 %v2766
    %v3335 = vunpack.c.h.b16 %v2766
    %v3336 = vunpack.c.l.b16 %v2767
    %v3337 = vunpack.c.h.b16 %v2767
    %v3338 = vunpack.c.l.b16 %v2768
    %v3339 = vunpack.c.h.b16 %v2768
    %v3340 = vunpack.c.l.b16 %v2769
    %v3341 = vunpack.c.h.b16 %v2769
    %v3342 = vunpack.c.l.b16 %v2770
    %v3343 = vunpack.c.h.b16 %v2770
    %v3344 = vunpack.c.l.b16 %v2771
    %v3345 = vunpack.c.h.b16 %v2771
    %v3346 = vunpack.c.l.b16 %v2772
    %v3347 = vunpack.c.h.b16 %v2772
    %v3348 = vunpack.c.l.b16 %v2773
    %v3349 = vunpack.c.h.b16 %v2773
    %v3350 = vunpack.c.l.b16 %v2774
    %v3351 = vunpack.c.h.b16 %v2774
    %v3352 = vunpack.c.l.b16 %v2775
    %v3353 = vunpack.c.h.b16 %v2775
    %v3354 = vunpack.c.l.b16 %v2776
    %v3355 = vunpack.c.h.b16 %v2776
    %v3356 = vunpack.c.l.b16 %v2777
    %v3357 = vunpack.c.h.b16 %v2777
    %v3358 = vunpack.c.l.b16 %v2778
    %v3359 = vunpack.c.h.b16 %v2778
    %v3360 = vunpack.c.l.b16 %v2779
    %v3361 = vunpack.c.h.b16 %v2779
    %v3362 = vunpack.c.l.b16 %v2780
    %v3363 = vunpack.c.h.b16 %v2780
    %v3364 = vunpack.c.l.b16 %v2781
    %v3365 = vunpack.c.h.b16 %v2781
    %v3366 = vunpack.c.l.b16 %v2782
    %v3367 = vunpack.c.h.b16 %v2782
    %v3368 = vunpack.c.l.b16 %v2783
    %v3369 = vunpack.c.h.b16 %v2783
    %v3370 = vunpack.c.l.b16 %v2784
    %v3371 = vunpack.c.h.b16 %v2784
    %v3372 = vunpack.c.l.b16 %v2785
    %v3373 = vunpack.c.h.b16 %v2785
    %v3374 = vunpack.c.l.b16 %v2786
    %v3375 = vunpack.c.h.b16 %v2786
    %v3376 = vunpack.c.l.b16 %v2787
    %v3377 = vunpack.c.h.b16 %v2787
    %v3378 = vunpack.c.l.b16 %v2788
    %v3379 = vunpack.c.h.b16 %v2788
    %v3380 = vunpack.c.l.b16 %v2789
    %v3381 = vunpack.c.h.b16 %v2789
    %v3382 = vunpack.c.l.b16 %v2790
    %v3383 = vunpack.c.h.b16 %v2790
    %v3384 = vunpack.c.l.b16 %v2791
    %v3385 = vunpack.c.h.b16 %v2791
    %v3386 = vunpack.c.l.b16 %v2792
    %v3387 = vunpack.c.h.b16 %v2792
    %v3388 = vunpack.c.l.b16 %v2793
    %v3389 = vunpack.c.h.b16 %v2793
    %v3390 = vunpack.c.l.b16 %v2794
    %v3391 = vunpack.c.h.b16 %v2794
    %v3392 = vunpack.c.l.b16 %v2795
    %v3393 = vunpack.c.h.b16 %v2795
    %v3394 = vunpack.c.l.b16 %v2796
    %v3395 = vunpack.c.h.b16 %v2796
    %v3396 = vunpack.c.l.b16 %v2797
    %v3397 = vunpack.c.h.b16 %v2797
    %v3398 = vunpack.c.l.b16 %v2798
    %v3399 = vunpack.c.h.b16 %v2798
    %v3400 = vunpack.c.l.b16 %v2799
    %v3401 = vunpack.c.h.b16 %v2799
    %v3402 = vunpack.c.l.b16 %v2800
    %v3403 = vunpack.c.h.b16 %v2800
    %v3404 = vunpack.c.l.b16 %v2801
    %v3405 = vunpack.c.h.b16 %v2801
    %v3406 = vunpack.c.l.b16 %v2802
    %v3407 = vunpack.c.h.b16 %v2802
    %v3408 = vunpack.c.l.b16 %v2803
    %v3409 = vunpack.c.h.b16 %v2803
    %v3410 = vunpack.c.l.b16 %v2804
    %v3411 = vunpack.c.h.b16 %v2804
    %v3412 = vunpack.c.l.b16 %v2805
    %v3413 = vunpack.c.h.b16 %v2805
    %v3414 = vunpack.c.l.b16 %v2806
    %v3415 = vunpack.c.h.b16 %v2806
    %v3416 = vunpack.c.l.b16 %v2807
    %v3417 = vunpack.c.h.b16 %v2807
    %v3418 = vunpack.c.l.b16 %v2808
    %v3419 = vunpack.c.h.b16 %v2808
    %v3420 = vunpack.c.l.b16 %v2809
    %v3421 = vunpack.c.h.b16 %v2809
    %v3422 = vunpack.c.l.b16 %v2810
    %v3423 = vunpack.c.h.b16 %v2810
    %v3424 = vunpack.c.l.b16 %v2811
    %v3425 = vunpack.c.h.b16 %v2811
    %v3426 = vunpack.c.l.b16 %v2812
    %v3427 = vunpack.c.h.b16 %v2812
    %v3428 = vunpack.c.l.b16 %v2813
    %v3429 = vunpack.c.h.b16 %v2813
    %v3430 = vunpack.c.l.b16 %v2814
    %v3431 = vunpack.c.h.b16 %v2814
    %v3432 = vunpack.c.l.b16 %v2815
    %v3433 = vunpack.c.h.b16 %v2815
    %v3434 = vunpack.c.l.b16 %v2816
    %v3435 = vunpack.c.h.b16 %v2816
    %v3436 = vunpack.c.l.b16 %v2817
    %v3437 = vunpack.c.h.b16 %v2817
    %v3438 = vunpack.c.l.b16 %v2818
    %v3439 = vunpack.c.h.b16 %v2818
    %v3440 = vunpack.c.l.b16 %v2819
    %v3441 = vunpack.c.h.b16 %v2819
    %v3442 = vunpack.c.l.b16 %v2820
    %v3443 = vunpack.c.h.b16 %v2820
    %v3444 = vunpack.c.l.b16 %v2821
    %v3445 = vunpack.c.h.b16 %v2821
    %v3446 = vunpack.c.l.b16 %v2822
    %v3447 = vunpack.c.h.b16 %v2822
    %v3448 = vunpack.c.l.b16 %v2823
    %v3449 = vunpack.c.h.b16 %v2823
    %v3450 = vunpack.c.l.b16 %v2824
    %v3451 = vunpack.c.h.b16 %v2824
    %v3452 = vunpack.c.l.b16 %v2825
    %v3453 = vunpack.c.h.b16 %v2825
    %v3454 = vunpack.c.l.b16 %v2826
    %v3455 = vunpack.c.h.b16 %v2826
    %v3456 = vunpack.c.l.b16 %v2827
    %v3457 = vunpack.c.h.b16 %v2827
    %v3458 = vunpack.c.l.b16 %v2828
    %v3459 = vunpack.c.h.b16 %v2828
    %v3460 = vunpack.c.l.b16 %v2829
    %v3461 = vunpack.c.h.b16 %v2829
    %v3462 = vunpack.c.l.b16 %v2830
    %v3463 = vunpack.c.h.b16 %v2830
    %v3464 = vunpack.c.l.b16 %v2831
    %v3465 = vunpack.c.h.b16 %v2831
    %v3466 = vunpack.c.l.b16 %v2832
    %v3467 = vunpack.c.h.b16 %v2832
    %v3468 = vunpack.c.l.b16 %v2833
    %v3469 = vunpack.c.h.b16 %v2833
    %v3470 = vunpack.c.l.b16 %v2834
    %v3471 = vunpack.c.h.b16 %v2834
    %v3472 = vunpack.c.l.b16 %v2835
    %v3473 = vunpack.c.h.b16 %v2835
    %v3474 = vunpack.c.l.b16 %v2836
    %v3475 = vunpack.c.h.b16 %v2836
    %v3476 = vunpack.c.l.b16 %v2837
    %v3477 = vunpack.c.h.b16 %v2837
    %v3478 = vunpack.c.l.b16 %v2838
    %v3479 = vunpack.c.h.b16 %v2838
    %v3480 = vunpack.c.l.b16 %v2839
    %v3481 = vunpack.c.h.b16 %v2839
    %v3482 = vunpack.c.l.b16 %v2840
    %v3483 = vunpack.c.h.b16 %v2840
    %v3484 = vunpack.c.l.b16 %v2841
    %v3485 = vunpack.c.h.b16 %v2841
    %v3486 = vunpack.c.l.b16 %v2842
    %v3487 = vunpack.c.h.b16 %v2842
    %v3488 = vunpack.c.l.b16 %v2843
    %v3489 = vunpack.c.h.b16 %v2843
    %v3490 = vunpack.c.l.b16 %v2844
    %v3491 = vunpack.c.h.b16 %v2844
    %v3492 = vunpack.c.l.b16 %v2845
    %v3493 = vunpack.c.h.b16 %v2845
    %v3494 = vunpack.c.l.b16 %v2846
    %v3495 = vunpack.c.h.b16 %v2846
    %v3496 = vunpack.c.l.b16 %v2847
    %v3497 = vunpack.c.h.b16 %v2847
    %v3498 = vunpack.c.l.b16 %v2848
    %v3499 = vunpack.c.h.b16 %v2848
    %v3500 = vunpack.c.l.b16 %v2849
    %v3501 = vunpack.c.h.b16 %v2849
    %v3502 = vunpack.c.l.b16 %v2850
    %v3503 = vunpack.c.h.b16 %v2850
    %v3504 = vunpack.c.l.b16 %v2851
    %v3505 = vunpack.c.h.b16 %v2851
    %v3506 = vunpack.c.l.b16 %v2852
    %v3507 = vunpack.c.h.b16 %v2852
    %v3508 = vunpack.c.l.b16 %v2853
    %v3509 = vunpack.c.h.b16 %v2853
    %v3510 = vunpack.c.l.b16 %v2854
    %v3511 = vunpack.c.h.b16 %v2854
    %v3512 = vunpack.c.l.b16 %v2855
    %v3513 = vunpack.c.h.b16 %v2855
    %v3514 = vunpack.c.l.b16 %v2856
    %v3515 = vunpack.c.h.b16 %v2856
    %v3516 = vunpack.c.l.b16 %v2857
    %v3517 = vunpack.c.h.b16 %v2857
    %v3518 = vunpack.c.l.b16 %v2858
    %v3519 = vunpack.c.h.b16 %v2858
    %v3520 = vunpack.c.l.b16 %v2859
    %v3521 = vunpack.c.h.b16 %v2859
    %v3522 = vunpack.c.l.b16 %v2860
    %v3523 = vunpack.c.h.b16 %v2860
    %v3524 = vunpack.c.l.b16 %v2861
    %v3525 = vunpack.c.h.b16 %v2861
    %v3526 = vunpack.c.l.b16 %v2862
    %v3527 = vunpack.c.h.b16 %v2862
    %v3528 = vunpack.c.l.b16 %v2863
    %v3529 = vunpack.c.h.b16 %v2863
    %v3530 = vunpack.c.l.b16 %v2864
    %v3531 = vunpack.c.h.b16 %v2864
    %v3532 = vunpack.c.l.b16 %v2865
    %v3533 = vunpack.c.h.b16 %v2865
    %v3534 = vunpack.c.l.b16 %v2866
    %v3535 = vunpack.c.h.b16 %v2866
    %v3536 = vunpack.c.l.b16 %v2867
    %v3537 = vunpack.c.h.b16 %v2867
    %v3538 = vunpack.c.l.b16 %v2868
    %v3539 = vunpack.c.h.b16 %v2868
    %v3540 = vunpack.c.l.b16 %v2869
    %v3541 = vunpack.c.h.b16 %v2869
    %v3542 = vunpack.c.l.b16 %v2870
    %v3543 = vunpack.c.h.b16 %v2870
    %v3544 = vunpack.c.l.b16 %v2871
    %v3545 = vunpack.c.h.b16 %v2871
    %v3546 = vunpack.c.l.b16 %v2872
    %v3547 = vunpack.c.h.b16 %v2872
    %v3548 = vunpack.c.l.b16 %v2873
    %v3549 = vunpack.c.h.b16 %v2873
    %v3550 = vunpack.c.l.b16 %v2874
    %v3551 = vunpack.c.h.b16 %v2874
    %v3552 = vunpack.c.l.b16 %v2875
    %v3553 = vunpack.c.h.b16 %v2875
    %v3554 = vunpack.c.l.b16 %v2876
    %v3555 = vunpack.c.h.b16 %v2876
    %v3556 = vunpack.c.l.b16 %v2877
    %v3557 = vunpack.c.h.b16 %v2877
    %v3558 = vunpack.c.l.b16 %v2878
    %v3559 = vunpack.c.h.b16 %v2878
    %v3560 = vunpack.c.l.b16 %v2879
    %v3561 = vunpack.c.h.b16 %v2879
    %v3562 = vunpack.c.l.b16 %v2880
    %v3563 = vunpack.c.h.b16 %v2880
    %v3564 = vunpack.c.l.b16 %v2881
    %v3565 = vunpack.c.h.b16 %v2881
    %v3566 = vunpack.c.l.b16 %v2882
    %v3567 = vunpack.c.h.b16 %v2882
    %v3568 = vunpack.c.l.b16 %v2883
    %v3569 = vunpack.c.h.b16 %v2883
    %v3570 = vunpack.c.l.b16 %v2884
    %v3571 = vunpack.c.h.b16 %v2884
    %v3572 = vunpack.c.l.b16 %v2885
    %v3573 = vunpack.c.h.b16 %v2885
    %v3574 = vunpack.c.l.b16 %v2886
    %v3575 = vunpack.c.h.b16 %v2886
    %v3576 = vunpack.c.l.b16 %v2887
    %v3577 = vunpack.c.h.b16 %v2887
    %v3578 = vunpack.c.l.b16 %v2888
    %v3579 = vunpack.c.h.b16 %v2888
    %v3580 = vunpack.c.l.b16 %v2889
    %v3581 = vunpack.c.h.b16 %v2889
    %v3582 = vunpack.c.l.b16 %v2890
    %v3583 = vunpack.c.h.b16 %v2890
    %v3584 = vunpack.c.l.b16 %v2891
    %v3585 = vunpack.c.h.b16 %v2891
    %v3586 = vunpack.c.l.b16 %v2892
    %v3587 = vunpack.c.h.b16 %v2892
    %v3588 = vunpack.c.l.b16 %v2893
    %v3589 = vunpack.c.h.b16 %v2893
    %v3590 = vunpack.c.l.b16 %v2894
    %v3591 = vunpack.c.h.b16 %v2894
    %v3592 = vunpack.c.l.b16 %v2895
    %v3593 = vunpack.c.h.b16 %v2895
    %v3594 = vunpack.c.l.b16 %v2896
    %v3595 = vunpack.c.h.b16 %v2896
    %v3596 = vunpack.c.l.b16 %v2897
    %v3597 = vunpack.c.h.b16 %v2897
    %v3598 = vunpack.c.l.b16 %v2898
    %v3599 = vunpack.c.h.b16 %v2898
    %v3600 = vunpack.c.l.b16 %v2899
    %v3601 = vunpack.c.h.b16 %v2899
    %v3602 = vunpack.c.l.b16 %v2900
    %v3603 = vunpack.c.h.b16 %v2900
    %v3604 = vunpack.c.l.b16 %v2901
    %v3605 = vunpack.c.h.b16 %v2901
    %v3606 = vunpack.c.l.b16 %v2902
    %v3607 = vunpack.c.h.b16 %v2902
    %v3608 = vunpack.c.l.b16 %v2903
    %v3609 = vunpack.c.h.b16 %v2903
    %v3610 = vunpack.c.l.b16 %v2904
    %v3611 = vunpack.c.h.b16 %v2904
    %v3612 = vunpack.c.l.b16 %v2905
    %v3613 = vunpack.c.h.b16 %v2905
    %v3614 = vunpack.c.l.b16 %v2906
    %v3615 = vunpack.c.h.b16 %v2906
    %v3616 = vunpack.c.l.b16 %v2907
    %v3617 = vunpack.c.h.b16 %v2907
    %v3618 = vunpack.c.l.b16 %v2908
    %v3619 = vunpack.c.h.b16 %v2908
    %v3620 = vunpack.c.l.b16 %v2909
    %v3621 = vunpack.c.h.b16 %v2909
    %v3622 = vunpack.c.l.b16 %v2910
    %v3623 = vunpack.c.h.b16 %v2910
    %v3624 = vunpack.c.l.b16 %v2911
    %v3625 = vunpack.c.h.b16 %v2911
    %v3626 = vunpack.c.l.b16 %v2912
    %v3627 = vunpack.c.h.b16 %v2912
    %v3628 = vunpack.c.l.b16 %v2913
    %v3629 = vunpack.c.h.b16 %v2913
    %v3630 = vunpack.c.l.b16 %v2914
    %v3631 = vunpack.c.h.b16 %v2914
    %v3632 = vunpack.c.l.b16 %v2915
    %v3633 = vunpack.c.h.b16 %v2915
    %v3634 = vunpack.c.l.b16 %v2916
    %v3635 = vunpack.c.h.b16 %v2916
    %v3636 = vunpack.c.l.b16 %v2917
    %v3637 = vunpack.c.h.b16 %v2917
    %v3638 = vunpack.c.l.b16 %v2918
    %v3639 = vunpack.c.h.b16 %v2918
    %v3640 = vunpack.c.l.b16 %v2919
    %v3641 = vunpack.c.h.b16 %v2919
    %v3642 = vunpack.c.l.b16 %v2920
    %v3643 = vunpack.c.h.b16 %v2920
    %v3644 = vunpack.c.l.b16 %v2921
    %v3645 = vunpack.c.h.b16 %v2921
    %v3646 = vunpack.c.l.b16 %v2922
    %v3647 = vunpack.c.h.b16 %v2922
    %v3648 = vunpack.c.l.b16 %v2923
    %v3649 = vunpack.c.h.b16 %v2923
    %v3650 = vunpack.c.l.b16 %v2924
    %v3651 = vunpack.c.h.b16 %v2924
    %v3652 = vunpack.c.l.b16 %v2925
    %v3653 = vunpack.c.h.b16 %v2925
    %v3654 = vunpack.c.l.b16 %v2926
    %v3655 = vunpack.c.h.b16 %v2926
    %v3656 = vunpack.c.l.b16 %v2927
    %v3657 = vunpack.c.h.b16 %v2927
    %v3658 = vunpack.c.l.b16 %v2928
    %v3659 = vunpack.c.h.b16 %v2928
    %v3660 = vunpack.c.l.b16 %v2929
    %v3661 = vunpack.c.h.b16 %v2929
    %v3662 = vunpack.c.l.b16 %v2930
    %v3663 = vunpack.c.h.b16 %v2930
    %v3664 = vunpack.c.l.b16 %v2931
    %v3665 = vunpack.c.h.b16 %v2931
    %v3666 = vunpack.c.l.b16 %v2932
    %v3667 = vunpack.c.h.b16 %v2932
    %v3668 = vunpack.c.l.b16 %v2933
    %v3669 = vunpack.c.h.b16 %v2933
    %v3670 = vunpack.c.l.b16 %v2934
    %v3671 = vunpack.c.h.b16 %v2934
    %v3672 = vunpack.c.l.b16 %v2935
    %v3673 = vunpack.c.h.b16 %v2935
    %v3674 = vunpack.c.l.b16 %v2936
    %v3675 = vunpack.c.h.b16 %v2936
    %v3676 = vunpack.c.l.b16 %v2937
    %v3677 = vunpack.c.h.b16 %v2937
    %v3678 = vunpack.c.l.b16 %v2938
    %v3679 = vunpack.c.h.b16 %v2938
    %v3680 = vunpack.c.l.b16 %v2939
    %v3681 = vunpack.c.h.b16 %v2939
    %v3682 = vunpack.c.l.b16 %v2940
    %v3683 = vunpack.c.h.b16 %v2940
    %v3684 = vunpack.c.l.b16 %v2941
    %v3685 = vunpack.c.h.b16 %v2941
    %v3686 = vunpack.c.l.b16 %v2942
    %v3687 = vunpack.c.h.b16 %v2942
    %v3688 = vunpack.c.l.b16 %v2943
    %v3689 = vunpack.c.h.b16 %v2943
    %v3690 = vunpack.c.l.b16 %v2944
    %v3691 = vunpack.c.h.b16 %v2944
    %v3692 = vunpack.c.l.b16 %v2945
    %v3693 = vunpack.c.h.b16 %v2945
    %v3694 = vunpack.c.l.b16 %v2946
    %v3695 = vunpack.c.h.b16 %v2946
    %v3696 = vunpack.c.l.b16 %v2947
    %v3697 = vunpack.c.h.b16 %v2947
    %v3698 = vunpack.c.l.b16 %v2948
    %v3699 = vunpack.c.h.b16 %v2948
    %v3700 = vunpack.c.l.b16 %v2949
    %v3701 = vunpack.c.h.b16 %v2949
    %v3702 = vunpack.c.l.b16 %v2950
    %v3703 = vunpack.c.h.b16 %v2950
    %v3704 = vunpack.c.l.b16 %v2951
    %v3705 = vunpack.c.h.b16 %v2951
    %v3706 = vunpack.c.l.b16 %v2952
    %v3707 = vunpack.c.h.b16 %v2952
    %v3708 = vunpack.c.l.b16 %v2953
    %v3709 = vunpack.c.h.b16 %v2953
    %v3710 = vunpack.c.l.b16 %v2954
    %v3711 = vunpack.c.h.b16 %v2954
    %v3712 = vunpack.c.l.b16 %v2955
    %v3713 = vunpack.c.h.b16 %v2955
    %v3714 = vunpack.c.l.b16 %v2956
    %v3715 = vunpack.c.h.b16 %v2956
    %v3716 = vunpack.c.l.b16 %v2957
    %v3717 = vunpack.c.h.b16 %v2957
    %v3718 = vunpack.c.l.b16 %v2958
    %v3719 = vunpack.c.h.b16 %v2958
    %v3720 = vunpack.c.l.b16 %v2959
    %v3721 = vunpack.c.h.b16 %v2959
    %v3722 = vunpack.c.l.b16 %v2960
    %v3723 = vunpack.c.h.b16 %v2960
    %v3724 = vunpack.c.l.b16 %v2961
    %v3725 = vunpack.c.h.b16 %v2961
    %v3726 = vunpack.c.l.b16 %v2962
    %v3727 = vunpack.c.h.b16 %v2962
    %v3728 = vunpack.c.l.b16 %v2963
    %v3729 = vunpack.c.h.b16 %v2963
    %v3730 = vunpack.c.l.b16 %v2964
    %v3731 = vunpack.c.h.b16 %v2964
    %v3732 = vunpack.c.l.b16 %v2965
    %v3733 = vunpack.c.h.b16 %v2965
    %v3734 = vunpack.c.l.b16 %v2966
    %v3735 = vunpack.c.h.b16 %v2966
    %v3736 = vunpack.c.l.b16 %v2967
    %v3737 = vunpack.c.h.b16 %v2967
    %v3738 = vunpack.c.l.b16 %v2968
    %v3739 = vunpack.c.h.b16 %v2968
    %v3740 = vunpack.c.l.b16 %v2969
    %v3741 = vunpack.c.h.b16 %v2969
    %v3742 = vunpack.c.l.b16 %v2970
    %v3743 = vunpack.c.h.b16 %v2970
    %v3744 = vunpack.c.l.b16 %v2971
    %v3745 = vunpack.c.h.b16 %v2971
    %v3746 = vunpack.c.l.b16 %v2972
    %v3747 = vunpack.c.h.b16 %v2972
    %v3748 = vunpack.c.l.b16 %v2973
    %v3749 = vunpack.c.h.b16 %v2973
    %v3750 = vunpack.c.l.b16 %v2974
    %v3751 = vunpack.c.h.b16 %v2974
    %v3752 = vunpack.c.l.b16 %v2975
    %v3753 = vunpack.c.h.b16 %v2975
    %v3754 = vunpack.c.l.b16 %v2976
    %v3755 = vunpack.c.h.b16 %v2976
    %v3756 = vunpack.c.l.b16 %v2977
    %v3757 = vunpack.c.h.b16 %v2977
    %v3758 = vunpack.c.l.b16 %v2978
    %v3759 = vunpack.c.h.b16 %v2978
    %v3760 = vunpack.c.l.b16 %v2979
    %v3761 = vunpack.c.h.b16 %v2979
    %v3762 = vunpack.c.l.b16 %v2980
    %v3763 = vunpack.c.h.b16 %v2980
    %v3764 = vunpack.c.l.b16 %v2981
    %v3765 = vunpack.c.h.b16 %v2981
    %v3766 = vunpack.c.l.b16 %v2982
    %v3767 = vunpack.c.h.b16 %v2982
    %v3768 = vunpack.c.l.b16 %v2983
    %v3769 = vunpack.c.h.b16 %v2983
    %v3770 = vunpack.c.l.b16 %v2984
    %v3771 = vunpack.c.h.b16 %v2984
    %v3772 = vunpack.c.l.b16 %v2985
    %v3773 = vunpack.c.h.b16 %v2985
    %v3774 = vunpack.c.l.b16 %v2986
    %v3775 = vunpack.c.h.b16 %v2986
    %v3776 = vunpack.c.l.b16 %v2987
    %v3777 = vunpack.c.h.b16 %v2987
    %v3778 = vunpack.c.l.b16 %v2988
    %v3779 = vunpack.c.h.b16 %v2988
    %v3780 = vunpack.c.l.b16 %v2989
    %v3781 = vunpack.c.h.b16 %v2989
    %v3782 = vunpack.c.l.b16 %v2990
    %v3783 = vunpack.c.h.b16 %v2990
    %v3784 = vunpack.c.l.b16 %v2991
    %v3785 = vunpack.c.h.b16 %v2991
    %v3786 = vunpack.c.l.b16 %v2992
    %v3787 = vunpack.c.h.b16 %v2992
    %v3788 = vunpack.c.l.b16 %v2993
    %v3789 = vunpack.c.h.b16 %v2993
    %v3790 = vunpack.c.l.b16 %v2994
    %v3791 = vunpack.c.h.b16 %v2994
    %v3792 = vunpack.c.l.b16 %v2995
    %v3793 = vunpack.c.h.b16 %v2995
    %v3794 = vpack.c.b16 %v3286, %v3282
    %v3795 = vpack.c.b16 %v3287, %v3283
    %v3796 = vpack.c.b16 %v3288, %v3284
    %v3797 = vpack.c.b16 %v3289, %v3285
    %v3798 = vpack.c.b16 %v3294, %v3290
    %v3799 = vpack.c.b16 %v3295, %v3291
    %v3800 = vpack.c.b16 %v3296, %v3292
    %v3801 = vpack.c.b16 %v3297, %v3293
    %v3802 = vpack.c.b16 %v3302, %v3298
    %v3803 = vpack.c.b16 %v3303, %v3299
    %v3804 = vpack.c.b16 %v3304, %v3300
    %v3805 = vpack.c.b16 %v3305, %v3301
    %v3806 = vpack.c.b16 %v3310, %v3306
    %v3807 = vpack.c.b16 %v3311, %v3307
    %v3808 = vpack.c.b16 %v3312, %v3308
    %v3809 = vpack.c.b16 %v3313, %v3309
    %v3810 = vpack.c.b16 %v3318, %v3314
    %v3811 = vpack.c.b16 %v3319, %v3315
    %v3812 = vpack.c.b16 %v3320, %v3316
    %v3813 = vpack.c.b16 %v3321, %v3317
    %v3814 = vpack.c.b16 %v3326, %v3322
    %v3815 = vpack.c.b16 %v3327, %v3323
    %v3816 = vpack.c.b16 %v3328, %v3324
    %v3817 = vpack.c.b16 %v3329, %v3325
    %v3818 = vpack.c.b16 %v3334, %v3330
    %v3819 = vpack.c.b16 %v3335, %v3331
    %v3820 = vpack.c.b16 %v3336, %v3332
    %v3821 = vpack.c.b16 %v3337, %v3333
    %v3822 = vpack.c.b16 %v3342, %v3338
    %v3823 = vpack.c.b16 %v3343, %v3339
    %v3824 = vpack.c.b16 %v3344, %v3340
    %v3825 = vpack.c.b16 %v3345, %v3341
    %v3826 = vpack.c.b16 %v3350, %v3346
    %v3827 = vpack.c.b16 %v3351, %v3347
    %v3828 = vpack.c.b16 %v3352, %v3348
    %v3829 = vpack.c.b16 %v3353, %v3349
    %v3830 = vpack.c.b16 %v3358, %v3354
    %v3831 = vpack.c.b16 %v3359, %v3355
    %v3832 = vpack.c.b16 %v3360, %v3356
    %v3833 = vpack.c.b16 %v3361, %v3357
    %v3834 = vpack.c.b16 %v3366, %v3362
    %v3835 = vpack.c.b16 %v3367, %v3363
    %v3836 = vpack.c.b16 %v3368, %v3364
    %v3837 = vpack.c.b16 %v3369, %v3365
    %v3838 = vpack.c.b16 %v3374, %v3370
    %v3839 = vpack.c.b16 %v3375, %v3371
    %v3840 = vpack.c.b16 %v3376, %v3372
    %v3841 = vpack.c.b16 %v3377, %v3373
    %v3842 = vpack.c.b16 %v3382, %v3378
    %v3843 = vpack.c.b16 %v3383, %v3379
    %v3844 = vpack.c.b16 %v3384, %v3380
    %v3845 = vpack.c.b16 %v3385, %v3381
    %v3846 = vpack.c.b16 %v3390, %v3386
    %v3847 = vpack.c.b16 %v3391, %v3387
    %v3848 = vpack.c.b16 %v3392, %v3388
    %v3849 = vpack.c.b16 %v3393, %v3389
    %v3850 = vpack.c.b16 %v3398, %v3394
    %v3851 = vpack.c.b16 %v3399, %v3395
    %v3852 = vpack.c.b16 %v3400, %v3396
    %v3853 = vpack.c.b16 %v3401, %v3397
    %v3854 = vpack.c.b16 %v3406, %v3402
    %v3855 = vpack.c.b16 %v3407, %v3403
    %v3856 = vpack.c.b16 %v3408, %v3404
    %v3857 = vpack.c.b16 %v3409, %v3405
    %v3858 = vpack.c.b16 %v3414, %v3410
    %v3859 = vpack.c.b16 %v3415, %v3411
    %v3860 = vpack.c.b16 %v3416, %v3412
    %v3861 = vpack.c.b16 %v3417, %v3413
    %v3862 = vpack.c.b16 %v3422, %v3418
    %v3863 = vpack.c.b16 %v3423, %v3419
    %v3864 = vpack.c.b16 %v3424, %v3420
    %v3865 = vpack.c.b16 %v3425, %v3421
    %v3866 = vpack.c.b16 %v3430, %v3426
    %v3867 = vpack.c.b16 %v3431, %v3427
    %v3868 = vpack.c.b16 %v3432, %v3428
    %v3869 = vpack.c.b16 %v3433, %v3429
    %v3870 = vpack.c.b16 %v3438, %v3434
    %v3871 = vpack.c.b16 %v3439, %v3435
    %v3872 = vpack.c.b16 %v3440, %v3436
    %v3873 = vpack.c.b16 %v3441, %v3437
    %v3874 = vpack.c.b16 %v3446, %v3442
    %v3875 = vpack.c.b16 %v3447, %v3443
    %v3876 = vpack.c.b16 %v3448, %v3444
    %v3877 = vpack.c.b16 %v3449, %v3445
    %v3878 = vpack.c.b16 %v3454, %v3450
    %v3879 = vpack.c.b16 %v3455, %v3451
    %v3880 = vpack.c.b16 %v3456, %v3452
    %v3881 = vpack.c.b16 %v3457, %v3453
    %v3882 = vpack.c.b16 %v3462, %v3458
    %v3883 = vpack.c.b16 %v3463, %v3459
    %v3884 = vpack.c.b16 %v3464, %v3460
    %v3885 = vpack.c.b16 %v3465, %v3461
    %v3886 = vpack.c.b16 %v3470, %v3466
    %v3887 = vpack.c.b16 %v3471, %v3467
    %v3888 = vpack.c.b16 %v3472, %v3468
    %v3889 = vpack.c.b16 %v3473, %v3469
    %v3890 = vpack.c.b16 %v3478, %v3474
    %v3891 = vpack.c.b16 %v3479, %v3475
    %v3892 = vpack.c.b16 %v3480, %v3476
    %v3893 = vpack.c.b16 %v3481, %v3477
    %v3894 = vpack.c.b16 %v3486, %v3482
    %v3895 = vpack.c.b16 %v3487, %v3483
    %v3896 = vpack.c.b16 %v3488, %v3484
    %v3897 = vpack.c.b16 %v3489, %v3485
    %v3898 = vpack.c.b16 %v3494, %v3490
    %v3899 = vpack.c.b16 %v3495, %v3491
    %v3900 = vpack.c.b16 %v3496, %v3492
    %v3901 = vpack.c.b16 %v3497, %v3493
    %v3902 = vpack.c.b16 %v3502, %v3498
    %v3903 = vpack.c.b16 %v3503, %v3499
    %v3904 = vpack.c.b16 %v3504, %v3500
    %v3905 = vpack.c.b16 %v3505, %v3501
    %v3906 = vpack.c.b16 %v3510, %v3506
    %v3907 = vpack.c.b16 %v3511, %v3507
    %v3908 = vpack.c.b16 %v3512, %v3508
    %v3909 = vpack.c.b16 %v3513, %v3509
    %v3910 = vpack.c.b16 %v3518, %v3514
    %v3911 = vpack.c.b16 %v3519, %v3515
    %v3912 = vpack.c.b16 %v3520, %v3516
    %v3913 = vpack.c.b16 %v3521, %v3517
    %v3914 = vpack.c.b16 %v3526, %v3522
    %v3915 = vpack.c.b16 %v3527, %v3523
    %v3916 = vpack.c.b16 %v3528, %v3524
    %v3917 = vpack.c.b16 %v3529, %v3525
    %v3918 = vpack.c.b16 %v3534, %v3530
    %v3919 = vpack.c.b16 %v3535, %v3531
    %v3920 = vpack.c.b16 %v3536, %v3532
    %v3921 = vpack.c.b16 %v3537, %v3533
    %v3922 = vpack.c.b16 %v3542, %v3538
    %v3923 = vpack.c.b16 %v3543, %v3539
    %v3924 = vpack.c.b16 %v3544, %v3540
    %v3925 = vpack.c.b16 %v3545, %v3541
    %v3926 = vpack.c.b16 %v3550, %v3546
    %v3927 = vpack.c.b16 %v3551, %v3547
    %v3928 = vpack.c.b16 %v3552, %v3548
    %v3929 = vpack.c.b16 %v3553, %v3549
    %v3930 = vpack.c.b16 %v3558, %v3554
    %v3931 = vpack.c.b16 %v3559, %v3555
    %v3932 = vpack.c.b16 %v3560, %v3556
    %v3933 = vpack.c.b16 %v3561, %v3557
    %v3934 = vpack.c.b16 %v3566, %v3562
    %v3935 = vpack.c.b16 %v3567, %v3563
    %v3936 = vpack.c.b16 %v3568, %v3564
    %v3937 = vpack.c.b16 %v3569, %v3565
    %v3938 = vpack.c.b16 %v3574, %v3570
    %v3939 = vpack.c.b16 %v3575, %v3571
    %v3940 = vpack.c.b16 %v3576, %v3572
    %v3941 = vpack.c.b16 %v3577, %v3573
    %v3942 = vpack.c.b16 %v3582, %v3578
    %v3943 = vpack.c.b16 %v3583, %v3579
    %v3944 = vpack.c.b16 %v3584, %v3580
    %v3945 = vpack.c.b16 %v3585, %v3581
    %v3946 = vpack.c.b16 %v3590, %v3586
    %v3947 = vpack.c.b16 %v3591, %v3587
    %v3948 = vpack.c.b16 %v3592, %v3588
    %v3949 = vpack.c.b16 %v3593, %v3589
    %v3950 = vpack.c.b16 %v3598, %v3594
    %v3951 = vpack.c.b16 %v3599, %v3595
    %v3952 = vpack.c.b16 %v3600, %v3596
    %v3953 = vpack.c.b16 %v3601, %v3597
    %v3954 = vpack.c.b16 %v3606, %v3602
    %v3955 = vpack.c.b16 %v3607, %v3603
    %v3956 = vpack.c.b16 %v3608, %v3604
    %v3957 = vpack.c.b16 %v3609, %v3605
    %v3958 = vpack.c.b16 %v3614, %v3610
    %v3959 = vpack.c.b16 %v3615, %v3611
    %v3960 = vpack.c.b16 %v3616, %v3612
    %v3961 = vpack.c.b16 %v3617, %v3613
    %v3962 = vpack.c.b16 %v3622, %v3618
    %v3963 = vpack.c.b16 %v3623, %v3619
    %v3964 = vpack.c.b16 %v3624, %v3620
    %v3965 = vpack.c.b16 %v3625, %v3621
    %v3966 = vpack.c.b16 %v3630, %v3626
    %v3967 = vpack.c.b16 %v3631, %v3627
    %v3968 = vpack.c.b16 %v3632, %v3628
    %v3969 = vpack.c.b16 %v3633, %v3629
    %v3970 = vpack.c.b16 %v3638, %v3634
    %v3971 = vpack.c.b16 %v3639, %v3635
    %v3972 = vpack.c.b16 %v3640, %v3636
    %v3973 = vpack.c.b16 %v3641, %v3637
    %v3974 = vpack.c.b16 %v3646, %v3642
    %v3975 = vpack.c.b16 %v3647, %v3643
    %v3976 = vpack.c.b16 %v3648, %v3644
    %v3977 = vpack.c.b16 %v3649, %v3645
    %v3978 = vpack.c.b16 %v3654, %v3650
    %v3979 = vpack.c.b16 %v3655, %v3651
    %v3980 = vpack.c.b16 %v3656, %v3652
    %v3981 = vpack.c.b16 %v3657, %v3653
    %v3982 = vpack.c.b16 %v3662, %v3658
    %v3983 = vpack.c.b16 %v3663, %v3659
    %v3984 = vpack.c.b16 %v3664, %v3660
    %v3985 = vpack.c.b16 %v3665, %v3661
    %v3986 = vpack.c.b16 %v3670, %v3666
    %v3987 = vpack.c.b16 %v3671, %v3667
    %v3988 = vpack.c.b16 %v3672, %v3668
    %v3989 = vpack.c.b16 %v3673, %v3669
    %v3990 = vpack.c.b16 %v3678, %v3674
    %v3991 = vpack.c.b16 %v3679, %v3675
    %v3992 = vpack.c.b16 %v3680, %v3676
    %v3993 = vpack.c.b16 %v3681, %v3677
    %v3994 = vpack.c.b16 %v3686, %v3682
    %v3995 = vpack.c.b16 %v3687, %v3683
    %v3996 = vpack.c.b16 %v3688, %v3684
    %v3997 = vpack.c.b16 %v3689, %v3685
    %v3998 = vpack.c.b16 %v3694, %v3690
    %v3999 = vpack.c.b16 %v3695, %v3691
    %v4000 = vpack.c.b16 %v3696, %v3692
    %v4001 = vpack.c.b16 %v3697, %v3693
    %v4002 = vpack.c.b16 %v3702, %v3698
    %v4003 = vpack.c.b16 %v3703, %v3699
    %v4004 = vpack.c.b16 %v3704, %v3700
    %v4005 = vpack.c.b16 %v3705, %v3701
    %v4006 = vpack.c.b16 %v3710, %v3706
    %v4007 = vpack.c.b16 %v3711, %v3707
    %v4008 = vpack.c.b16 %v3712, %v3708
    %v4009 = vpack.c.b16 %v3713, %v3709
    %v4010 = vpack.c.b16 %v3718, %v3714
    %v4011 = vpack.c.b16 %v3719, %v3715
    %v4012 = vpack.c.b16 %v3720, %v3716
    %v4013 = vpack.c.b16 %v3721, %v3717
    %v4014 = vpack.c.b16 %v3726, %v3722
    %v4015 = vpack.c.b16 %v3727, %v3723
    %v4016 = vpack.c.b16 %v3728, %v3724
    %v4017 = vpack.c.b16 %v3729, %v3725
    %v4018 = vpack.c.b16 %v3734, %v3730
    %v4019 = vpack.c.b16 %v3735, %v3731
    %v4020 = vpack.c.b16 %v3736, %v3732
    %v4021 = vpack.c.b16 %v3737, %v3733
    %v4022 = vpack.c.b16 %v3742, %v3738
    %v4023 = vpack.c.b16 %v3743, %v3739
    %v4024 = vpack.c.b16 %v3744, %v3740
    %v4025 = vpack.c.b16 %v3745, %v3741
    %v4026 = vpack.c.b16 %v3750, %v3746
    %v4027 = vpack.c.b16 %v3751, %v3747
    %v4028 = vpack.c.b16 %v3752, %v3748
    %v4029 = vpack.c.b16 %v3753, %v3749
    %v4030 = vpack.c.b16 %v3758, %v3754
    %v4031 = vpack.c.b16 %v3759, %v3755
    %v4032 = vpack.c.b16 %v3760, %v3756
    %v4033 = vpack.c.b16 %v3761, %v3757
    %v4034 = vpack.c.b16 %v3766, %v3762
    %v4035 = vpack.c.b16 %v3767, %v3763
    %v4036 = vpack.c.b16 %v3768, %v3764
    %v4037 = vpack.c.b16 %v3769, %v3765
    %v4038 = vpack.c.b16 %v3774, %v3770
    %v4039 = vpack.c.b16 %v3775, %v3771
    %v4040 = vpack.c.b16 %v3776, %v3772
    %v4041 = vpack.c.b16 %v3777, %v3773
    %v4042 = vpack.c.b16 %v3782, %v3778
    %v4043 = vpack.c.b16 %v3783, %v3779
    %v4044 = vpack.c.b16 %v3784, %v3780
    %v4045 = vpack.c.b16 %v3785, %v3781
    %v4046 = vpack.c.b16 %v3790, %v3786
    %v4047 = vpack.c.b16 %v3791, %v3787
    %v4048 = vpack.c.b16 %v3792, %v3788
    %v4049 = vpack.c.b16 %v3793, %v3789
    %4306 = vmatprep.subr.bf16.mxu0 %v3795
    %4307 = vmatpush1.bf16.msra.mxu0 %v3794
    %4308 = vmatprep.subr.bf16.mxu0 %v3799
    %4309 = vmatpush1.bf16.msra.mxu0 %v3798
    %4310 = vmatprep.subr.bf16.mxu0 %v3803
    %4311 = vmatpush1.bf16.msra.mxu0 %v3802
    %4312 = vmatprep.subr.bf16.mxu0 %v3807
    %4313 = vmatpush1.bf16.msra.mxu0 %v3806
    %4314 = vmatprep.subr.bf16.mxu0 %v3811
    %4315 = vmatpush1.bf16.msra.mxu0 %v3810
    %4316 = vmatprep.subr.bf16.mxu0 %v3815
    %4317 = vmatpush1.bf16.msra.mxu0 %v3814
    %4318 = vmatprep.subr.bf16.mxu0 %v3819
    %4319 = vmatpush1.bf16.msra.mxu0 %v3818
    %4320 = vmatprep.subr.bf16.mxu0 %v3823
    %4321 = vmatpush1.bf16.msra.mxu0 %v3822
    %4322 = vmatprep.subr.bf16.mxu0 %v3827
    %4323 = vmatpush1.bf16.msra.mxu0 %v3826
    %4324 = vmatprep.subr.bf16.mxu0 %v3831
    %4325 = vmatpush1.bf16.msra.mxu0 %v3830
    %4326 = vmatprep.subr.bf16.mxu0 %v3835
    %4327 = vmatpush1.bf16.msra.mxu0 %v3834
    %4328 = vmatprep.subr.bf16.mxu0 %v3839
    %4329 = vmatpush1.bf16.msra.mxu0 %v3838
    %4330 = vmatprep.subr.bf16.mxu0 %v3843
    %4331 = vmatpush1.bf16.msra.mxu0 %v3842
    %4332 = vmatprep.subr.bf16.mxu0 %v3847
    %4333 = vmatpush1.bf16.msra.mxu0 %v3846
    %4334 = vmatprep.subr.bf16.mxu0 %v3851
    %4335 = vmatpush1.bf16.msra.mxu0 %v3850
    %4336 = vmatprep.subr.bf16.mxu0 %v3855
    %4337 = vmatpush1.bf16.msra.mxu0 %v3854
    %4338 = vmatprep.mubr.bf16.mxu0 %v2998
    %4339 = vmatmul.mubr.bf16.gmra.mrb[0].mxu0 %v2997
    %v4340 = vpop.f32.mrb[0].mxu0
    %v4341 = vadd.f32 %v3009, %v4340
    %v4342 = vpop.f32.mrb[0].mxu0
    %v4343 = vadd.f32 %v3013, %v4342
    %v4344 = vpop.f32.mrb[0].mxu0
    %v4345 = vadd.f32 %v3009, %v4344
    %v4346 = vpop.f32.mrb[0].mxu0
    %v4347 = vadd.f32 %v3013, %v4346
    %4348 = vdwg.mxu0
    %4349 = vmatprep.subr.bf16.mxu0 %v3859
    %4350 = vmatpush1.bf16.msra.mxu0 %v3858
    %4351 = vmatprep.subr.bf16.mxu0 %v3863
    %4352 = vmatpush1.bf16.msra.mxu0 %v3862
    %4353 = vmatprep.subr.bf16.mxu0 %v3867
    %4354 = vmatpush1.bf16.msra.mxu0 %v3866
    %4355 = vmatprep.subr.bf16.mxu0 %v3871
    %4356 = vmatpush1.bf16.msra.mxu0 %v3870
    %4357 = vmatprep.subr.bf16.mxu0 %v3875
    %4358 = vmatpush1.bf16.msra.mxu0 %v3874
    %4359 = vmatprep.subr.bf16.mxu0 %v3879
    %4360 = vmatpush1.bf16.msra.mxu0 %v3878
    %4361 = vmatprep.subr.bf16.mxu0 %v3883
    %4362 = vmatpush1.bf16.msra.mxu0 %v3882
    %4363 = vmatprep.subr.bf16.mxu0 %v3887
    %4364 = vmatpush1.bf16.msra.mxu0 %v3886
    %4365 = vmatprep.subr.bf16.mxu0 %v3891
    %4366 = vmatpush1.bf16.msra.mxu0 %v3890
    %4367 = vmatprep.subr.bf16.mxu0 %v3895
    %4368 = vmatpush1.bf16.msra.mxu0 %v3894
    %4369 = vmatprep.subr.bf16.mxu0 %v3899
    %4370 = vmatpush1.bf16.msra.mxu0 %v3898
    %4371 = vmatprep.subr.bf16.mxu0 %v3903
    %4372 = vmatpush1.bf16.msra.mxu0 %v3902
    %4373 = vmatprep.subr.bf16.mxu0 %v3907
    %4374 = vmatpush1.bf16.msra.mxu0 %v3906
    %4375 = vmatprep.subr.bf16.mxu0 %v3911
    %4376 = vmatpush1.bf16.msra.mxu0 %v3910
    %4377 = vmatprep.subr.bf16.mxu0 %v3915
    %4378 = vmatpush1.bf16.msra.mxu0 %v3914
    %4379 = vmatprep.subr.bf16.mxu0 %v3919
    %4380 = vmatpush1.bf16.msra.mxu0 %v3918
    %4381 = vmatprep.mubr.bf16.mxu0 %v3000
    %4382 = vmatmul.mubr.bf16.gmra.mrb[0].mxu0 %v2999
    %v4383 = vpop.f32.mrb[0].mxu0
    %v4384 = vadd.f32 %v4341, %v4383
    %v4385 = vpop.f32.mrb[0].mxu0
    %v4386 = vadd.f32 %v4343, %v4385
    %v4387 = vpop.f32.mrb[0].mxu0
    %v4388 = vadd.f32 %v4345, %v4387
    %v4389 = vpop.f32.mrb[0].mxu0
    %v4390 = vadd.f32 %v4347, %v4389
    %4391 = vdwg.mxu0
    %4392 = vmatprep.subr.bf16.mxu0 %v3923
    %4393 = vmatpush1.bf16.msra.mxu0 %v3922
    %4394 = vmatprep.subr.bf16.mxu0 %v3927
    %4395 = vmatpush1.bf16.msra.mxu0 %v3926
    %4396 = vmatprep.subr.bf16.mxu0 %v3931
    %4397 = vmatpush1.bf16.msra.mxu0 %v3930
    %4398 = vmatprep.subr.bf16.mxu0 %v3935
    %4399 = vmatpush1.bf16.msra.mxu0 %v3934
    %4400 = vmatprep.subr.bf16.mxu0 %v3939
    %4401 = vmatpush1.bf16.msra.mxu0 %v3938
    %4402 = vmatprep.subr.bf16.mxu0 %v3943
    %4403 = vmatpush1.bf16.msra.mxu0 %v3942
    %4404 = vmatprep.subr.bf16.mxu0 %v3947
    %4405 = vmatpush1.bf16.msra.mxu0 %v3946
    %4406 = vmatprep.subr.bf16.mxu0 %v3951
    %4407 = vmatpush1.bf16.msra.mxu0 %v3950
    %4408 = vmatprep.subr.bf16.mxu0 %v3955
    %4409 = vmatpush1.bf16.msra.mxu0 %v3954
    %4410 = vmatprep.subr.bf16.mxu0 %v3959
    %4411 = vmatpush1.bf16.msra.mxu0 %v3958
    %4412 = vmatprep.subr.bf16.mxu0 %v3963
    %4413 = vmatpush1.bf16.msra.mxu0 %v3962
    %4414 = vmatprep.subr.bf16.mxu0 %v3967
    %4415 = vmatpush1.bf16.msra.mxu0 %v3966
    %4416 = vmatprep.subr.bf16.mxu0 %v3971
    %4417 = vmatpush1.bf16.msra.mxu0 %v3970
    %4418 = vmatprep.subr.bf16.mxu0 %v3975
    %4419 = vmatpush1.bf16.msra.mxu0 %v3974
    %4420 = vmatprep.subr.bf16.mxu0 %v3979
    %4421 = vmatpush1.bf16.msra.mxu0 %v3978
    %4422 = vmatprep.subr.bf16.mxu0 %v3983
    %4423 = vmatpush1.bf16.msra.mxu0 %v3982
    %4424 = vmatprep.mubr.bf16.mxu0 %v3002
    %4425 = vmatmul.mubr.bf16.gmra.mrb[0].mxu0 %v3001
    %v4426 = vpop.f32.mrb[0].mxu0
    %v4427 = vadd.f32 %v4384, %v4426
    %v4428 = vpop.f32.mrb[0].mxu0
    %v4429 = vadd.f32 %v4386, %v4428
    %v4430 = vpop.f32.mrb[0].mxu0
    %v4431 = vadd.f32 %v4388, %v4430
    %v4432 = vpop.f32.mrb[0].mxu0
    %v4433 = vadd.f32 %v4390, %v4432
    %4434 = vdwg.mxu0
    %4435 = vmatprep.subr.bf16.mxu0 %v3987
    %4436 = vmatpush1.bf16.msra.mxu0 %v3986
    %4437 = vmatprep.subr.bf16.mxu0 %v3991
    %4438 = vmatpush1.bf16.msra.mxu0 %v3990
    %4439 = vmatprep.subr.bf16.mxu0 %v3995
    %4440 = vmatpush1.bf16.msra.mxu0 %v3994
    %4441 = vmatprep.subr.bf16.mxu0 %v3999
    %4442 = vmatpush1.bf16.msra.mxu0 %v3998
    %4443 = vmatprep.subr.bf16.mxu0 %v4003
    %4444 = vmatpush1.bf16.msra.mxu0 %v4002
    %4445 = vmatprep.subr.bf16.mxu0 %v4007
    %4446 = vmatpush1.bf16.msra.mxu0 %v4006
    %4447 = vmatprep.subr.bf16.mxu0 %v4011
    %4448 = vmatpush1.bf16.msra.mxu0 %v4010
    %4449 = vmatprep.subr.bf16.mxu0 %v4015
    %4450 = vmatpush1.bf16.msra.mxu0 %v4014
    %4451 = vmatprep.subr.bf16.mxu0 %v4019
    %4452 = vmatpush1.bf16.msra.mxu0 %v4018
    %4453 = vmatprep.subr.bf16.mxu0 %v4023
    %4454 = vmatpush1.bf16.msra.mxu0 %v4022
    %4455 = vmatprep.subr.bf16.mxu0 %v4027
    %4456 = vmatpush1.bf16.msra.mxu0 %v4026
    %4457 = vmatprep.subr.bf16.mxu0 %v4031
    %4458 = vmatpush1.bf16.msra.mxu0 %v4030
    %4459 = vmatprep.subr.bf16.mxu0 %v4035
    %4460 = vmatpush1.bf16.msra.mxu0 %v4034
    %4461 = vmatprep.subr.bf16.mxu0 %v4039
    %4462 = vmatpush1.bf16.msra.mxu0 %v4038
    %4463 = vmatprep.subr.bf16.mxu0 %v4043
    %4464 = vmatpush1.bf16.msra.mxu0 %v4042
    %4465 = vmatprep.subr.bf16.mxu0 %v4047
    %4466 = vmatpush1.bf16.msra.mxu0 %v4046
    %4467 = vmatprep.mubr.bf16.mxu0 %v3004
    %4468 = vmatmul.mubr.bf16.gmra.mrb[0].mxu0 %v3003
    %v4469 = vpop.f32.mrb[0].mxu0
    %v4470 = vadd.f32 %v4427, %v4469
    %v4471 = vpop.f32.mrb[0].mxu0
    %v4472 = vadd.f32 %v4429, %v4471
    %v4473 = vpop.f32.mrb[0].mxu0
    %v4474 = vadd.f32 %v4431, %v4473
    %v4475 = vpop.f32.mrb[0].mxu0
    %v4476 = vadd.f32 %v4433, %v4475
    %4477 = vdwg.mxu0
    %4478 = vmatprep.subr.bf16.mxu0 %v3797
    %4479 = vmatpush1.bf16.msra.mxu0 %v3796
    %4480 = vmatprep.subr.bf16.mxu0 %v3801
    %4481 = vmatpush1.bf16.msra.mxu0 %v3800
    %4482 = vmatprep.subr.bf16.mxu0 %v3805
    %4483 = vmatpush1.bf16.msra.mxu0 %v3804
    %4484 = vmatprep.subr.bf16.mxu0 %v3809
    %4485 = vmatpush1.bf16.msra.mxu0 %v3808
    %4486 = vmatprep.subr.bf16.mxu0 %v3813
    %4487 = vmatpush1.bf16.msra.mxu0 %v3812
    %4488 = vmatprep.subr.bf16.mxu0 %v3817
    %4489 = vmatpush1.bf16.msra.mxu0 %v3816
    %4490 = vmatprep.subr.bf16.mxu0 %v3821
    %4491 = vmatpush1.bf16.msra.mxu0 %v3820
    %4492 = vmatprep.subr.bf16.mxu0 %v3825
    %4493 = vmatpush1.bf16.msra.mxu0 %v3824
    %4494 = vmatprep.subr.bf16.mxu0 %v3829
    %4495 = vmatpush1.bf16.msra.mxu0 %v3828
    %4496 = vmatprep.subr.bf16.mxu0 %v3833
    %4497 = vmatpush1.bf16.msra.mxu0 %v3832
    %4498 = vmatprep.subr.bf16.mxu0 %v3837
    %4499 = vmatpush1.bf16.msra.mxu0 %v3836
    %4500 = vmatprep.subr.bf16.mxu0 %v3841
    %4501 = vmatpush1.bf16.msra.mxu0 %v3840
    %4502 = vmatprep.subr.bf16.mxu0 %v3845
    %4503 = vmatpush1.bf16.msra.mxu0 %v3844
    %4504 = vmatprep.subr.bf16.mxu0 %v3849
    %4505 = vmatpush1.bf16.msra.mxu0 %v3848
    %4506 = vmatprep.subr.bf16.mxu0 %v3853
    %4507 = vmatpush1.bf16.msra.mxu0 %v3852
    %4508 = vmatprep.subr.bf16.mxu0 %v3857
    %4509 = vmatpush1.bf16.msra.mxu0 %v3856
    %4510 = vmatprep.mubr.bf16.mxu0 %v2998
    %4511 = vmatmul.mubr.bf16.gmra.mrb[0].mxu0 %v2997
    %v4512 = vpop.f32.mrb[0].mxu0
    %v4513 = vadd.f32 %v3017, %v4512
    %v4514 = vpop.f32.mrb[0].mxu0
    %v4515 = vadd.f32 %v3021, %v4514
    %v4516 = vpop.f32.mrb[0].mxu0
    %v4517 = vadd.f32 %v3017, %v4516
    %v4518 = vpop.f32.mrb[0].mxu0
    %v4519 = vadd.f32 %v3021, %v4518
    %4520 = vdwg.mxu0
    %4521 = vmatprep.subr.bf16.mxu0 %v3861
    %4522 = vmatpush1.bf16.msra.mxu0 %v3860
    %4523 = vmatprep.subr.bf16.mxu0 %v3865
    %4524 = vmatpush1.bf16.msra.mxu0 %v3864
    %4525 = vmatprep.subr.bf16.mxu0 %v3869
    %4526 = vmatpush1.bf16.msra.mxu0 %v3868
    %4527 = vmatprep.subr.bf16.mxu0 %v3873
    %4528 = vmatpush1.bf16.msra.mxu0 %v3872
    %4529 = vmatprep.subr.bf16.mxu0 %v3877
    %4530 = vmatpush1.bf16.msra.mxu0 %v3876
    %4531 = vmatprep.subr.bf16.mxu0 %v3881
    %4532 = vmatpush1.bf16.msra.mxu0 %v3880
    %4533 = vmatprep.subr.bf16.mxu0 %v3885
    %4534 = vmatpush1.bf16.msra.mxu0 %v3884
    %4535 = vmatprep.subr.bf16.mxu0 %v3889
    %4536 = vmatpush1.bf16.msra.mxu0 %v3888
    %4537 = vmatprep.subr.bf16.mxu0 %v3893
    %4538 = vmatpush1.bf16.msra.mxu0 %v3892
    %4539 = vmatprep.subr.bf16.mxu0 %v3897
    %4540 = vmatpush1.bf16.msra.mxu0 %v3896
    %4541 = vmatprep.subr.bf16.mxu0 %v3901
    %4542 = vmatpush1.bf16.msra.mxu0 %v3900
    %4543 = vmatprep.subr.bf16.mxu0 %v3905
    %4544 = vmatpush1.bf16.msra.mxu0 %v3904
    %4545 = vmatprep.subr.bf16.mxu0 %v3909
    %4546 = vmatpush1.bf16.msra.mxu0 %v3908
    %4547 = vmatprep.subr.bf16.mxu0 %v3913
    %4548 = vmatpush1.bf16.msra.mxu0 %v3912
    %4549 = vmatprep.subr.bf16.mxu0 %v3917
    %4550 = vmatpush1.bf16.msra.mxu0 %v3916
    %4551 = vmatprep.subr.bf16.mxu0 %v3921
    %4552 = vmatpush1.bf16.msra.mxu0 %v3920
    %4553 = vmatprep.mubr.bf16.mxu0 %v3000
    %4554 = vmatmul.mubr.bf16.gmra.mrb[0].mxu0 %v2999
    %v4555 = vpop.f32.mrb[0].mxu0
    %v4556 = vadd.f32 %v4513, %v4555
    %v4557 = vpop.f32.mrb[0].mxu0
    %v4558 = vadd.f32 %v4515, %v4557
    %v4559 = vpop.f32.mrb[0].mxu0
    %v4560 = vadd.f32 %v4517, %v4559
    %v4561 = vpop.f32.mrb[0].mxu0
    %v4562 = vadd.f32 %v4519, %v4561
    %4563 = vdwg.mxu0
    %4564 = vmatprep.subr.bf16.mxu0 %v3925
    %4565 = vmatpush1.bf16.msra.mxu0 %v3924
    %4566 = vmatprep.subr.bf16.mxu0 %v3929
    %4567 = vmatpush1.bf16.msra.mxu0 %v3928
    %4568 = vmatprep.subr.bf16.mxu0 %v3933
    %4569 = vmatpush1.bf16.msra.mxu0 %v3932
    %4570 = vmatprep.subr.bf16.mxu0 %v3937
    %4571 = vmatpush1.bf16.msra.mxu0 %v3936
    %4572 = vmatprep.subr.bf16.mxu0 %v3941
    %4573 = vmatpush1.bf16.msra.mxu0 %v3940
    %4574 = vmatprep.subr.bf16.mxu0 %v3945
    %4575 = vmatpush1.bf16.msra.mxu0 %v3944
    %4576 = vmatprep.subr.bf16.mxu0 %v3949
    %4577 = vmatpush1.bf16.msra.mxu0 %v3948
    %4578 = vmatprep.subr.bf16.mxu0 %v3953
    %4579 = vmatpush1.bf16.msra.mxu0 %v3952
    %4580 = vmatprep.subr.bf16.mxu0 %v3957
    %4581 = vmatpush1.bf16.msra.mxu0 %v3956
    %4582 = vmatprep.subr.bf16.mxu0 %v3961
    %4583 = vmatpush1.bf16.msra.mxu0 %v3960
    %4584 = vmatprep.subr.bf16.mxu0 %v3965
    %4585 = vmatpush1.bf16.msra.mxu0 %v3964
    %4586 = vmatprep.subr.bf16.mxu0 %v3969
    %4587 = vmatpush1.bf16.msra.mxu0 %v3968
    %4588 = vmatprep.subr.bf16.mxu0 %v3973
    %4589 = vmatpush1.bf16.msra.mxu0 %v3972
    %4590 = vmatprep.subr.bf16.mxu0 %v3977
    %4591 = vmatpush1.bf16.msra.mxu0 %v3976
    %4592 = vmatprep.subr.bf16.mxu0 %v3981
    %4593 = vmatpush1.bf16.msra.mxu0 %v3980
    %4594 = vmatprep.subr.bf16.mxu0 %v3985
    %4595 = vmatpush1.bf16.msra.mxu0 %v3984
    %4596 = vmatprep.mubr.bf16.mxu0 %v3002
    %4597 = vmatmul.mubr.bf16.gmra.mrb[0].mxu0 %v3001
    %v4598 = vpop.f32.mrb[0].mxu0
    %v4599 = vadd.f32 %v4556, %v4598
    %v4600 = vpop.f32.mrb[0].mxu0
    %v4601 = vadd.f32 %v4558, %v4600
    %v4602 = vpop.f32.mrb[0].mxu0
    %v4603 = vadd.f32 %v4560, %v4602
    %v4604 = vpop.f32.mrb[0].mxu0
    %v4605 = vadd.f32 %v4562, %v4604
    %4606 = vdwg.mxu0
    %4607 = vmatprep.subr.bf16.mxu0 %v3989
    %4608 = vmatpush1.bf16.msra.mxu0 %v3988
    %4609 = vmatprep.subr.bf16.mxu0 %v3993
    %4610 = vmatpush1.bf16.msra.mxu0 %v3992
    %4611 = vmatprep.subr.bf16.mxu0 %v3997
    %4612 = vmatpush1.bf16.msra.mxu0 %v3996
    %4613 = vmatprep.subr.bf16.mxu0 %v4001
    %4614 = vmatpush1.bf16.msra.mxu0 %v4000
    %4615 = vmatprep.subr.bf16.mxu0 %v4005
    %4616 = vmatpush1.bf16.msra.mxu0 %v4004
    %4617 = vmatprep.subr.bf16.mxu0 %v4009
    %4618 = vmatpush1.bf16.msra.mxu0 %v4008
    %4619 = vmatprep.subr.bf16.mxu0 %v4013
    %4620 = vmatpush1.bf16.msra.mxu0 %v4012
    %4621 = vmatprep.subr.bf16.mxu0 %v4017
    %4622 = vmatpush1.bf16.msra.mxu0 %v4016
    %4623 = vmatprep.subr.bf16.mxu0 %v4021
    %4624 = vmatpush1.bf16.msra.mxu0 %v4020
    %4625 = vmatprep.subr.bf16.mxu0 %v4025
    %4626 = vmatpush1.bf16.msra.mxu0 %v4024
    %4627 = vmatprep.subr.bf16.mxu0 %v4029
    %4628 = vmatpush1.bf16.msra.mxu0 %v4028
    %4629 = vmatprep.subr.bf16.mxu0 %v4033
    %4630 = vmatpush1.bf16.msra.mxu0 %v4032
    %4631 = vmatprep.subr.bf16.mxu0 %v4037
    %4632 = vmatpush1.bf16.msra.mxu0 %v4036
    %4633 = vmatprep.subr.bf16.mxu0 %v4041
    %4634 = vmatpush1.bf16.msra.mxu0 %v4040
    %4635 = vmatprep.subr.bf16.mxu0 %v4045
    %4636 = vmatpush1.bf16.msra.mxu0 %v4044
    %4637 = vmatprep.subr.bf16.mxu0 %v4049
    %4638 = vmatpush1.bf16.msra.mxu0 %v4048
    %4639 = vmatprep.mubr.bf16.mxu0 %v3004
    %4640 = vmatmul.mubr.bf16.gmra.mrb[0].mxu0 %v3003
    %v4641 = vpop.f32.mrb[0].mxu0
    %v4642 = vadd.f32 %v4599, %v4641
    %v4643 = vpop.f32.mrb[0].mxu0
    %v4644 = vadd.f32 %v4601, %v4643
    %v4645 = vpop.f32.mrb[0].mxu0
    %v4646 = vadd.f32 %v4603, %v4645
    %v4647 = vpop.f32.mrb[0].mxu0
    %v4648 = vadd.f32 %v4605, %v4647
    %4649 = vdwg.mxu0
    %v4650 = vmax.f32 %v4470, 0.0
    %v4651 = vmax.f32 %v4472, 0.0
    %v4652 = vmax.f32 %v4642, 0.0
    %v4653 = vmax.f32 %v4644, 0.0
    %v4654 = vmax.f32 %v4474, 0.0
    %v4655 = vmax.f32 %v4476, 0.0
    %v4656 = vmax.f32 %v4646, 0.0
    %v4657 = vmax.f32 %v4648, 0.0
    %v4658 = vld [vmem:[#allocation9] sm:$0xff]
    %v4659 = vld [vmem:[#allocation9 + $0x8] sm:$0xff]
    %v4660 = vld [vmem:[#allocation9 + $0x10] sm:$0xff]
    %v4661 = vld [vmem:[#allocation9 + $0x18] sm:$0xff]
    %v4662 = vld [vmem:[#allocation9 + $0x20] sm:$0xff]
    %v4663 = vld [vmem:[#allocation9 + $0x28] sm:$0xff]
    %v4664 = vld [vmem:[#allocation9 + $0x30] sm:$0xff]
    %v4665 = vld [vmem:[#allocation9 + $0x38] sm:$0xff]
    %v4666 = vld [vmem:[#allocation9 + $0x40] sm:$0xff]
    %v4667 = vld [vmem:[#allocation9 + $0x48] sm:$0xff]
    %v4668 = vld [vmem:[#allocation9 + $0x50] sm:$0xff]
    %v4669 = vld [vmem:[#allocation9 + $0x58] sm:$0xff]
    %v4670 = vld [vmem:[#allocation9 + $0x60] sm:$0xff]
    %v4671 = vld [vmem:[#allocation9 + $0x68] sm:$0xff]
    %v4672 = vld [vmem:[#allocation9 + $0x70] sm:$0xff]
    %v4673 = vld [vmem:[#allocation9 + $0x78] sm:$0xff]
    %v4674 = vld [vmem:[#allocation9 + $0x80] sm:$0xff]
    %v4675 = vld [vmem:[#allocation9 + $0x88] sm:$0xff]
    %v4676 = vld [vmem:[#allocation9 + $0x90] sm:$0xff]
    %v4677 = vld [vmem:[#allocation9 + $0x98] sm:$0xff]
    %v4678 = vld [vmem:[#allocation9 + $0xa0] sm:$0xff]
    %v4679 = vld [vmem:[#allocation9 + $0xa8] sm:$0xff]
    %v4680 = vld [vmem:[#allocation9 + $0xb0] sm:$0xff]
    %v4681 = vld [vmem:[#allocation9 + $0xb8] sm:$0xff]
    %v4682 = vld [vmem:[#allocation9 + $0xc0] sm:$0xff]
    %v4683 = vld [vmem:[#allocation9 + $0xc8] sm:$0xff]
    %v4684 = vld [vmem:[#allocation9 + $0xd0] sm:$0xff]
    %v4685 = vld [vmem:[#allocation9 + $0xd8] sm:$0xff]
    %v4686 = vld [vmem:[#allocation9 + $0xe0] sm:$0xff]
    %v4687 = vld [vmem:[#allocation9 + $0xe8] sm:$0xff]
    %v4688 = vld [vmem:[#allocation9 + $0xf0] sm:$0xff]
    %v4689 = vld [vmem:[#allocation9 + $0xf8] sm:$0xff]
    %v4690 = vld [vmem:[#allocation9 + $0x100] sm:$0xff]
    %v4691 = vld [vmem:[#allocation9 + $0x108] sm:$0xff]
    %v4692 = vld [vmem:[#allocation9 + $0x110] sm:$0xff]
    %v4693 = vld [vmem:[#allocation9 + $0x118] sm:$0xff]
    %v4694 = vld [vmem:[#allocation9 + $0x120] sm:$0xff]
    %v4695 = vld [vmem:[#allocation9 + $0x128] sm:$0xff]
    %v4696 = vld [vmem:[#allocation9 + $0x130] sm:$0xff]
    %v4697 = vld [vmem:[#allocation9 + $0x138] sm:$0xff]
    %v4698 = vld [vmem:[#allocation9 + $0x140] sm:$0xff]
    %v4699 = vld [vmem:[#allocation9 + $0x148] sm:$0xff]
    %v4700 = vld [vmem:[#allocation9 + $0x150] sm:$0xff]
    %v4701 = vld [vmem:[#allocation9 + $0x158] sm:$0xff]
    %v4702 = vld [vmem:[#allocation9 + $0x160] sm:$0xff]
    %v4703 = vld [vmem:[#allocation9 + $0x168] sm:$0xff]
    %v4704 = vld [vmem:[#allocation9 + $0x170] sm:$0xff]
    %v4705 = vld [vmem:[#allocation9 + $0x178] sm:$0xff]
    %v4706 = vld [vmem:[#allocation9 + $0x180] sm:$0xff]
    %v4707 = vld [vmem:[#allocation9 + $0x188] sm:$0xff]
    %v4708 = vld [vmem:[#allocation9 + $0x190] sm:$0xff]
    %v4709 = vld [vmem:[#allocation9 + $0x198] sm:$0xff]
    %v4710 = vld [vmem:[#allocation9 + $0x1a0] sm:$0xff]
    %v4711 = vld [vmem:[#allocation9 + $0x1a8] sm:$0xff]
    %v4712 = vld [vmem:[#allocation9 + $0x1b0] sm:$0xff]
    %v4713 = vld [vmem:[#allocation9 + $0x1b8] sm:$0xff]
    %v4714 = vld [vmem:[#allocation9 + $0x1c0] sm:$0xff]
    %v4715 = vld [vmem:[#allocation9 + $0x1c8] sm:$0xff]
    %v4716 = vld [vmem:[#allocation9 + $0x1d0] sm:$0xff]
    %v4717 = vld [vmem:[#allocation9 + $0x1d8] sm:$0xff]
    %v4718 = vld [vmem:[#allocation9 + $0x1e0] sm:$0xff]
    %v4719 = vld [vmem:[#allocation9 + $0x1e8] sm:$0xff]
    %v4720 = vld [vmem:[#allocation9 + $0x1f0] sm:$0xff]
    %v4721 = vld [vmem:[#allocation9 + $0x1f8] sm:$0xff]
    %v4722 = vld [vmem:[#allocation11] sm:$0x3]
    %v4723 = vpack.c.bf16 %v4654, %v4650
    %v4724 = vpack.c.bf16 %v4655, %v4651
    %v4725 = vpack.c.bf16 %v4656, %v4652
    %v4726 = vpack.c.bf16 %v4657, %v4653
    %v4728 = vlaneseq
    %v4729 = vshrl.u32 %v4728, 7
    %v4730 = vsub.s32 0, %v4729
    %v4731 = vrot.slane %v4722, %v4730
    %v4732 = vlaneseq
    %v4733 = vshrl.u32 %v4732, 7
    %v4734 = vsub.s32 1, %v4733
    %v4735 = vrot.slane %v4722, %v4734
    %v4802 = vunpack.c.l.b16 %v4658
    %v4803 = vunpack.c.h.b16 %v4658
    %v4804 = vunpack.c.l.b16 %v4659
    %v4805 = vunpack.c.h.b16 %v4659
    %v4806 = vunpack.c.l.b16 %v4660
    %v4807 = vunpack.c.h.b16 %v4660
    %v4808 = vunpack.c.l.b16 %v4661
    %v4809 = vunpack.c.h.b16 %v4661
    %v4810 = vunpack.c.l.b16 %v4662
    %v4811 = vunpack.c.h.b16 %v4662
    %v4812 = vunpack.c.l.b16 %v4663
    %v4813 = vunpack.c.h.b16 %v4663
    %v4814 = vunpack.c.l.b16 %v4664
    %v4815 = vunpack.c.h.b16 %v4664
    %v4816 = vunpack.c.l.b16 %v4665
    %v4817 = vunpack.c.h.b16 %v4665
    %v4818 = vunpack.c.l.b16 %v4666
    %v4819 = vunpack.c.h.b16 %v4666
    %v4820 = vunpack.c.l.b16 %v4667
    %v4821 = vunpack.c.h.b16 %v4667
    %v4822 = vunpack.c.l.b16 %v4668
    %v4823 = vunpack.c.h.b16 %v4668
    %v4824 = vunpack.c.l.b16 %v4669
    %v4825 = vunpack.c.h.b16 %v4669
    %v4826 = vunpack.c.l.b16 %v4670
    %v4827 = vunpack.c.h.b16 %v4670
    %v4828 = vunpack.c.l.b16 %v4671
    %v4829 = vunpack.c.h.b16 %v4671
    %v4830 = vunpack.c.l.b16 %v4672
    %v4831 = vunpack.c.h.b16 %v4672
    %v4832 = vunpack.c.l.b16 %v4673
    %v4833 = vunpack.c.h.b16 %v4673
    %v4834 = vunpack.c.l.b16 %v4674
    %v4835 = vunpack.c.h.b16 %v4674
    %v4836 = vunpack.c.l.b16 %v4675
    %v4837 = vunpack.c.h.b16 %v4675
    %v4838 = vunpack.c.l.b16 %v4676
    %v4839 = vunpack.c.h.b16 %v4676
    %v4840 = vunpack.c.l.b16 %v4677
    %v4841 = vunpack.c.h.b16 %v4677
    %v4842 = vunpack.c.l.b16 %v4678
    %v4843 = vunpack.c.h.b16 %v4678
    %v4844 = vunpack.c.l.b16 %v4679
    %v4845 = vunpack.c.h.b16 %v4679
    %v4846 = vunpack.c.l.b16 %v4680
    %v4847 = vunpack.c.h.b16 %v4680
    %v4848 = vunpack.c.l.b16 %v4681
    %v4849 = vunpack.c.h.b16 %v4681
    %v4850 = vunpack.c.l.b16 %v4682
    %v4851 = vunpack.c.h.b16 %v4682
    %v4852 = vunpack.c.l.b16 %v4683
    %v4853 = vunpack.c.h.b16 %v4683
    %v4854 = vunpack.c.l.b16 %v4684
    %v4855 = vunpack.c.h.b16 %v4684
    %v4856 = vunpack.c.l.b16 %v4685
    %v4857 = vunpack.c.h.b16 %v4685
    %v4858 = vunpack.c.l.b16 %v4686
    %v4859 = vunpack.c.h.b16 %v4686
    %v4860 = vunpack.c.l.b16 %v4687
    %v4861 = vunpack.c.h.b16 %v4687
    %v4862 = vunpack.c.l.b16 %v4688
    %v4863 = vunpack.c.h.b16 %v4688
    %v4864 = vunpack.c.l.b16 %v4689
    %v4865 = vunpack.c.h.b16 %v4689
    %v4866 = vunpack.c.l.b16 %v4690
    %v4867 = vunpack.c.h.b16 %v4690
    %v4868 = vunpack.c.l.b16 %v4691
    %v4869 = vunpack.c.h.b16 %v4691
    %v4870 = vunpack.c.l.b16 %v4692
    %v4871 = vunpack.c.h.b16 %v4692
    %v4872 = vunpack.c.l.b16 %v4693
    %v4873 = vunpack.c.h.b16 %v4693
    %v4874 = vunpack.c.l.b16 %v4694
    %v4875 = vunpack.c.h.b16 %v4694
    %v4876 = vunpack.c.l.b16 %v4695
    %v4877 = vunpack.c.h.b16 %v4695
    %v4878 = vunpack.c.l.b16 %v4696
    %v4879 = vunpack.c.h.b16 %v4696
    %v4880 = vunpack.c.l.b16 %v4697
    %v4881 = vunpack.c.h.b16 %v4697
    %v4882 = vunpack.c.l.b16 %v4698
    %v4883 = vunpack.c.h.b16 %v4698
    %v4884 = vunpack.c.l.b16 %v4699
    %v4885 = vunpack.c.h.b16 %v4699
    %v4886 = vunpack.c.l.b16 %v4700
    %v4887 = vunpack.c.h.b16 %v4700
    %v4888 = vunpack.c.l.b16 %v4701
    %v4889 = vunpack.c.h.b16 %v4701
    %v4890 = vunpack.c.l.b16 %v4702
    %v4891 = vunpack.c.h.b16 %v4702
    %v4892 = vunpack.c.l.b16 %v4703
    %v4893 = vunpack.c.h.b16 %v4703
    %v4894 = vunpack.c.l.b16 %v4704
    %v4895 = vunpack.c.h.b16 %v4704
    %v4896 = vunpack.c.l.b16 %v4705
    %v4897 = vunpack.c.h.b16 %v4705
    %v4898 = vunpack.c.l.b16 %v4706
    %v4899 = vunpack.c.h.b16 %v4706
    %v4900 = vunpack.c.l.b16 %v4707
    %v4901 = vunpack.c.h.b16 %v4707
    %v4902 = vunpack.c.l.b16 %v4708
    %v4903 = vunpack.c.h.b16 %v4708
    %v4904 = vunpack.c.l.b16 %v4709
    %v4905 = vunpack.c.h.b16 %v4709
    %v4906 = vunpack.c.l.b16 %v4710
    %v4907 = vunpack.c.h.b16 %v4710
    %v4908 = vunpack.c.l.b16 %v4711
    %v4909 = vunpack.c.h.b16 %v4711
    %v4910 = vunpack.c.l.b16 %v4712
    %v4911 = vunpack.c.h.b16 %v4712
    %v4912 = vunpack.c.l.b16 %v4713
    %v4913 = vunpack.c.h.b16 %v4713
    %v4914 = vunpack.c.l.b16 %v4714
    %v4915 = vunpack.c.h.b16 %v4714
    %v4916 = vunpack.c.l.b16 %v4715
    %v4917 = vunpack.c.h.b16 %v4715
    %v4918 = vunpack.c.l.b16 %v4716
    %v4919 = vunpack.c.h.b16 %v4716
    %v4920 = vunpack.c.l.b16 %v4717
    %v4921 = vunpack.c.h.b16 %v4717
    %v4922 = vunpack.c.l.b16 %v4718
    %v4923 = vunpack.c.h.b16 %v4718
    %v4924 = vunpack.c.l.b16 %v4719
    %v4925 = vunpack.c.h.b16 %v4719
    %v4926 = vunpack.c.l.b16 %v4720
    %v4927 = vunpack.c.h.b16 %v4720
    %v4928 = vunpack.c.l.b16 %v4721
    %v4929 = vunpack.c.h.b16 %v4721
    %v4930 = vpack.c.b16 %v4804, %v4802
    %v4931 = vpack.c.b16 %v4805, %v4803
    %v4932 = vpack.c.b16 %v4808, %v4806
    %v4933 = vpack.c.b16 %v4809, %v4807
    %v4934 = vpack.c.b16 %v4812, %v4810
    %v4935 = vpack.c.b16 %v4813, %v4811
    %v4936 = vpack.c.b16 %v4816, %v4814
    %v4937 = vpack.c.b16 %v4817, %v4815
    %v4938 = vpack.c.b16 %v4820, %v4818
    %v4939 = vpack.c.b16 %v4821, %v4819
    %v4940 = vpack.c.b16 %v4824, %v4822
    %v4941 = vpack.c.b16 %v4825, %v4823
    %v4942 = vpack.c.b16 %v4828, %v4826
    %v4943 = vpack.c.b16 %v4829, %v4827
    %v4944 = vpack.c.b16 %v4832, %v4830
    %v4945 = vpack.c.b16 %v4833, %v4831
    %v4946 = vpack.c.b16 %v4836, %v4834
    %v4947 = vpack.c.b16 %v4837, %v4835
    %v4948 = vpack.c.b16 %v4840, %v4838
    %v4949 = vpack.c.b16 %v4841, %v4839
    %v4950 = vpack.c.b16 %v4844, %v4842
    %v4951 = vpack.c.b16 %v4845, %v4843
    %v4952 = vpack.c.b16 %v4848, %v4846
    %v4953 = vpack.c.b16 %v4849, %v4847
    %v4954 = vpack.c.b16 %v4852, %v4850
    %v4955 = vpack.c.b16 %v4853, %v4851
    %v4956 = vpack.c.b16 %v4856, %v4854
    %v4957 = vpack.c.b16 %v4857, %v4855
    %v4958 = vpack.c.b16 %v4860, %v4858
    %v4959 = vpack.c.b16 %v4861, %v4859
    %v4960 = vpack.c.b16 %v4864, %v4862
    %v4961 = vpack.c.b16 %v4865, %v4863
    %v4962 = vpack.c.b16 %v4868, %v4866
    %v4963 = vpack.c.b16 %v4869, %v4867
    %v4964 = vpack.c.b16 %v4872, %v4870
    %v4965 = vpack.c.b16 %v4873, %v4871
    %v4966 = vpack.c.b16 %v4876, %v4874
    %v4967 = vpack.c.b16 %v4877, %v4875
    %v4968 = vpack.c.b16 %v4880, %v4878
    %v4969 = vpack.c.b16 %v4881, %v4879
    %v4970 = vpack.c.b16 %v4884, %v4882
    %v4971 = vpack.c.b16 %v4885, %v4883
    %v4972 = vpack.c.b16 %v4888, %v4886
    %v4973 = vpack.c.b16 %v4889, %v4887
    %v4974 = vpack.c.b16 %v4892, %v4890
    %v4975 = vpack.c.b16 %v4893, %v4891
    %v4976 = vpack.c.b16 %v4896, %v4894
    %v4977 = vpack.c.b16 %v4897, %v4895
    %v4978 = vpack.c.b16 %v4900, %v4898
    %v4979 = vpack.c.b16 %v4901, %v4899
    %v4980 = vpack.c.b16 %v4904, %v4902
    %v4981 = vpack.c.b16 %v4905, %v4903
    %v4982 = vpack.c.b16 %v4908, %v4906
    %v4983 = vpack.c.b16 %v4909, %v4907
    %v4984 = vpack.c.b16 %v4912, %v4910
    %v4985 = vpack.c.b16 %v4913, %v4911
    %v4986 = vpack.c.b16 %v4916, %v4914
    %v4987 = vpack.c.b16 %v4917, %v4915
    %v4988 = vpack.c.b16 %v4920, %v4918
    %v4989 = vpack.c.b16 %v4921, %v4919
    %v4990 = vpack.c.b16 %v4924, %v4922
    %v4991 = vpack.c.b16 %v4925, %v4923
    %v4992 = vpack.c.b16 %v4928, %v4926
    %v4993 = vpack.c.b16 %v4929, %v4927
    %5058 = vmatprep.subr.bf16.mxu0 %v4931
    %5059 = vmatpush1.bf16.msra.mxu0 %v4930
    %5060 = vmatprep.subr.bf16.mxu0 %v4933
    %5061 = vmatpush1.bf16.msra.mxu0 %v4932
    %5062 = vmatprep.subr.bf16.mxu0 %v4935
    %5063 = vmatpush1.bf16.msra.mxu0 %v4934
    %5064 = vmatprep.subr.bf16.mxu0 %v4937
    %5065 = vmatpush1.bf16.msra.mxu0 %v4936
    %5066 = vmatprep.subr.bf16.mxu0 %v4939
    %5067 = vmatpush1.bf16.msra.mxu0 %v4938
    %5068 = vmatprep.subr.bf16.mxu0 %v4941
    %5069 = vmatpush1.bf16.msra.mxu0 %v4940
    %5070 = vmatprep.subr.bf16.mxu0 %v4943
    %5071 = vmatpush1.bf16.msra.mxu0 %v4942
    %5072 = vmatprep.subr.bf16.mxu0 %v4945
    %5073 = vmatpush1.bf16.msra.mxu0 %v4944
    %5074 = vmatprep.subr.bf16.mxu0 %v4947
    %5075 = vmatpush1.bf16.msra.mxu0 %v4946
    %5076 = vmatprep.subr.bf16.mxu0 %v4949
    %5077 = vmatpush1.bf16.msra.mxu0 %v4948
    %5078 = vmatprep.subr.bf16.mxu0 %v4951
    %5079 = vmatpush1.bf16.msra.mxu0 %v4950
    %5080 = vmatprep.subr.bf16.mxu0 %v4953
    %5081 = vmatpush1.bf16.msra.mxu0 %v4952
    %5082 = vmatprep.subr.bf16.mxu0 %v4955
    %5083 = vmatpush1.bf16.msra.mxu0 %v4954
    %5084 = vmatprep.subr.bf16.mxu0 %v4957
    %5085 = vmatpush1.bf16.msra.mxu0 %v4956
    %5086 = vmatprep.subr.bf16.mxu0 %v4959
    %5087 = vmatpush1.bf16.msra.mxu0 %v4958
    %5088 = vmatprep.subr.bf16.mxu0 %v4961
    %5089 = vmatpush1.bf16.msra.mxu0 %v4960
    %5090 = vmatprep.mubr.bf16.mxu0 %v4724
    %5091 = vmatmul.mubr.bf16.gmra.mrb[0].mxu0 %v4723
    %v5092 = vpop.f32.mrb[0].mxu0
    %v5093 = vadd.f32 %v4731, %v5092
    %v5094 = vpop.f32.mrb[0].mxu0
    %v5095 = vadd.f32 %v4735, %v5094
    %v5096 = vpop.f32.mrb[0].mxu0
    %v5097 = vadd.f32 %v4731, %v5096
    %v5098 = vpop.f32.mrb[0].mxu0
    %v5099 = vadd.f32 %v4735, %v5098
    %5100 = vdwg.mxu0
    %5101 = vmatprep.subr.bf16.mxu0 %v4963
    %5102 = vmatpush1.bf16.msra.mxu0 %v4962
    %5103 = vmatprep.subr.bf16.mxu0 %v4965
    %5104 = vmatpush1.bf16.msra.mxu0 %v4964
    %5105 = vmatprep.subr.bf16.mxu0 %v4967
    %5106 = vmatpush1.bf16.msra.mxu0 %v4966
    %5107 = vmatprep.subr.bf16.mxu0 %v4969
    %5108 = vmatpush1.bf16.msra.mxu0 %v4968
    %5109 = vmatprep.subr.bf16.mxu0 %v4971
    %5110 = vmatpush1.bf16.msra.mxu0 %v4970
    %5111 = vmatprep.subr.bf16.mxu0 %v4973
    %5112 = vmatpush1.bf16.msra.mxu0 %v4972
    %5113 = vmatprep.subr.bf16.mxu0 %v4975
    %5114 = vmatpush1.bf16.msra.mxu0 %v4974
    %5115 = vmatprep.subr.bf16.mxu0 %v4977
    %5116 = vmatpush1.bf16.msra.mxu0 %v4976
    %5117 = vmatprep.subr.bf16.mxu0 %v4979
    %5118 = vmatpush1.bf16.msra.mxu0 %v4978
    %5119 = vmatprep.subr.bf16.mxu0 %v4981
    %5120 = vmatpush1.bf16.msra.mxu0 %v4980
    %5121 = vmatprep.subr.bf16.mxu0 %v4983
    %5122 = vmatpush1.bf16.msra.mxu0 %v4982
    %5123 = vmatprep.subr.bf16.mxu0 %v4985
    %5124 = vmatpush1.bf16.msra.mxu0 %v4984
    %5125 = vmatprep.subr.bf16.mxu0 %v4987
    %5126 = vmatpush1.bf16.msra.mxu0 %v4986
    %5127 = vmatprep.subr.bf16.mxu0 %v4989
    %5128 = vmatpush1.bf16.msra.mxu0 %v4988
    %5129 = vmatprep.subr.bf16.mxu0 %v4991
    %5130 = vmatpush1.bf16.msra.mxu0 %v4990
    %5131 = vmatprep.subr.bf16.mxu0 %v4993
    %5132 = vmatpush1.bf16.msra.mxu0 %v4992
    %5133 = vmatprep.mubr.bf16.mxu0 %v4726
    %5134 = vmatmul.mubr.bf16.gmra.mrb[0].mxu0 %v4725
    %v5135 = vpop.f32.mrb[0].mxu0
    %v5136 = vadd.f32 %v5093, %v5135
    %v5137 = vpop.f32.mrb[0].mxu0
    %v5138 = vadd.f32 %v5095, %v5137
    %v5139 = vpop.f32.mrb[0].mxu0
    %v5140 = vadd.f32 %v5097, %v5139
    %v5141 = vpop.f32.mrb[0].mxu0
    %v5142 = vadd.f32 %v5099, %v5141
    %5143 = vdwg.mxu0
    %v5144 = vmax.f32 %v5136, 0.0
    %v5145 = vmax.f32 %v5138, 0.0
    %v5146 = vmax.f32 %v5140, 0.0
    %v5147 = vmax.f32 %v5142, 0.0
    %v5148 = vld [vmem:[%s8] sm:$0xf]
    %v5149 = vld [vmem:[%s8 + $0x4] sm:$0xf]
    %v5150 = vld [vmem:[%s8 + $0x8] sm:$0xf]
    %v5151 = vld [vmem:[%s8 + $0xc] sm:$0xf]
    %v5152 = vld [vmem:[%s8 + $0x10] sm:$0xf]
    %v5153 = vld [vmem:[%s8 + $0x14] sm:$0xf]
    %v5154 = vld [vmem:[%s8 + $0x18] sm:$0xf]
    %v5155 = vld [vmem:[%s8 + $0x1c] sm:$0xf]
    %v5156 = vld [vmem:[%s8 + $0x20] sm:$0xf]
    %v5157 = vld [vmem:[%s8 + $0x24] sm:$0xf]
    %v5158 = vld [vmem:[%s8 + $0x28] sm:$0xf]
    %v5159 = vld [vmem:[%s8 + $0x2c] sm:$0xf]
    %v5160 = vld [vmem:[%s8 + $0x30] sm:$0xf]
    %v5161 = vld [vmem:[%s8 + $0x34] sm:$0xf]
    %v5162 = vld [vmem:[%s8 + $0x38] sm:$0xf]
    %v5163 = vld [vmem:[%s8 + $0x3c] sm:$0xf]
    %v5164 = vld [vmem:[%s8 + $0x40] sm:$0xf]
    %v5165 = vld [vmem:[%s8 + $0x44] sm:$0xf]
    %v5166 = vld [vmem:[%s8 + $0x48] sm:$0xf]
    %v5167 = vld [vmem:[%s8 + $0x4c] sm:$0xf]
    %v5168 = vld [vmem:[%s8 + $0x50] sm:$0xf]
    %v5169 = vld [vmem:[%s8 + $0x54] sm:$0xf]
    %v5170 = vld [vmem:[%s8 + $0x58] sm:$0xf]
    %v5171 = vld [vmem:[%s8 + $0x5c] sm:$0xf]
    %v5172 = vld [vmem:[%s8 + $0x60] sm:$0xf]
    %v5173 = vld [vmem:[%s8 + $0x64] sm:$0xf]
    %v5174 = vld [vmem:[%s8 + $0x68] sm:$0xf]
    %v5175 = vld [vmem:[%s8 + $0x6c] sm:$0xf]
    %v5176 = vld [vmem:[%s8 + $0x70] sm:$0xf]
    %v5177 = vld [vmem:[%s8 + $0x74] sm:$0xf]
    %v5178 = vld [vmem:[%s8 + $0x78] sm:$0xf]
    %v5179 = vld [vmem:[%s8 + $0x7c] sm:$0xf]
    %v5180 = vld [vmem:[#allocation12] sm:$0x1]
    %v5181 = vpack.c.bf16 %v5146, %v5144
    %v5182 = vpack.c.bf16 %v5147, %v5145
    %v5184 = vlaneseq
    %v5185 = vshrl.u32 %v5184, 7
    %v5186 = vsub.s32 0, %v5185
    %v5187 = vrot.slane %v5180, %v5186
    %v5221 = vunpack.c.l.b16 %v5148
    %v5222 = vunpack.c.l.b16 %v5149
    %v5223 = vunpack.c.l.b16 %v5150
    %v5224 = vunpack.c.l.b16 %v5151
    %v5225 = vunpack.c.l.b16 %v5152
    %v5226 = vunpack.c.l.b16 %v5153
    %v5227 = vunpack.c.l.b16 %v5154
    %v5228 = vunpack.c.l.b16 %v5155
    %v5229 = vunpack.c.l.b16 %v5156
    %v5230 = vunpack.c.l.b16 %v5157
    %v5231 = vunpack.c.l.b16 %v5158
    %v5232 = vunpack.c.l.b16 %v5159
    %v5233 = vunpack.c.l.b16 %v5160
    %v5234 = vunpack.c.l.b16 %v5161
    %v5235 = vunpack.c.l.b16 %v5162
    %v5236 = vunpack.c.l.b16 %v5163
    %v5237 = vunpack.c.l.b16 %v5164
    %v5238 = vunpack.c.l.b16 %v5165
    %v5239 = vunpack.c.l.b16 %v5166
    %v5240 = vunpack.c.l.b16 %v5167
    %v5241 = vunpack.c.l.b16 %v5168
    %v5242 = vunpack.c.l.b16 %v5169
    %v5243 = vunpack.c.l.b16 %v5170
    %v5244 = vunpack.c.l.b16 %v5171
    %v5245 = vunpack.c.l.b16 %v5172
    %v5246 = vunpack.c.l.b16 %v5173
    %v5247 = vunpack.c.l.b16 %v5174
    %v5248 = vunpack.c.l.b16 %v5175
    %v5249 = vunpack.c.l.b16 %v5176
    %v5250 = vunpack.c.l.b16 %v5177
    %v5251 = vunpack.c.l.b16 %v5178
    %v5252 = vunpack.c.l.b16 %v5179
    %v5253 = vpack.c.b16 %v5222, %v5221
    %v5254 = vpack.c.b16 %v5224, %v5223
    %v5255 = vpack.c.b16 %v5226, %v5225
    %v5256 = vpack.c.b16 %v5228, %v5227
    %v5257 = vpack.c.b16 %v5230, %v5229
    %v5258 = vpack.c.b16 %v5232, %v5231
    %v5259 = vpack.c.b16 %v5234, %v5233
    %v5260 = vpack.c.b16 %v5236, %v5235
    %v5261 = vpack.c.b16 %v5238, %v5237
    %v5262 = vpack.c.b16 %v5240, %v5239
    %v5263 = vpack.c.b16 %v5242, %v5241
    %v5264 = vpack.c.b16 %v5244, %v5243
    %v5265 = vpack.c.b16 %v5246, %v5245
    %v5266 = vpack.c.b16 %v5248, %v5247
    %v5267 = vpack.c.b16 %v5250, %v5249
    %v5268 = vpack.c.b16 %v5252, %v5251
    %5285 = vmatprep.subr.bf16.mxu0 0
    %5286 = vmatpush1.bf16.msra.mxu0 %v5253
    %5287 = vmatprep.subr.bf16.mxu0 0
    %5288 = vmatpush1.bf16.msra.mxu0 %v5254
    %5289 = vmatprep.subr.bf16.mxu0 0
    %5290 = vmatpush1.bf16.msra.mxu0 %v5255
    %5291 = vmatprep.subr.bf16.mxu0 0
    %5292 = vmatpush1.bf16.msra.mxu0 %v5256
    %5293 = vmatprep.subr.bf16.mxu0 0
    %5294 = vmatpush1.bf16.msra.mxu0 %v5257
    %5295 = vmatprep.subr.bf16.mxu0 0
    %5296 = vmatpush1.bf16.msra.mxu0 %v5258
    %5297 = vmatprep.subr.bf16.mxu0 0
    %5298 = vmatpush1.bf16.msra.mxu0 %v5259
    %5299 = vmatprep.subr.bf16.mxu0 0
    %5300 = vmatpush1.bf16.msra.mxu0 %v5260
    %5301 = vmatprep.subr.bf16.mxu0 0
    %5302 = vmatpush1.bf16.msra.mxu0 %v5261
    %5303 = vmatprep.subr.bf16.mxu0 0
    %5304 = vmatpush1.bf16.msra.mxu0 %v5262
    %5305 = vmatprep.subr.bf16.mxu0 0
    %5306 = vmatpush1.bf16.msra.mxu0 %v5263
    %5307 = vmatprep.subr.bf16.mxu0 0
    %5308 = vmatpush1.bf16.msra.mxu0 %v5264
    %5309 = vmatprep.subr.bf16.mxu0 0
    %5310 = vmatpush1.bf16.msra.mxu0 %v5265
    %5311 = vmatprep.subr.bf16.mxu0 0
    %5312 = vmatpush1.bf16.msra.mxu0 %v5266
    %5313 = vmatprep.subr.bf16.mxu0 0
    %5314 = vmatpush1.bf16.msra.mxu0 %v5267
    %5315 = vmatprep.subr.bf16.mxu0 0
    %5316 = vmatpush1.bf16.msra.mxu0 %v5268
    %5317 = vmatprep.mubr.bf16.mxu0 %v5182
    %5318 = vmatmul.mubr.bf16.gmra.mrb[0].mxu0 %v5181
    %v5319 = vpop.f32.mrb[0].mxu0
    %v5320 = vadd.f32 %v5187, %v5319
    %v5321 = vpop.f32.mrb[0].mxu0
    %v5322 = vpop.f32.mrb[0].mxu0
    %v5323 = vadd.f32 %v5187, %v5322
    %v5324 = vpop.f32.mrb[0].mxu0
    %5325 = vdwg.mxu0
    %v5326 = vmax.f32 %v5320, 0.0
    %v5327 = vmax.f32 %v5323, 0.0
    %v5328 = vld [vmem:[%s10] sm:$0xf]
    %v5329 = vld [vmem:[%s10 + $0x4] sm:$0xf]
    %v5330 = vld [vmem:[%s10 + $0x8] sm:$0xf]
    %v5331 = vld [vmem:[%s10 + $0xc] sm:$0xf]
    %v5332 = vld [vmem:[%s10 + $0x10] sm:$0xf]
    %v5333 = vld [vmem:[%s10 + $0x14] sm:$0xf]
    %v5334 = vld [vmem:[%s10 + $0x18] sm:$0xf]
    %v5335 = vld [vmem:[%s10 + $0x1c] sm:$0xf]
    %v5336 = vld [vmem:[%s10 + $0x20] sm:$0xf]
    %v5337 = vld [vmem:[%s10 + $0x24] sm:$0xf]
    %v5338 = vld [vmem:[%s10 + $0x28] sm:$0xf]
    %v5339 = vld [vmem:[%s10 + $0x2c] sm:$0xf]
    %v5340 = vld [vmem:[%s10 + $0x30] sm:$0xf]
    %v5341 = vld [vmem:[%s10 + $0x34] sm:$0xf]
    %v5342 = vld [vmem:[%s10 + $0x38] sm:$0xf]
    %v5343 = vld [vmem:[%s10 + $0x3c] sm:$0xf]
    %v5344 = vld [vmem:[#allocation14] sm:$0x1]
    %v5345 = vpack.c.bf16 %v5327, %v5326
    %v5347 = vlaneseq
    %v5348 = vshrl.u32 %v5347, 7
    %v5349 = vsub.s32 0, %v5348
    %v5350 = vrot.slane %v5344, %v5349
    %v5368 = vunpack.c.l.b16 %v5328
    %v5369 = vunpack.c.l.b16 %v5329
    %v5370 = vunpack.c.l.b16 %v5330
    %v5371 = vunpack.c.l.b16 %v5331
    %v5372 = vunpack.c.l.b16 %v5332
    %v5373 = vunpack.c.l.b16 %v5333
    %v5374 = vunpack.c.l.b16 %v5334
    %v5375 = vunpack.c.l.b16 %v5335
    %v5376 = vunpack.c.l.b16 %v5336
    %v5377 = vunpack.c.l.b16 %v5337
    %v5378 = vunpack.c.l.b16 %v5338
    %v5379 = vunpack.c.l.b16 %v5339
    %v5380 = vunpack.c.l.b16 %v5340
    %v5381 = vunpack.c.l.b16 %v5341
    %v5382 = vunpack.c.l.b16 %v5342
    %v5383 = vunpack.c.l.b16 %v5343
    %v5384 = vpack.c.b16 %v5369, %v5368
    %v5385 = vpack.c.b16 %v5371, %v5370
    %v5386 = vpack.c.b16 %v5373, %v5372
    %v5387 = vpack.c.b16 %v5375, %v5374
    %v5388 = vpack.c.b16 %v5377, %v5376
    %v5389 = vpack.c.b16 %v5379, %v5378
    %v5390 = vpack.c.b16 %v5381, %v5380
    %v5391 = vpack.c.b16 %v5383, %v5382
    %5400 = vmatprep.subr.bf16.mxu0 0
    %5401 = vmatpush1.bf16.msra.mxu0 %v5384
    %5402 = vmatprep.subr.bf16.mxu0 0
    %5403 = vmatpush1.bf16.msra.mxu0 %v5385
    %5404 = vmatprep.subr.bf16.mxu0 0
    %5405 = vmatpush1.bf16.msra.mxu0 %v5386
    %5406 = vmatprep.subr.bf16.mxu0 0
    %5407 = vmatpush1.bf16.msra.mxu0 %v5387
    %5408 = vmatprep.subr.bf16.mxu0 0
    %5409 = vmatpush1.bf16.msra.mxu0 %v5388
    %5410 = vmatprep.subr.bf16.mxu0 0
    %5411 = vmatpush1.bf16.msra.mxu0 %v5389
    %5412 = vmatprep.subr.bf16.mxu0 0
    %5413 = vmatpush1.bf16.msra.mxu0 %v5390
    %5414 = vmatprep.subr.bf16.mxu0 0
    %5415 = vmatpush1.bf16.msra.mxu0 %v5391
    %5416 = vmatprep.subr.bf16.mxu0 0
    %5417 = vmatpush1.bf16.msra.mxu0 0
    %5418 = vmatprep.subr.bf16.mxu0 0
    %5419 = vmatpush1.bf16.msra.mxu0 0
    %5420 = vmatprep.subr.bf16.mxu0 0
    %5421 = vmatpush1.bf16.msra.mxu0 0
    %5422 = vmatprep.subr.bf16.mxu0 0
    %5423 = vmatpush1.bf16.msra.mxu0 0
    %5424 = vmatprep.subr.bf16.mxu0 0
    %5425 = vmatpush1.bf16.msra.mxu0 0
    %5426 = vmatprep.subr.bf16.mxu0 0
    %5427 = vmatpush1.bf16.msra.mxu0 0
    %5428 = vmatprep.subr.bf16.mxu0 0
    %5429 = vmatpush1.bf16.msra.mxu0 0
    %5430 = vmatprep.subr.bf16.mxu0 0
    %5431 = vmatpush1.bf16.msra.mxu0 0
    %5432 = vmatprep.mubr.bf16.mxu0 0
    %5433 = vmatmul.mubr.bf16.gmra.mrb[0].mxu0 %v5345
    %v5434 = vpop.f32.mrb[0].mxu0
    %v5435 = vadd.f32 %v5350, %v5434
    %v5436 = vpop.f32.mrb[0].mxu0
    %v5437 = vpop.f32.mrb[0].mxu0
    %v5438 = vadd.f32 %v5350, %v5437
    %v5439 = vpop.f32.mrb[0].mxu0
    %5440 = vdwg.mxu0
    %v5441 = vmax.f32 %v5435, 0.0
    %v5442 = vmax.f32 %v5438, 0.0
    %v5443 = vld [vmem:[%s12] sm:$0xf]
    %v5444 = vld [vmem:[%s12 + $0x4] sm:$0xf]
    %v5445 = vld [vmem:[%s12 + $0x8] sm:$0xf]
    %v5446 = vld [vmem:[%s12 + $0xc] sm:$0xf]
    %v5447 = vld [vmem:[%s12 + $0x10] sm:$0xf]
    %v5448 = vld [vmem:[%s12 + $0x14] sm:$0xf]
    %v5449 = vld [vmem:[%s12 + $0x18] sm:$0xf]
    %v5450 = vld [vmem:[%s12 + $0x1c] sm:$0xf]
    %v5451 = vld [vmem:[#allocation15] sm:$0x1]
    %v5452 = vpack.c.bf16 %v5442, %v5441
    %v5454 = vlaneseq
    %v5455 = vshrl.u32 %v5454, 7
    %v5456 = vsub.s32 0, %v5455
    %v5457 = vrot.slane %v5451, %v5456
    %v5467 = vunpack.c.l.b16 %v5443
    %v5468 = vunpack.c.l.b16 %v5444
    %v5469 = vunpack.c.l.b16 %v5445
    %v5470 = vunpack.c.l.b16 %v5446
    %v5471 = vunpack.c.l.b16 %v5447
    %v5472 = vunpack.c.l.b16 %v5448
    %v5473 = vunpack.c.l.b16 %v5449
    %v5474 = vunpack.c.l.b16 %v5450
    %v5475 = vpack.c.b16 %v5468, %v5467
    %v5476 = vpack.c.b16 %v5470, %v5469
    %v5477 = vpack.c.b16 %v5472, %v5471
    %v5478 = vpack.c.b16 %v5474, %v5473
    %vm5483 = vcmask 523264
    %v5485 = vsel %vm5483, %v5452, 0
    %5487 = vmatprep.subr.bf16.mxu0 0
    %5488 = vmatpush1.bf16.msra.mxu0 %v5475
    %5489 = vmatprep.subr.bf16.mxu0 0
    %5490 = vmatpush1.bf16.msra.mxu0 %v5476
    %5491 = vmatprep.subr.bf16.mxu0 0
    %5492 = vmatpush1.bf16.msra.mxu0 %v5477
    %5493 = vmatprep.subr.bf16.mxu0 0
    %5494 = vmatpush1.bf16.msra.mxu0 %v5478
    %5495 = vmatprep.subr.bf16.mxu0 0
    %5496 = vmatpush1.bf16.msra.mxu0 0
    %5497 = vmatprep.subr.bf16.mxu0 0
    %5498 = vmatpush1.bf16.msra.mxu0 0
    %5499 = vmatprep.subr.bf16.mxu0 0
    %5500 = vmatpush1.bf16.msra.mxu0 0
    %5501 = vmatprep.subr.bf16.mxu0 0
    %5502 = vmatpush1.bf16.msra.mxu0 0
    %5503 = vmatprep.subr.bf16.mxu0 0
    %5504 = vmatpush1.bf16.msra.mxu0 0
    %5505 = vmatprep.subr.bf16.mxu0 0
    %5506 = vmatpush1.bf16.msra.mxu0 0
    %5507 = vmatprep.subr.bf16.mxu0 0
    %5508 = vmatpush1.bf16.msra.mxu0 0
    %5509 = vmatprep.subr.bf16.mxu0 0
    %5510 = vmatpush1.bf16.msra.mxu0 0
    %5511 = vmatprep.subr.bf16.mxu0 0
    %5512 = vmatpush1.bf16.msra.mxu0 0
    %5513 = vmatprep.subr.bf16.mxu0 0
    %5514 = vmatpush1.bf16.msra.mxu0 0
    %5515 = vmatprep.subr.bf16.mxu0 0
    %5516 = vmatpush1.bf16.msra.mxu0 0
    %5517 = vmatprep.subr.bf16.mxu0 0
    %5518 = vmatpush1.bf16.msra.mxu0 0
    %5519 = vmatprep.mubr.bf16.mxu0 0
    %5520 = vmatmul.mubr.bf16.gmra.mrb[0].mxu0 %v5485
    %v5521 = vpop.f32.mrb[0].mxu0
    %v5522 = vadd.f32 %v5457, %v5521
    %v5523 = vpop.f32.mrb[0].mxu0
    %v5524 = vpop.f32.mrb[0].mxu0
    %v5525 = vadd.f32 %v5457, %v5524
    %v5526 = vpop.f32.mrb[0].mxu0
    %5527 = vdwg.mxu0
    %s5528 = sld [smem:[#allocation2]]
    %v5529 = vstv %s5528
    %v5530 = vmul.f32 %v5522, %v5529
    %s5531 = sld [smem:[#allocation2 + $0x1]]
    %v5532 = vstv %s5531
    %v5533 = vmul.f32 %v5525, %v5532
    %v5534 = vld [vmem:[%s14] sm:$0xff]
    %v5535 = vld [vmem:[%s14 + $0x8] sm:$0xff]
    %v5536 = vld [vmem:[%s14 + $0x10] sm:$0xff]
    %v5537 = vld [vmem:[%s14 + $0x18] sm:$0xff]
    %v5538 = vld [vmem:[%s15] sm:$0xff]
    %v5539 = vld [vmem:[%s15 + $0x8] sm:$0xff]
    %v5540 = vld [vmem:[%s15 + $0x10] sm:$0xff]
    %v5541 = vld [vmem:[%s15 + $0x18] sm:$0xff]
    %vm5542 = vcmask 261120
    %v5544 = vsel %vm5542, %v5533, 0
    %5546 = vmatprep.subr.mxu0 0.0
    %5547 = vmatpush1.msra.mxu0 %v5538
    %5548 = vmatprep.subr.mxu0 0.0
    %5549 = vmatpush1.msra.mxu0 %v5539
    %5550 = vmatprep.subr.mxu0 0.0
    %5551 = vmatpush1.msra.mxu0 %v5540
    %5552 = vmatprep.subr.mxu0 0.0
    %5553 = vmatpush1.msra.mxu0 %v5541
    %5554 = vmatprep.subr.mxu0 0.0
    %5555 = vmatpush1.msra.mxu0 0.0
    %5556 = vmatprep.subr.mxu0 0.0
    %5557 = vmatpush1.msra.mxu0 0.0
    %5558 = vmatprep.subr.mxu0 0.0
    %5559 = vmatpush1.msra.mxu0 0.0
    %5560 = vmatprep.subr.mxu0 0.0
    %5561 = vmatpush1.msra.mxu0 0.0
    %5562 = vmatprep.subr.mxu0 0.0
    %5563 = vmatpush1.msra.mxu0 0.0
    %5564 = vmatprep.subr.mxu0 0.0
    %5565 = vmatpush1.msra.mxu0 0.0
    %5566 = vmatprep.subr.mxu0 0.0
    %5567 = vmatpush1.msra.mxu0 0.0
    %5568 = vmatprep.subr.mxu0 0.0
    %5569 = vmatpush1.msra.mxu0 0.0
    %5570 = vmatprep.subr.mxu0 0.0
    %5571 = vmatpush1.msra.mxu0 0.0
    %5572 = vmatprep.subr.mxu0 0.0
    %5573 = vmatpush1.msra.mxu0 0.0
    %5574 = vmatprep.subr.mxu0 0.0
    %5575 = vmatpush1.msra.mxu0 0.0
    %5576 = vmatprep.subr.mxu0 0.0
    %5577 = vmatpush1.msra.mxu0 0.0
    %5578 = vmatprep.subr.mxu0 0.0
    %5579 = vmatpush1.msra.mxu0 0.0
    %5580 = vmatprep.subr.mxu0 0.0
    %5581 = vmatpush1.msra.mxu0 0.0
    %5582 = vmatprep.subr.mxu0 0.0
    %5583 = vmatpush1.msra.mxu0 0.0
    %5584 = vmatprep.subr.mxu0 0.0
    %5585 = vmatpush1.msra.mxu0 0.0
    %5586 = vmatprep.subr.mxu0 0.0
    %5587 = vmatpush1.msra.mxu0 0.0
    %5588 = vmatprep.subr.mxu0 0.0
    %5589 = vmatpush1.msra.mxu0 0.0
    %5590 = vmatprep.subr.mxu0 0.0
    %5591 = vmatpush1.msra.mxu0 0.0
    %5592 = vmatprep.subr.mxu0 0.0
    %5593 = vmatpush1.msra.mxu0 0.0
    %5594 = vmatprep.subr.mxu0 0.0
    %5595 = vmatpush1.msra.mxu0 0.0
    %5596 = vmatprep.subr.mxu0 0.0
    %5597 = vmatpush1.msra.mxu0 0.0
    %5598 = vmatprep.subr.mxu0 0.0
    %5599 = vmatpush1.msra.mxu0 0.0
    %5600 = vmatprep.subr.mxu0 0.0
    %5601 = vmatpush1.msra.mxu0 0.0
    %5602 = vmatprep.subr.mxu0 0.0
    %5603 = vmatpush1.msra.mxu0 0.0
    %5604 = vmatprep.subr.mxu0 0.0
    %5605 = vmatpush1.msra.mxu0 0.0
    %5606 = vmatprep.subr.mxu0 0.0
    %5607 = vmatpush1.msra.mxu0 0.0
    %5608 = vmatprep.subr.mxu0 0.0
    %5609 = vmatpush1.msra.mxu0 0.0
    %5610 = vmatprep.mubr.f32.mxu0 0.0
    %5611 = vmatmul.mubr.f32.gmra.mrb[0].mxu0 %v5544
    %v5612 = vpop.f32.mrb[0].mxu0
    %v5613 = vadd.f32 0.0, %v5612
    %v5614 = vpop.f32.mrb[0].mxu0
    %5615 = vdwg.mxu0
    %v5617 = vsel %vm5542, %v5530, 0
    %5619 = vmatprep.subr.mxu0 0.0
    %5620 = vmatpush1.msra.mxu0 %v5534
    %5621 = vmatprep.subr.mxu0 0.0
    %5622 = vmatpush1.msra.mxu0 %v5535
    %5623 = vmatprep.subr.mxu0 0.0
    %5624 = vmatpush1.msra.mxu0 %v5536
    %5625 = vmatprep.subr.mxu0 0.0
    %5626 = vmatpush1.msra.mxu0 %v5537
    %5627 = vmatprep.subr.mxu0 0.0
    %5628 = vmatpush1.msra.mxu0 0.0
    %5629 = vmatprep.subr.mxu0 0.0
    %5630 = vmatpush1.msra.mxu0 0.0
    %5631 = vmatprep.subr.mxu0 0.0
    %5632 = vmatpush1.msra.mxu0 0.0
    %5633 = vmatprep.subr.mxu0 0.0
    %5634 = vmatpush1.msra.mxu0 0.0
    %5635 = vmatprep.subr.mxu0 0.0
    %5636 = vmatpush1.msra.mxu0 0.0
    %5637 = vmatprep.subr.mxu0 0.0
    %5638 = vmatpush1.msra.mxu0 0.0
    %5639 = vmatprep.subr.mxu0 0.0
    %5640 = vmatpush1.msra.mxu0 0.0
    %5641 = vmatprep.subr.mxu0 0.0
    %5642 = vmatpush1.msra.mxu0 0.0
    %5643 = vmatprep.subr.mxu0 0.0
    %5644 = vmatpush1.msra.mxu0 0.0
    %5645 = vmatprep.subr.mxu0 0.0
    %5646 = vmatpush1.msra.mxu0 0.0
    %5647 = vmatprep.subr.mxu0 0.0
    %5648 = vmatpush1.msra.mxu0 0.0
    %5649 = vmatprep.subr.mxu0 0.0
    %5650 = vmatpush1.msra.mxu0 0.0
    %5651 = vmatprep.subr.mxu0 0.0
    %5652 = vmatpush1.msra.mxu0 0.0
    %5653 = vmatprep.subr.mxu0 0.0
    %5654 = vmatpush1.msra.mxu0 0.0
    %5655 = vmatprep.subr.mxu0 0.0
    %5656 = vmatpush1.msra.mxu0 0.0
    %5657 = vmatprep.subr.mxu0 0.0
    %5658 = vmatpush1.msra.mxu0 0.0
    %5659 = vmatprep.subr.mxu0 0.0
    %5660 = vmatpush1.msra.mxu0 0.0
    %5661 = vmatprep.subr.mxu0 0.0
    %5662 = vmatpush1.msra.mxu0 0.0
    %5663 = vmatprep.subr.mxu0 0.0
    %5664 = vmatpush1.msra.mxu0 0.0
    %5665 = vmatprep.subr.mxu0 0.0
    %5666 = vmatpush1.msra.mxu0 0.0
    %5667 = vmatprep.subr.mxu0 0.0
    %5668 = vmatpush1.msra.mxu0 0.0
    %5669 = vmatprep.subr.mxu0 0.0
    %5670 = vmatpush1.msra.mxu0 0.0
    %5671 = vmatprep.subr.mxu0 0.0
    %5672 = vmatpush1.msra.mxu0 0.0
    %5673 = vmatprep.subr.mxu0 0.0
    %5674 = vmatpush1.msra.mxu0 0.0
    %5675 = vmatprep.subr.mxu0 0.0
    %5676 = vmatpush1.msra.mxu0 0.0
    %5677 = vmatprep.subr.mxu0 0.0
    %5678 = vmatpush1.msra.mxu0 0.0
    %5679 = vmatprep.subr.mxu0 0.0
    %5680 = vmatpush1.msra.mxu0 0.0
    %5681 = vmatprep.subr.mxu0 0.0
    %5682 = vmatpush1.msra.mxu0 0.0
    %5683 = vmatprep.mubr.f32.mxu0 0.0
    %5684 = vmatmul.mubr.f32.gmra.mrb[0].mxu0 %v5617
    %v5685 = vpop.f32.mrb[0].mxu0
    %v5686 = vadd.f32 %v5613, %v5685
    %v5687 = vpop.f32.mrb[0].mxu0
    %5688 = vdwg.mxu0
    %v5689 = vld [vmem:[#allocation17] sm:$0x1]
    %v5691 = vlaneseq
    %v5692 = vshrl.u32 %v5691, 7
    %v5693 = vsub.s32 0, %v5692
    %v5694 = vrot.slane %v5689, %v5693
    %v5696 = vadd.f32 %v5686, %v5694
    %v5697 = vmax.f32 %v5696, 0.0
    %v5698 = vld [vmem:[%s17] sm:$0xff]
    %v5699 = vld [vmem:[%s17 + $0x8] sm:$0xff]
    %v5700 = vld [vmem:[%s17 + $0x10] sm:$0xff]
    %v5701 = vld [vmem:[%s17 + $0x18] sm:$0xff]
    %v5702 = vld [vmem:[#allocation18] sm:$0x1]
    %v5704 = vlaneseq
    %v5705 = vshrl.u32 %v5704, 7
    %v5706 = vsub.s32 0, %v5705
    %v5707 = vrot.slane %v5702, %v5706
    %v5710 = vsel %vm5542, %v5697, 0
    %5712 = vmatprep.subr.mxu0 0.0
    %5713 = vmatpush1.msra.mxu0 %v5698
    %5714 = vmatprep.subr.mxu0 0.0
    %5715 = vmatpush1.msra.mxu0 %v5699
    %5716 = vmatprep.subr.mxu0 0.0
    %5717 = vmatpush1.msra.mxu0 %v5700
    %5718 = vmatprep.subr.mxu0 0.0
    %5719 = vmatpush1.msra.mxu0 %v5701
    %5720 = vmatprep.subr.mxu0 0.0
    %5721 = vmatpush1.msra.mxu0 0.0
    %5722 = vmatprep.subr.mxu0 0.0
    %5723 = vmatpush1.msra.mxu0 0.0
    %5724 = vmatprep.subr.mxu0 0.0
    %5725 = vmatpush1.msra.mxu0 0.0
    %5726 = vmatprep.subr.mxu0 0.0
    %5727 = vmatpush1.msra.mxu0 0.0
    %5728 = vmatprep.subr.mxu0 0.0
    %5729 = vmatpush1.msra.mxu0 0.0
    %5730 = vmatprep.subr.mxu0 0.0
    %5731 = vmatpush1.msra.mxu0 0.0
    %5732 = vmatprep.subr.mxu0 0.0
    %5733 = vmatpush1.msra.mxu0 0.0
    %5734 = vmatprep.subr.mxu0 0.0
    %5735 = vmatpush1.msra.mxu0 0.0
    %5736 = vmatprep.subr.mxu0 0.0
    %5737 = vmatpush1.msra.mxu0 0.0
    %5738 = vmatprep.subr.mxu0 0.0
    %5739 = vmatpush1.msra.mxu0 0.0
    %5740 = vmatprep.subr.mxu0 0.0
    %5741 = vmatpush1.msra.mxu0 0.0
    %5742 = vmatprep.subr.mxu0 0.0
    %5743 = vmatpush1.msra.mxu0 0.0
    %5744 = vmatprep.subr.mxu0 0.0
    %5745 = vmatpush1.msra.mxu0 0.0
    %5746 = vmatprep.subr.mxu0 0.0
    %5747 = vmatpush1.msra.mxu0 0.0
    %5748 = vmatprep.subr.mxu0 0.0
    %5749 = vmatpush1.msra.mxu0 0.0
    %5750 = vmatprep.subr.mxu0 0.0
    %5751 = vmatpush1.msra.mxu0 0.0
    %5752 = vmatprep.subr.mxu0 0.0
    %5753 = vmatpush1.msra.mxu0 0.0
    %5754 = vmatprep.subr.mxu0 0.0
    %5755 = vmatpush1.msra.mxu0 0.0
    %5756 = vmatprep.subr.mxu0 0.0
    %5757 = vmatpush1.msra.mxu0 0.0
    %5758 = vmatprep.subr.mxu0 0.0
    %5759 = vmatpush1.msra.mxu0 0.0
    %5760 = vmatprep.subr.mxu0 0.0
    %5761 = vmatpush1.msra.mxu0 0.0
    %5762 = vmatprep.subr.mxu0 0.0
    %5763 = vmatpush1.msra.mxu0 0.0
    %5764 = vmatprep.subr.mxu0 0.0
    %5765 = vmatpush1.msra.mxu0 0.0
    %5766 = vmatprep.subr.mxu0 0.0
    %5767 = vmatpush1.msra.mxu0 0.0
    %5768 = vmatprep.subr.mxu0 0.0
    %5769 = vmatpush1.msra.mxu0 0.0
    %5770 = vmatprep.subr.mxu0 0.0
    %5771 = vmatpush1.msra.mxu0 0.0
    %5772 = vmatprep.subr.mxu0 0.0
    %5773 = vmatpush1.msra.mxu0 0.0
    %5774 = vmatprep.subr.mxu0 0.0
    %5775 = vmatpush1.msra.mxu0 0.0
    %5776 = vmatprep.mubr.f32.mxu0 0.0
    %5777 = vmatmul.mubr.f32.gmra.mrb[0].mxu0 %v5710
    %v5778 = vpop.f32.mrb[0].mxu0
    %v5779 = vadd.f32 %v5707, %v5778
    %v5780 = vpop.f32.mrb[0].mxu0
    %5781 = vdwg.mxu0
    %v5782 = vmax.f32 %v5779, 0.0
    %v5783 = vld [vmem:[%s19] sm:$0xff]
    %v5784 = vld [vmem:[%s19 + $0x8] sm:$0xff]
    %v5785 = vld [vmem:[#allocation20] sm:$0x1]
    %v5787 = vlaneseq
    %v5788 = vshrl.u32 %v5787, 7
    %v5789 = vsub.s32 0, %v5788
    %v5790 = vrot.slane %v5785, %v5789
    %vm5792 = vcmask 130048
    %v5794 = vsel %vm5792, %v5782, 0
    %5796 = vmatprep.subr.mxu0 0.0
    %5797 = vmatpush1.msra.mxu0 %v5783
    %5798 = vmatprep.subr.mxu0 0.0
    %5799 = vmatpush1.msra.mxu0 %v5784
    %5800 = vmatprep.subr.mxu0 0.0
    %5801 = vmatpush1.msra.mxu0 0.0
    %5802 = vmatprep.subr.mxu0 0.0
    %5803 = vmatpush1.msra.mxu0 0.0
    %5804 = vmatprep.subr.mxu0 0.0
    %5805 = vmatpush1.msra.mxu0 0.0
    %5806 = vmatprep.subr.mxu0 0.0
    %5807 = vmatpush1.msra.mxu0 0.0
    %5808 = vmatprep.subr.mxu0 0.0
    %5809 = vmatpush1.msra.mxu0 0.0
    %5810 = vmatprep.subr.mxu0 0.0
    %5811 = vmatpush1.msra.mxu0 0.0
    %5812 = vmatprep.subr.mxu0 0.0
    %5813 = vmatpush1.msra.mxu0 0.0
    %5814 = vmatprep.subr.mxu0 0.0
    %5815 = vmatpush1.msra.mxu0 0.0
    %5816 = vmatprep.subr.mxu0 0.0
    %5817 = vmatpush1.msra.mxu0 0.0
    %5818 = vmatprep.subr.mxu0 0.0
    %5819 = vmatpush1.msra.mxu0 0.0
    %5820 = vmatprep.subr.mxu0 0.0
    %5821 = vmatpush1.msra.mxu0 0.0
    %5822 = vmatprep.subr.mxu0 0.0
    %5823 = vmatpush1.msra.mxu0 0.0
    %5824 = vmatprep.subr.mxu0 0.0
    %5825 = vmatpush1.msra.mxu0 0.0
    %5826 = vmatprep.subr.mxu0 0.0
    %5827 = vmatpush1.msra.mxu0 0.0
    %5828 = vmatprep.subr.mxu0 0.0
    %5829 = vmatpush1.msra.mxu0 0.0
    %5830 = vmatprep.subr.mxu0 0.0
    %5831 = vmatpush1.msra.mxu0 0.0
    %5832 = vmatprep.subr.mxu0 0.0
    %5833 = vmatpush1.msra.mxu0 0.0
    %5834 = vmatprep.subr.mxu0 0.0
    %5835 = vmatpush1.msra.mxu0 0.0
    %5836 = vmatprep.subr.mxu0 0.0
    %5837 = vmatpush1.msra.mxu0 0.0
    %5838 = vmatprep.subr.mxu0 0.0
    %5839 = vmatpush1.msra.mxu0 0.0
    %5840 = vmatprep.subr.mxu0 0.0
    %5841 = vmatpush1.msra.mxu0 0.0
    %5842 = vmatprep.subr.mxu0 0.0
    %5843 = vmatpush1.msra.mxu0 0.0
    %5844 = vmatprep.subr.mxu0 0.0
    %5845 = vmatpush1.msra.mxu0 0.0
    %5846 = vmatprep.subr.mxu0 0.0
    %5847 = vmatpush1.msra.mxu0 0.0
    %5848 = vmatprep.subr.mxu0 0.0
    %5849 = vmatpush1.msra.mxu0 0.0
    %5850 = vmatprep.subr.mxu0 0.0
    %5851 = vmatpush1.msra.mxu0 0.0
    %5852 = vmatprep.subr.mxu0 0.0
    %5853 = vmatpush1.msra.mxu0 0.0
    %5854 = vmatprep.subr.mxu0 0.0
    %5855 = vmatpush1.msra.mxu0 0.0
    %5856 = vmatprep.subr.mxu0 0.0
    %5857 = vmatpush1.msra.mxu0 0.0
    %5858 = vmatprep.subr.mxu0 0.0
    %5859 = vmatpush1.msra.mxu0 0.0
    %5860 = vmatprep.mubr.f32.mxu0 0.0
    %5861 = vmatmul.mubr.f32.gmra.mrb[0].mxu0 %v5794
    %v5862 = vpop.f32.mrb[0].mxu0
    %v5863 = vadd.f32 %v5790, %v5862
    %v5864 = vpop.f32.mrb[0].mxu0
    %5865 = vdwg.mxu0
    %v5866 = vmax.f32 %v5863, 0.0
    %v5867 = vld [vmem:[%s21] sm:$0xff]
    %v5868 = vld [vmem:[#allocation21] sm:$0x1]
    %v5870 = vlaneseq
    %v5871 = vshrl.u32 %v5870, 7
    %v5872 = vsub.s32 0, %v5871
    %v5873 = vrot.slane %v5868, %v5872
    %vm5875 = vcmask 64512
    %v5877 = vsel %vm5875, %v5866, 0
    %5879 = vmatprep.subr.mxu0 0.0
    %5880 = vmatpush1.msra.mxu0 %v5867
    %5881 = vmatprep.subr.mxu0 0.0
    %5882 = vmatpush1.msra.mxu0 0.0
    %5883 = vmatprep.subr.mxu0 0.0
    %5884 = vmatpush1.msra.mxu0 0.0
    %5885 = vmatprep.subr.mxu0 0.0
    %5886 = vmatpush1.msra.mxu0 0.0
    %5887 = vmatprep.subr.mxu0 0.0
    %5888 = vmatpush1.msra.mxu0 0.0
    %5889 = vmatprep.subr.mxu0 0.0
    %5890 = vmatpush1.msra.mxu0 0.0
    %5891 = vmatprep.subr.mxu0 0.0
    %5892 = vmatpush1.msra.mxu0 0.0
    %5893 = vmatprep.subr.mxu0 0.0
    %5894 = vmatpush1.msra.mxu0 0.0
    %5895 = vmatprep.subr.mxu0 0.0
    %5896 = vmatpush1.msra.mxu0 0.0
    %5897 = vmatprep.subr.mxu0 0.0
    %5898 = vmatpush1.msra.mxu0 0.0
    %5899 = vmatprep.subr.mxu0 0.0
    %5900 = vmatpush1.msra.mxu0 0.0
    %5901 = vmatprep.subr.mxu0 0.0
    %5902 = vmatpush1.msra.mxu0 0.0
    %5903 = vmatprep.subr.mxu0 0.0
    %5904 = vmatpush1.msra.mxu0 0.0
    %5905 = vmatprep.subr.mxu0 0.0
    %5906 = vmatpush1.msra.mxu0 0.0
    %5907 = vmatprep.subr.mxu0 0.0
    %5908 = vmatpush1.msra.mxu0 0.0
    %5909 = vmatprep.subr.mxu0 0.0
    %5910 = vmatpush1.msra.mxu0 0.0
    %5911 = vmatprep.subr.mxu0 0.0
    %5912 = vmatpush1.msra.mxu0 0.0
    %5913 = vmatprep.subr.mxu0 0.0
    %5914 = vmatpush1.msra.mxu0 0.0
    %5915 = vmatprep.subr.mxu0 0.0
    %5916 = vmatpush1.msra.mxu0 0.0
    %5917 = vmatprep.subr.mxu0 0.0
    %5918 = vmatpush1.msra.mxu0 0.0
    %5919 = vmatprep.subr.mxu0 0.0
    %5920 = vmatpush1.msra.mxu0 0.0
    %5921 = vmatprep.subr.mxu0 0.0
    %5922 = vmatpush1.msra.mxu0 0.0
    %5923 = vmatprep.subr.mxu0 0.0
    %5924 = vmatpush1.msra.mxu0 0.0
    %5925 = vmatprep.subr.mxu0 0.0
    %5926 = vmatpush1.msra.mxu0 0.0
    %5927 = vmatprep.subr.mxu0 0.0
    %5928 = vmatpush1.msra.mxu0 0.0
    %5929 = vmatprep.subr.mxu0 0.0
    %5930 = vmatpush1.msra.mxu0 0.0
    %5931 = vmatprep.subr.mxu0 0.0
    %5932 = vmatpush1.msra.mxu0 0.0
    %5933 = vmatprep.subr.mxu0 0.0
    %5934 = vmatpush1.msra.mxu0 0.0
    %5935 = vmatprep.subr.mxu0 0.0
    %5936 = vmatpush1.msra.mxu0 0.0
    %5937 = vmatprep.subr.mxu0 0.0
    %5938 = vmatpush1.msra.mxu0 0.0
    %5939 = vmatprep.subr.mxu0 0.0
    %5940 = vmatpush1.msra.mxu0 0.0
    %5941 = vmatprep.subr.mxu0 0.0
    %5942 = vmatpush1.msra.mxu0 0.0
    %5943 = vmatprep.mubr.f32.mxu0 0.0
    %5944 = vmatmul.mubr.f32.gmra.mrb[0].mxu0 %v5877
    %v5945 = vpop.f32.mrb[0].mxu0
    %v5946 = vadd.f32 %v5873, %v5945
    %v5947 = vpop.f32.mrb[0].mxu0
    %5948 = vdwg.mxu0
    %vm5949 = vcmask 23552
    %v5950 = vsel %vm5949, %v5946, -inf
    %5951 = vmax.xlane.f32.xlu0 %v5950
    %v5952 = vpop.xlane.xlu0 %5951
    %v5953 = vsub.f32 %v5946, %v5952
    %v5954 = vmul.f32 %v5953, 1.442695
    %v5955 = vpow.pop %v5954
    %v5956 = vsel %vm5949, %v5955, 0.0
    %5957 = vadd.xlane.f32.xlu0 %v5956
    %v5958 = vpop.xlane.xlu0 %5957
    %v5959 = vrcp.pop %v5958
    %v5960 = vmul.f32 %v5955, %v5959
    %5961 = vst.msk [vmem:[%s23] sm:$0xff] %vm5949, %v5960
    // Predicated region
    $region146: #{em_model_forward.1} parent=1 // pred_check
      _
    $region147: #{em_model_forward.1} parent=1 // pred_check_branch
      %5963 = sbr.rel (0) target = $region149
    $region148: #{em_model_forward.1} parent=1 // pred_region
      _
    $region149: #{em_model_forward.1} parent=1 // pred_fallthru
      _
    // Predicated region
    $region150: #{em_model_forward.1} parent=1 // pred_check
      _
    $region151: #{em_model_forward.1} parent=1 // pred_check_branch
      %5965 = sbr.rel (0) target = $region153
    $region152: #{em_model_forward.1} parent=1 // pred_region
      _
    $region153: #{em_model_forward.1} parent=1 // pred_fallthru
      _
    %5966 = vsyncpa [#allocation3], 1
    %5967 = vsyncpa [#allocation7], 1
    %5968 = vsyncpa [#allocation10], 1
    %5969 = vsyncpa [#allocation13], 1
    %5970 = vsyncpa [#allocation16], 1
    %5971 = vsyncpa [#allocation19], 1
    %5972 = vsyncpa [#allocation22], 1
    %5973 = vsyncpa [#allocation4], 1

</llo_original>
